<compile_context>
chip_gen: v7x
topology: tpu7x:2x2x1
jax: 0.10.0
libtpu: 0.0.40
codegen_flags: <defaults>
</compile_context>

<pallas_src>
import math

import jax
import jax.numpy as jnp
import numpy as np
from jax.experimental import pallas as pl
from jax.experimental.pallas import tpu as pltpu

# ----------------------------- hyper-parameters -----------------------------
PATCH = 14                      # DINOv2 ViT-B/14 patch size
IMG = 28                        # small image (multiple of 14) -> 2x2 patches
IN_CH = 3
EMBED = 32                      # real ViT-B/14: 768
HEADS = 4                       # real: 12
HEAD_DIM = EMBED // HEADS
DEPTH = 2                       # real: 12
MLP_HIDDEN = 4 * EMBED
NUM_CLASSES = 9
PAD_CLASSES = 128               # lane-dense classifier output, sliced to 9 outside
LN_EPS = 1e-6
N_PATCH = (IMG // PATCH) ** 2
TOKENS = N_PATCH + 1            # 5
T_PAD = 8                       # tokens padded to a whole sublane group
PATCH_DIM = IN_CH * PATCH * PATCH   # 588
K_PAD = 640                     # patch-embed contraction padded to 128-multiple
QKV_PAD = 128                   # fused q|k|v output lanes (3*EMBED=96 -> 128)


# ------------------------------ shared helpers -------------------------------
def _gelu_tanh(x):
    # TODO(synk): PyTorch nn.GELU default is the exact erf form; the tanh
    # approximation is used here for portable Mosaic lowering (the pure-JAX
    # reference below uses the same approximation).
    c = math.sqrt(2.0 / math.pi)
    return 0.5 * x * (1.0 + jnp.tanh(c * (x + 0.044715 * x * x * x)))


def _layernorm(x, g, b):
    mu = jnp.mean(x, axis=-1, keepdims=True)
    xc = x - mu
    var = jnp.mean(xc * xc, axis=-1, keepdims=True)
    return xc * jax.lax.rsqrt(var + LN_EPS) * g + b


# ------------------------------- Pallas kernel --------------------------------
def _dinov2_kernel(patches_ref, patch_w_ref, base_ref,
                   ln1g_ref, ln1b_ref, wqkv_ref, bqkv_ref,
                   projw_ref, projb_ref, ls1_ref,
                   ln2g_ref, ln2b_ref, fc1w_ref, fc1b_ref,
                   fc2w_ref, fc2b_ref, ls2_ref,
                   normg_ref, normb_ref, headw_ref, headb_ref,
                   out_ref, x_ref):
    """One grid step == one transformer block.  x_ref (VMEM scratch) carries the
    padded (B*T_PAD, D) token activations across the DEPTH grid."""
    f32 = jnp.float32
    layer = pl.program_id(0)
    bt = x_ref.shape[0]
    batch = bt // T_PAD

    # ---- step 0: patch embed (K-padded matmul) + CLS / pos / bias assembly ---
    @pl.when(layer == 0)
    def _():
        emb = jnp.dot(patches_ref[...], patch_w_ref[...],
                      preferred_element_type=f32)            # (BT, D)
        # `base` (host-built) holds cls_token+pos on CLS rows, pos+patch_bias on
        # patch rows and zeros on pad rows; padded `patches` rows are zero, so
        # one add completes the token assembly — no selector matmuls.
        x_ref[...] = emb + base_ref[...]

    x = x_ref[...]                                           # (BT, D)

    # ------------------------------ attention --------------------------------
    xn = _layernorm(x, ln1g_ref[...], ln1b_ref[...])
    qkv = (jnp.dot(xn, wqkv_ref[...], preferred_element_type=f32)
           + bqkv_ref[...])                                  # (BT, 128) fused QKV
    q = qkv[:, 0:EMBED] * (1.0 / math.sqrt(HEAD_DIM))
    k = qkv[:, EMBED:2 * EMBED]
    v = qkv[:, 2 * EMBED:3 * EMBED]
    q3 = q.reshape(batch, T_PAD, EMBED)
    k3 = k.reshape(batch, T_PAD, EMBED)
    v3 = v.reshape(batch, T_PAD, EMBED)

    # block-diagonal per-batch attention; mask the padded key columns.
    key_idx = jax.lax.broadcasted_iota(jnp.int32, (batch, T_PAD, T_PAD), 2)
    key_bias = jnp.where(key_idx >= TOKENS, f32(-1e30), f32(0.0))

    outs = []
    for h in range(HEADS):                                   # heads contiguous in lanes
        sl = slice(h * HEAD_DIM, (h + 1) * HEAD_DIM)
        qh, kh, vh = q3[:, :, sl], k3[:, :, sl], v3[:, :, sl]
        logits = jnp.einsum("bqd,bkd->bqk", qh, kh,
                            preferred_element_type=f32) + key_bias
        m = jnp.max(logits, axis=-1, keepdims=True)
        p = jnp.exp(logits - m)
        p = p * pl.reciprocal(jnp.sum(p, axis=-1, keepdims=True), approx=True)
        outs.append(jnp.einsum("bqk,bkd->bqd", p, vh,
                               preferred_element_type=f32))
    o = jnp.concatenate(outs, axis=-1).reshape(bt, EMBED)    # head concat
    attn = (jnp.dot(o, projw_ref[...], preferred_element_type=f32)
            + projb_ref[...])
    x = x + ls1_ref[...] * attn                              # LayerScale

    # -------------------------------- MLP ------------------------------------
    xn2 = _layernorm(x, ln2g_ref[...], ln2b_ref[...])
    h1 = _gelu_tanh(jnp.dot(xn2, fc1w_ref[...], preferred_element_type=f32)
                    + fc1b_ref[...])
    h2 = jnp.dot(h1, fc2w_ref[...], preferred_element_type=f32) + fc2b_ref[...]
    x = x + ls2_ref[...] * h2                                # LayerScale
    x_ref[...] = x

    # ---- last step: final LN + lane-dense classifier on all rows; wrapper
    #      picks each batch's CLS row and the first NUM_CLASSES lanes. ---------
    @pl.when(layer == pl.num_programs(0) - 1)
    def _():
        cn = _layernorm(x, normg_ref[...], normb_ref[...])
        out_ref[...] = (jnp.dot(cn, headw_ref[...], preferred_element_type=f32)
                        + headb_ref[...])                    # (BT, 128)


# ------------------------------ Pallas wrapper --------------------------------
def _rep_spec(arr):
    """Whole-array block, same block at every grid step (fetched once)."""
    idx = (0,) * arr.ndim
    return pl.BlockSpec(arr.shape, lambda d, _i=idx: _i)


def _per_layer_spec(arr):
    """Leading DEPTH axis indexed by the grid step (squeezed inside the kernel)."""
    trailing = arr.shape[1:]
    return pl.BlockSpec((None,) + trailing,
                        lambda d, _n=len(trailing): (d,) + (0,) * _n)


def extract_patches(x):
    """NCHW image -> (B, N_patches, C*P*P), matching Conv2d(k=14, s=14) +
    flatten(2).transpose(1, 2) token ordering (row-major over the patch grid)."""
    B, C, H, W = x.shape
    hp, wp = H // PATCH, W // PATCH
    x = x.reshape(B, C, hp, PATCH, wp, PATCH)
    x = x.transpose(0, 2, 4, 1, 3, 5)                  # (B, hp, wp, C, P, P)
    return x.reshape(B, hp * wp, C * PATCH * PATCH)


def custom_dinov2_forward(x, params):
    B = x.shape[0]
    BT = B * T_PAD

    # ---- host-side layout plumbing (no in-kernel selector matrices) ----------
    patches = extract_patches(x)                              # (B, N_PATCH, 588)
    patches_pad = jnp.zeros((B, T_PAD, K_PAD), jnp.float32)
    patches_pad = patches_pad.at[:, 1:1 + N_PATCH, :PATCH_DIM].set(patches)
    patches_pad = patches_pad.reshape(BT, K_PAD)

    patch_w_pad = jnp.zeros((K_PAD, EMBED), jnp.float32)
    patch_w_pad = patch_w_pad.at[:PATCH_DIM, :].set(params["patch_w"])

    # TODO(synk): real DINOv2 bicubically interpolates pos_embed to the input
    # resolution; here pos_embed is built at the target token count already.
    pos = params["pos_embed"].reshape(TOKENS, EMBED)
    base = jnp.zeros((T_PAD, EMBED), jnp.float32)
    base = base.at[0, :].set(params["cls_token"].reshape(EMBED) + pos[0])
    base = base.at[1:TOKENS, :].set(pos[1:] + params["patch_b"][None, :])
    base = jnp.tile(base, (B, 1))                              # (BT, D)

    blocks = params["blocks"]
    stack = lambda fn: jnp.stack([fn(p) for p in blocks], axis=0)
    pad_lanes = lambda a, n: jnp.pad(a, ((0, 0), (0, n - a.shape[-1])))
    # fused QKV weight/bias, padded 96 -> 128 output lanes
    wqkv = stack(lambda p: pad_lanes(p["qkv_w"], QKV_PAD))     # (DEPTH, D, 128)
    bqkv = stack(lambda p: pad_lanes(p["qkv_b"], QKV_PAD))     # (DEPTH, 1, 128)
    # TODO(synk): at real ViT-B/14 sizes cast these per-layer weight slabs to
    # bf16 (keep f32 accumulation and f32 VPU math) to halve VMEM/DMA per layer.

    head_w_pad = jnp.zeros((EMBED, PAD_CLASSES), jnp.float32)
    head_w_pad = head_w_pad.at[:, :NUM_CLASSES].set(params["head_w"])
    head_b_pad = jnp.zeros((1, PAD_CLASSES), jnp.float32)
    head_b_pad = head_b_pad.at[0, :NUM_CLASSES].set(params["head_b"])

    norm_g = params["norm_g"].reshape(1, EMBED)
    norm_b = params["norm_b"].reshape(1, EMBED)

    fixed_in = [patches_pad, patch_w_pad, base]
    layer_in = [stack(lambda p: p["ln1_g"]), stack(lambda p: p["ln1_b"]),
                wqkv, bqkv,
                stack(lambda p: p["proj_w"]), stack(lambda p: p["proj_b"]),
                stack(lambda p: p["ls1"]),
                stack(lambda p: p["ln2_g"]), stack(lambda p: p["ln2_b"]),
                stack(lambda p: p["fc1_w"]), stack(lambda p: p["fc1_b"]),
                stack(lambda p: p["fc2_w"]), stack(lambda p: p["fc2_b"]),
                stack(lambda p: p["ls2"])]
    tail_in = [norm_g, norm_b, head_w_pad, head_b_pad]
    inputs = fixed_in + layer_in + tail_in
    in_specs = ([_rep_spec(a) for a in fixed_in]
                + [_per_layer_spec(a) for a in layer_in]
                + [_rep_spec(a) for a in tail_in])

    out_pad = pl.pallas_call(
        _dinov2_kernel,
        out_shape=jax.ShapeDtypeStruct((BT, PAD_CLASSES), jnp.float32),
        grid_spec=pltpu.PrefetchScalarGridSpec(
            num_scalar_prefetch=0,
            grid=(DEPTH,),
            in_specs=in_specs,
            out_specs=pl.BlockSpec((BT, PAD_CLASSES), lambda d: (0, 0)),
            scratch_shapes=[pltpu.VMEM((BT, EMBED), jnp.float32)]),
        compiler_params=pltpu.CompilerParams(
            dimension_semantics=("arbitrary",)),
    )(*inputs)

    # pick each batch's CLS row and the first NUM_CLASSES lanes
    return out_pad.reshape(B, T_PAD, PAD_CLASSES)[:, 0, :NUM_CLASSES]


# --------------------------- deterministic weights ---------------------------
def init_params(key):
    ks = jax.random.split(key, 4 + DEPTH)
    P = PATCH_DIM

    def dense(k, fan_in, shape):
        return (jax.random.normal(k, shape, jnp.float32) /
                np.float32(math.sqrt(fan_in)))

    params = {
        "patch_w": dense(ks[0], P, (P, EMBED)),
        "patch_b": jnp.zeros((EMBED,), jnp.float32),
        "cls_token": 0.02 * jax.random.normal(ks[1], (1, 1, EMBED), jnp.float32),
        "pos_embed": 0.02 * jax.random.normal(ks[2], (1, TOKENS, EMBED),
                                              jnp.float32),
        "norm_g": jnp.ones((EMBED,), jnp.float32),
        "norm_b": jnp.zeros((EMBED,), jnp.float32),
        "head_w": dense(ks[3], EMBED, (EMBED, NUM_CLASSES)),
        "head_b": jnp.zeros((NUM_CLASSES,), jnp.float32),
        "blocks": [],
    }
    for d in range(DEPTH):
        kb = jax.random.split(ks[4 + d], 4)
        params["blocks"].append({
            "ln1_g": jnp.ones((1, EMBED), jnp.float32),
            "ln1_b": jnp.zeros((1, EMBED), jnp.float32),
            "qkv_w": dense(kb[0], EMBED, (EMBED, 3 * EMBED)),
            "qkv_b": jnp.zeros((1, 3 * EMBED), jnp.float32),
            "proj_w": dense(kb[1], EMBED, (EMBED, EMBED)),
            "proj_b": jnp.zeros((1, EMBED), jnp.float32),
            "ls1": jnp.ones((1, EMBED), jnp.float32),   # DINOv2 init_values
            "ln2_g": jnp.ones((1, EMBED), jnp.float32),
            "ln2_b": jnp.zeros((1, EMBED), jnp.float32),
            "fc1_w": dense(kb[2], EMBED, (EMBED, MLP_HIDDEN)),
            "fc1_b": jnp.zeros((1, MLP_HIDDEN), jnp.float32),
            "fc2_w": dense(kb[3], MLP_HIDDEN, (MLP_HIDDEN, EMBED)),
            "fc2_b": jnp.zeros((1, EMBED), jnp.float32),
            "ls2": jnp.ones((1, EMBED), jnp.float32),
        })
    return params


# ------------------------------ pure-JAX reference ---------------------------
def reference_forward(x, params):
    B = x.shape[0]
    patches = extract_patches(x)
    tok = patches @ params["patch_w"] + params["patch_b"]
    cls = jnp.broadcast_to(params["cls_token"], (B, 1, EMBED))
    t = jnp.concatenate([cls, tok], axis=1) + params["pos_embed"]
    for p in params["blocks"]:
        zn = _layernorm(t, p["ln1_g"], p["ln1_b"])
        qkv = zn @ p["qkv_w"] + p["qkv_b"]
        q, k, v = jnp.split(qkv, 3, axis=-1)

        def heads(a):
            return a.reshape(B, TOKENS, HEADS, HEAD_DIM).transpose(0, 2, 1, 3)

        qh, kh, vh = heads(q), heads(k), heads(v)
        logits = jnp.einsum("bhqd,bhkd->bhqk", qh, kh) / math.sqrt(HEAD_DIM)
        attn = jax.nn.softmax(logits, axis=-1)
        o = jnp.einsum("bhqk,bhkd->bhqd", attn, vh)
        o = o.transpose(0, 2, 1, 3).reshape(B, TOKENS, EMBED)
        o = o @ p["proj_w"] + p["proj_b"]
        t = t + p["ls1"] * o
        zn2 = _layernorm(t, p["ln2_g"], p["ln2_b"])
        h = _gelu_tanh(zn2 @ p["fc1_w"] + p["fc1_b"])
        h = h @ p["fc2_w"] + p["fc2_b"]
        t = t + p["ls2"] * h
    cls_out = _layernorm(t[:, 0, :], params["norm_g"], params["norm_b"])
    return cls_out @ params["head_w"] + params["head_b"]


# ------------------------------------ main ------------------------------------
if __name__ == "__main__":
    key = jax.random.PRNGKey(0)
    kx, kp = jax.random.split(key)
    x = jax.random.normal(kx, (2, IN_CH, IMG, IMG), dtype=jnp.float32)
    params = init_params(kp)

    out = jax.jit(custom_dinov2_forward)(x, params)
    out = jax.block_until_ready(out)

    assert out.shape == (2, NUM_CLASSES), out.shape
    ref = reference_forward(x, params)
    max_diff = float(jnp.max(jnp.abs(out - ref)))
    assert np.isfinite(np.asarray(out)).all()
    # the only intentional numeric deviation from the exact-fp32 reference is
    # the EUP approximate reciprocal in the softmax normalization.
    assert max_diff < 5e-3, f"max abs diff vs reference: {max_diff}"
    print("KERNEL_OK")
</pallas_src>

<mosaic_0001>
module attributes {stable_mosaic.version = 11 : i64} {
  func.func @_dinov2_kernel(%arg0: i32, %arg1: memref<16x640xf32, #tpu.memory_space<vmem>>, %arg2: memref<640x32xf32, #tpu.memory_space<vmem>>, %arg3: memref<16x32xf32, #tpu.memory_space<vmem>>, %arg4: memref<1x1x32xf32, #tpu.memory_space<vmem>>, %arg5: memref<1x1x32xf32, #tpu.memory_space<vmem>>, %arg6: memref<1x32x128xf32, #tpu.memory_space<vmem>>, %arg7: memref<1x1x128xf32, #tpu.memory_space<vmem>>, %arg8: memref<1x32x32xf32, #tpu.memory_space<vmem>>, %arg9: memref<1x1x32xf32, #tpu.memory_space<vmem>>, %arg10: memref<1x1x32xf32, #tpu.memory_space<vmem>>, %arg11: memref<1x1x32xf32, #tpu.memory_space<vmem>>, %arg12: memref<1x1x32xf32, #tpu.memory_space<vmem>>, %arg13: memref<1x32x128xf32, #tpu.memory_space<vmem>>, %arg14: memref<1x1x128xf32, #tpu.memory_space<vmem>>, %arg15: memref<1x128x32xf32, #tpu.memory_space<vmem>>, %arg16: memref<1x1x32xf32, #tpu.memory_space<vmem>>, %arg17: memref<1x1x32xf32, #tpu.memory_space<vmem>>, %arg18: memref<1x32xf32, #tpu.memory_space<vmem>>, %arg19: memref<1x32xf32, #tpu.memory_space<vmem>>, %arg20: memref<32x128xf32, #tpu.memory_space<vmem>>, %arg21: memref<1x128xf32, #tpu.memory_space<vmem>>, %arg22: memref<16x128xf32, #tpu.memory_space<vmem>>, %arg23: memref<16x32xf32, #tpu.memory_space<vmem>>) attributes {dimension_semantics = [#tpu.dimension_semantics<arbitrary>], iteration_bounds = array<i64: 2>, scalar_prefetch = 0 : i64, scratch_operands = 1 : i64, tpu.core_type = #tpu.core_type<tc>, window_params = [{pipeline_mode = #tpu.pipeline_mode<synchronous>, transform_indices = @transform_0, window_bounds = array<i64: 16, 640>}, {pipeline_mode = #tpu.pipeline_mode<synchronous>, transform_indices = @transform_1, window_bounds = array<i64: 640, 32>}, {pipeline_mode = #tpu.pipeline_mode<synchronous>, transform_indices = @transform_2, window_bounds = array<i64: 16, 32>}, {transform_indices = @transform_3, window_bounds = array<i64: 1, 1, 32>}, {transform_indices = @transform_4, window_bounds = array<i64: 1, 1, 32>}, {transform_indices = @transform_5, window_bounds = array<i64: 1, 32, 128>}, {transform_indices = @transform_6, window_bounds = array<i64: 1, 1, 128>}, {transform_indices = @transform_7, window_bounds = array<i64: 1, 32, 32>}, {transform_indices = @transform_8, window_bounds = array<i64: 1, 1, 32>}, {transform_indices = @transform_9, window_bounds = array<i64: 1, 1, 32>}, {transform_indices = @transform_10, window_bounds = array<i64: 1, 1, 32>}, {transform_indices = @transform_11, window_bounds = array<i64: 1, 1, 32>}, {transform_indices = @transform_12, window_bounds = array<i64: 1, 32, 128>}, {transform_indices = @transform_13, window_bounds = array<i64: 1, 1, 128>}, {transform_indices = @transform_14, window_bounds = array<i64: 1, 128, 32>}, {transform_indices = @transform_15, window_bounds = array<i64: 1, 1, 32>}, {transform_indices = @transform_16, window_bounds = array<i64: 1, 1, 32>}, {pipeline_mode = #tpu.pipeline_mode<synchronous>, transform_indices = @transform_17, window_bounds = array<i64: 1, 32>}, {pipeline_mode = #tpu.pipeline_mode<synchronous>, transform_indices = @transform_18, window_bounds = array<i64: 1, 32>}, {pipeline_mode = #tpu.pipeline_mode<synchronous>, transform_indices = @transform_19, window_bounds = array<i64: 32, 128>}, {pipeline_mode = #tpu.pipeline_mode<synchronous>, transform_indices = @transform_20, window_bounds = array<i64: 1, 128>}, {pipeline_mode = #tpu.pipeline_mode<synchronous>, transform_indices = @transform_21, window_bounds = array<i64: 16, 128>}]} {
    %c0_i32 = arith.constant 0 : i32
    %0 = arith.cmpi eq, %arg0, %c0_i32 : i32
    %1 = arith.extui %0 : i1 to i32
    %c0_i32_0 = arith.constant 0 : i32
    %2 = arith.cmpi ne, %1, %c0_i32_0 : i32
    scf.if %2 {
      %c0_83 = arith.constant 0 : index
      %c0_84 = arith.constant 0 : index
      %187 = vector.load %arg1[%c0_83, %c0_84] : memref<16x640xf32, #tpu.memory_space<vmem>>, vector<16x640xf32>
      %c0_85 = arith.constant 0 : index
      %c0_86 = arith.constant 0 : index
      %188 = vector.load %arg2[%c0_85, %c0_86] : memref<640x32xf32, #tpu.memory_space<vmem>>, vector<640x32xf32>
      %cst_87 = arith.constant dense<0.000000e+00> : vector<16x32xf32>
      %189 = tpu.matmul %187, %188, %cst_87 {dimension_numbers = #tpu.dot_dimension_numbers<[1], [0], [0], [1], [0, 0, 1, 1], [], []>} : vector<16x640xf32>, vector<640x32xf32>, vector<16x32xf32> -> vector<16x32xf32>
      %c0_88 = arith.constant 0 : index
      %c0_89 = arith.constant 0 : index
      %190 = vector.load %arg3[%c0_88, %c0_89] : memref<16x32xf32, #tpu.memory_space<vmem>>, vector<16x32xf32>
      %191 = arith.addf %189, %190 : vector<16x32xf32>
      %c0_90 = arith.constant 0 : index
      %c0_91 = arith.constant 0 : index
      %192 = vector.load %arg23[%c0_90, %c0_91] : memref<16x32xf32, #tpu.memory_space<vmem>>, vector<16x32xf32>
      tpu.vector_store %arg23[%c0_90, %c0_91], %191 {strides = array<i32>} : memref<16x32xf32, #tpu.memory_space<vmem>>, vector<16x32xf32>,
    } else {
    }
    %c0 = arith.constant 0 : index
    %c0_1 = arith.constant 0 : index
    %3 = vector.load %arg23[%c0, %c0_1] : memref<16x32xf32, #tpu.memory_space<vmem>>, vector<16x32xf32>
    %c0_2 = arith.constant 0 : index
    %c0_3 = arith.constant 0 : index
    %c0_4 = arith.constant 0 : index
    %4 = vector.load %arg4[%c0_2, %c0_3, %c0_4] : memref<1x1x32xf32, #tpu.memory_space<vmem>>, vector<1x1x32xf32>
    %5 = vector.shape_cast %4 : vector<1x1x32xf32> to vector<1x32xf32>
    %c0_5 = arith.constant 0 : index
    %c0_6 = arith.constant 0 : index
    %c0_7 = arith.constant 0 : index
    %6 = vector.load %arg5[%c0_5, %c0_6, %c0_7] : memref<1x1x32xf32, #tpu.memory_space<vmem>>, vector<1x1x32xf32>
    %7 = vector.shape_cast %6 : vector<1x1x32xf32> to vector<1x32xf32>
    %cst = arith.constant dense<0.000000e+00> : vector<16xf32>
    %8 = vector.multi_reduction <add>, %3, %cst [1] : vector<16x32xf32> to vector<16xf32>
    %9 = vector.shape_cast %8 : vector<16xf32> to vector<16x1xf32>
    %cst_8 = arith.constant 3.200000e+01 : f32
    %10 = vector.broadcast %cst_8 : f32 to vector<16x1xf32>
    %11 = arith.divf %9, %10 : vector<16x1xf32>
    %12 = vector.broadcast %11 : vector<16x1xf32> to vector<16x32xf32>
    %13 = arith.subf %3, %12 : vector<16x32xf32>
    %14 = arith.mulf %13, %13 : vector<16x32xf32>
    %cst_9 = arith.constant dense<0.000000e+00> : vector<16xf32>
    %15 = vector.multi_reduction <add>, %14, %cst_9 [1] : vector<16x32xf32> to vector<16xf32>
    %16 = vector.shape_cast %15 : vector<16xf32> to vector<16x1xf32>
    %cst_10 = arith.constant 3.200000e+01 : f32
    %17 = vector.broadcast %cst_10 : f32 to vector<16x1xf32>
    %18 = arith.divf %16, %17 : vector<16x1xf32>
    %cst_11 = arith.constant 9.99999997E-7 : f32
    %19 = vector.broadcast %cst_11 : f32 to vector<16x1xf32>
    %20 = arith.addf %18, %19 : vector<16x1xf32>
    %21 = math.rsqrt %20 : vector<16x1xf32>
    %22 = vector.broadcast %21 : vector<16x1xf32> to vector<16x32xf32>
    %23 = arith.mulf %13, %22 : vector<16x32xf32>
    %24 = vector.broadcast %5 : vector<1x32xf32> to vector<16x32xf32>
    %25 = arith.mulf %23, %24 : vector<16x32xf32>
    %26 = vector.broadcast %7 : vector<1x32xf32> to vector<16x32xf32>
    %27 = arith.addf %25, %26 : vector<16x32xf32>
    %c0_12 = arith.constant 0 : index
    %c0_13 = arith.constant 0 : index
    %c0_14 = arith.constant 0 : index
    %28 = vector.load %arg6[%c0_12, %c0_13, %c0_14] : memref<1x32x128xf32, #tpu.memory_space<vmem>>, vector<1x32x128xf32>
    %29 = vector.shape_cast %28 : vector<1x32x128xf32> to vector<32x128xf32>
    %cst_15 = arith.constant dense<0.000000e+00> : vector<16x128xf32>
    %30 = tpu.matmul %27, %29, %cst_15 {dimension_numbers = #tpu.dot_dimension_numbers<[1], [0], [0], [1], [0, 0, 1, 1], [], []>} : vector<16x32xf32>, vector<32x128xf32>, vector<16x128xf32> -> vector<16x128xf32>
    %c0_16 = arith.constant 0 : index
    %c0_17 = arith.constant 0 : index
    %c0_18 = arith.constant 0 : index
    %31 = vector.load %arg7[%c0_16, %c0_17, %c0_18] : memref<1x1x128xf32, #tpu.memory_space<vmem>>, vector<1x1x128xf32>
    %32 = vector.shape_cast %31 : vector<1x1x128xf32> to vector<1x128xf32>
    %33 = vector.broadcast %32 : vector<1x128xf32> to vector<16x128xf32>
    %34 = arith.addf %30, %33 : vector<16x128xf32>
    %35 = vector.extract_strided_slice %34 {offsets = [0, 0], sizes = [16, 32], strides = [1, 1]} : vector<16x128xf32> to vector<16x32xf32>
    %cst_19 = arith.constant 0.353553385 : f32
    %36 = vector.broadcast %cst_19 : f32 to vector<16x32xf32>
    %37 = arith.mulf %35, %36 : vector<16x32xf32>
    %38 = vector.extract_strided_slice %34 {offsets = [0, 32], sizes = [16, 32], strides = [1, 1]} : vector<16x128xf32> to vector<16x32xf32>
    %39 = vector.extract_strided_slice %34 {offsets = [0, 64], sizes = [16, 32], strides = [1, 1]} : vector<16x128xf32> to vector<16x32xf32>
    %40 = vector.shape_cast %37 : vector<16x32xf32> to vector<2x8x32xf32>
    %41 = vector.shape_cast %38 : vector<16x32xf32> to vector<2x8x32xf32>
    %42 = vector.shape_cast %39 : vector<16x32xf32> to vector<2x8x32xf32>
    %43 = tpu.iota {dimensions = array<i32: 2>} : vector<2x8x8xi32>
    %c5_i32 = arith.constant 5 : i32
    %44 = vector.broadcast %c5_i32 : i32 to vector<2x8x8xi32>
    %45 = arith.cmpi sge, %43, %44 : vector<2x8x8xi32>
    %cst_20 = arith.constant -1.000000e+30 : f32
    %cst_21 = arith.constant 0.000000e+00 : f32
    %46 = vector.broadcast %cst_20 : f32 to vector<2x8x8xf32>
    %47 = vector.broadcast %cst_21 : f32 to vector<2x8x8xf32>
    %48 = arith.select %45, %46, %47 : vector<2x8x8xi1>, vector<2x8x8xf32>
    %49 = vector.extract_strided_slice %40 {offsets = [0, 0, 0], sizes = [2, 8, 8], strides = [1, 1, 1]} : vector<2x8x32xf32> to vector<2x8x8xf32>
    %50 = vector.extract_strided_slice %41 {offsets = [0, 0, 0], sizes = [2, 8, 8], strides = [1, 1, 1]} : vector<2x8x32xf32> to vector<2x8x8xf32>
    %51 = vector.extract_strided_slice %42 {offsets = [0, 0, 0], sizes = [2, 8, 8], strides = [1, 1, 1]} : vector<2x8x32xf32> to vector<2x8x8xf32>
    "tpu.trace_start"() <{level = 10 : i32, message = "bqd,bkd->bqk"}> : () -> ()
    %cst_22 = arith.constant dense<0.000000e+00> : vector<2x8x8xf32>
    %52 = tpu.matmul %49, %50, %cst_22 {dimension_numbers = #tpu.dot_dimension_numbers<[2], [2], [1], [1], [0, 0, 0, 1, 1, 1], [0], [0]>} : vector<2x8x8xf32>, vector<2x8x8xf32>, vector<2x8x8xf32> -> vector<2x8x8xf32>
    "tpu.trace_stop"() : () -> ()
    %53 = arith.addf %52, %48 : vector<2x8x8xf32>
    %cst_23 = arith.constant dense<0xFF800000> : vector<2x8xf32>
    %54 = vector.multi_reduction <maximumf>, %53, %cst_23 [2] : vector<2x8x8xf32> to vector<2x8xf32>
    %55 = vector.shape_cast %54 : vector<2x8xf32> to vector<2x8x1xf32>
    %56 = vector.broadcast %55 : vector<2x8x1xf32> to vector<2x8x8xf32>
    %57 = arith.subf %53, %56 : vector<2x8x8xf32>
    %58 = math.exp %57 : vector<2x8x8xf32>
    %cst_24 = arith.constant dense<0.000000e+00> : vector<2x8xf32>
    %59 = vector.multi_reduction <add>, %58, %cst_24 [2] : vector<2x8x8xf32> to vector<2x8xf32>
    %60 = vector.shape_cast %59 : vector<2x8xf32> to vector<2x8x1xf32>
    %61 = tpu.reciprocal %60 {approx = true} : vector<2x8x1xf32> -> vector<2x8x1xf32>
    %62 = vector.broadcast %61 : vector<2x8x1xf32> to vector<2x8x8xf32>
    %63 = arith.mulf %58, %62 : vector<2x8x8xf32>
    "tpu.trace_start"() <{level = 10 : i32, message = "bqk,bkd->bqd"}> : () -> ()
    %cst_25 = arith.constant dense<0.000000e+00> : vector<2x8x8xf32>
    %64 = tpu.matmul %63, %51, %cst_25 {dimension_numbers = #tpu.dot_dimension_numbers<[2], [1], [1], [2], [0, 0, 0, 1, 1, 2], [0], [0]>} : vector<2x8x8xf32>, vector<2x8x8xf32>, vector<2x8x8xf32> -> vector<2x8x8xf32>
    "tpu.trace_stop"() : () -> ()
    %65 = vector.extract_strided_slice %40 {offsets = [0, 0, 8], sizes = [2, 8, 8], strides = [1, 1, 1]} : vector<2x8x32xf32> to vector<2x8x8xf32>
    %66 = vector.extract_strided_slice %41 {offsets = [0, 0, 8], sizes = [2, 8, 8], strides = [1, 1, 1]} : vector<2x8x32xf32> to vector<2x8x8xf32>
    %67 = vector.extract_strided_slice %42 {offsets = [0, 0, 8], sizes = [2, 8, 8], strides = [1, 1, 1]} : vector<2x8x32xf32> to vector<2x8x8xf32>
    "tpu.trace_start"() <{level = 10 : i32, message = "bqd,bkd->bqk"}> : () -> ()
    %cst_26 = arith.constant dense<0.000000e+00> : vector<2x8x8xf32>
    %68 = tpu.matmul %65, %66, %cst_26 {dimension_numbers = #tpu.dot_dimension_numbers<[2], [2], [1], [1], [0, 0, 0, 1, 1, 1], [0], [0]>} : vector<2x8x8xf32>, vector<2x8x8xf32>, vector<2x8x8xf32> -> vector<2x8x8xf32>
    "tpu.trace_stop"() : () -> ()
    %69 = arith.addf %68, %48 : vector<2x8x8xf32>
    %cst_27 = arith.constant dense<0xFF800000> : vector<2x8xf32>
    %70 = vector.multi_reduction <maximumf>, %69, %cst_27 [2] : vector<2x8x8xf32> to vector<2x8xf32>
    %71 = vector.shape_cast %70 : vector<2x8xf32> to vector<2x8x1xf32>
    %72 = vector.broadcast %71 : vector<2x8x1xf32> to vector<2x8x8xf32>
    %73 = arith.subf %69, %72 : vector<2x8x8xf32>
    %74 = math.exp %73 : vector<2x8x8xf32>
    %cst_28 = arith.constant dense<0.000000e+00> : vector<2x8xf32>
    %75 = vector.multi_reduction <add>, %74, %cst_28 [2] : vector<2x8x8xf32> to vector<2x8xf32>
    %76 = vector.shape_cast %75 : vector<2x8xf32> to vector<2x8x1xf32>
    %77 = tpu.reciprocal %76 {approx = true} : vector<2x8x1xf32> -> vector<2x8x1xf32>
    %78 = vector.broadcast %77 : vector<2x8x1xf32> to vector<2x8x8xf32>
    %79 = arith.mulf %74, %78 : vector<2x8x8xf32>
    "tpu.trace_start"() <{level = 10 : i32, message = "bqk,bkd->bqd"}> : () -> ()
    %cst_29 = arith.constant dense<0.000000e+00> : vector<2x8x8xf32>
    %80 = tpu.matmul %79, %67, %cst_29 {dimension_numbers = #tpu.dot_dimension_numbers<[2], [1], [1], [2], [0, 0, 0, 1, 1, 2], [0], [0]>} : vector<2x8x8xf32>, vector<2x8x8xf32>, vector<2x8x8xf32> -> vector<2x8x8xf32>
    "tpu.trace_stop"() : () -> ()
    %81 = vector.extract_strided_slice %40 {offsets = [0, 0, 16], sizes = [2, 8, 8], strides = [1, 1, 1]} : vector<2x8x32xf32> to vector<2x8x8xf32>
    %82 = vector.extract_strided_slice %41 {offsets = [0, 0, 16], sizes = [2, 8, 8], strides = [1, 1, 1]} : vector<2x8x32xf32> to vector<2x8x8xf32>
    %83 = vector.extract_strided_slice %42 {offsets = [0, 0, 16], sizes = [2, 8, 8], strides = [1, 1, 1]} : vector<2x8x32xf32> to vector<2x8x8xf32>
    "tpu.trace_start"() <{level = 10 : i32, message = "bqd,bkd->bqk"}> : () -> ()
    %cst_30 = arith.constant dense<0.000000e+00> : vector<2x8x8xf32>
    %84 = tpu.matmul %81, %82, %cst_30 {dimension_numbers = #tpu.dot_dimension_numbers<[2], [2], [1], [1], [0, 0, 0, 1, 1, 1], [0], [0]>} : vector<2x8x8xf32>, vector<2x8x8xf32>, vector<2x8x8xf32> -> vector<2x8x8xf32>
    "tpu.trace_stop"() : () -> ()
    %85 = arith.addf %84, %48 : vector<2x8x8xf32>
    %cst_31 = arith.constant dense<0xFF800000> : vector<2x8xf32>
    %86 = vector.multi_reduction <maximumf>, %85, %cst_31 [2] : vector<2x8x8xf32> to vector<2x8xf32>
    %87 = vector.shape_cast %86 : vector<2x8xf32> to vector<2x8x1xf32>
    %88 = vector.broadcast %87 : vector<2x8x1xf32> to vector<2x8x8xf32>
    %89 = arith.subf %85, %88 : vector<2x8x8xf32>
    %90 = math.exp %89 : vector<2x8x8xf32>
    %cst_32 = arith.constant dense<0.000000e+00> : vector<2x8xf32>
    %91 = vector.multi_reduction <add>, %90, %cst_32 [2] : vector<2x8x8xf32> to vector<2x8xf32>
    %92 = vector.shape_cast %91 : vector<2x8xf32> to vector<2x8x1xf32>
    %93 = tpu.reciprocal %92 {approx = true} : vector<2x8x1xf32> -> vector<2x8x1xf32>
    %94 = vector.broadcast %93 : vector<2x8x1xf32> to vector<2x8x8xf32>
    %95 = arith.mulf %90, %94 : vector<2x8x8xf32>
    "tpu.trace_start"() <{level = 10 : i32, message = "bqk,bkd->bqd"}> : () -> ()
    %cst_33 = arith.constant dense<0.000000e+00> : vector<2x8x8xf32>
    %96 = tpu.matmul %95, %83, %cst_33 {dimension_numbers = #tpu.dot_dimension_numbers<[2], [1], [1], [2], [0, 0, 0, 1, 1, 2], [0], [0]>} : vector<2x8x8xf32>, vector<2x8x8xf32>, vector<2x8x8xf32> -> vector<2x8x8xf32>
    "tpu.trace_stop"() : () -> ()
    %97 = vector.extract_strided_slice %40 {offsets = [0, 0, 24], sizes = [2, 8, 8], strides = [1, 1, 1]} : vector<2x8x32xf32> to vector<2x8x8xf32>
    %98 = vector.extract_strided_slice %41 {offsets = [0, 0, 24], sizes = [2, 8, 8], strides = [1, 1, 1]} : vector<2x8x32xf32> to vector<2x8x8xf32>
    %99 = vector.extract_strided_slice %42 {offsets = [0, 0, 24], sizes = [2, 8, 8], strides = [1, 1, 1]} : vector<2x8x32xf32> to vector<2x8x8xf32>
    "tpu.trace_start"() <{level = 10 : i32, message = "bqd,bkd->bqk"}> : () -> ()
    %cst_34 = arith.constant dense<0.000000e+00> : vector<2x8x8xf32>
    %100 = tpu.matmul %97, %98, %cst_34 {dimension_numbers = #tpu.dot_dimension_numbers<[2], [2], [1], [1], [0, 0, 0, 1, 1, 1], [0], [0]>} : vector<2x8x8xf32>, vector<2x8x8xf32>, vector<2x8x8xf32> -> vector<2x8x8xf32>
    "tpu.trace_stop"() : () -> ()
    %101 = arith.addf %100, %48 : vector<2x8x8xf32>
    %cst_35 = arith.constant dense<0xFF800000> : vector<2x8xf32>
    %102 = vector.multi_reduction <maximumf>, %101, %cst_35 [2] : vector<2x8x8xf32> to vector<2x8xf32>
    %103 = vector.shape_cast %102 : vector<2x8xf32> to vector<2x8x1xf32>
    %104 = vector.broadcast %103 : vector<2x8x1xf32> to vector<2x8x8xf32>
    %105 = arith.subf %101, %104 : vector<2x8x8xf32>
    %106 = math.exp %105 : vector<2x8x8xf32>
    %cst_36 = arith.constant dense<0.000000e+00> : vector<2x8xf32>
    %107 = vector.multi_reduction <add>, %106, %cst_36 [2] : vector<2x8x8xf32> to vector<2x8xf32>
    %108 = vector.shape_cast %107 : vector<2x8xf32> to vector<2x8x1xf32>
    %109 = tpu.reciprocal %108 {approx = true} : vector<2x8x1xf32> -> vector<2x8x1xf32>
    %110 = vector.broadcast %109 : vector<2x8x1xf32> to vector<2x8x8xf32>
    %111 = arith.mulf %106, %110 : vector<2x8x8xf32>
    "tpu.trace_start"() <{level = 10 : i32, message = "bqk,bkd->bqd"}> : () -> ()
    %cst_37 = arith.constant dense<0.000000e+00> : vector<2x8x8xf32>
    %112 = tpu.matmul %111, %99, %cst_37 {dimension_numbers = #tpu.dot_dimension_numbers<[2], [1], [1], [2], [0, 0, 0, 1, 1, 2], [0], [0]>} : vector<2x8x8xf32>, vector<2x8x8xf32>, vector<2x8x8xf32> -> vector<2x8x8xf32>
    "tpu.trace_stop"() : () -> ()
    %113 = tpu.concatenate %64, %80, %96, %112 in 2 : vector<2x8x8xf32>, vector<2x8x8xf32>, vector<2x8x8xf32>, vector<2x8x8xf32> -> vector<2x8x32xf32>
    %114 = vector.shape_cast %113 : vector<2x8x32xf32> to vector<16x32xf32>
    %c0_38 = arith.constant 0 : index
    %c0_39 = arith.constant 0 : index
    %c0_40 = arith.constant 0 : index
    %115 = vector.load %arg8[%c0_38, %c0_39, %c0_40] : memref<1x32x32xf32, #tpu.memory_space<vmem>>, vector<1x32x32xf32>
    %116 = vector.shape_cast %115 : vector<1x32x32xf32> to vector<32x32xf32>
    %cst_41 = arith.constant dense<0.000000e+00> : vector<16x32xf32>
    %117 = tpu.matmul %114, %116, %cst_41 {dimension_numbers = #tpu.dot_dimension_numbers<[1], [0], [0], [1], [0, 0, 1, 1], [], []>} : vector<16x32xf32>, vector<32x32xf32>, vector<16x32xf32> -> vector<16x32xf32>
    %c0_42 = arith.constant 0 : index
    %c0_43 = arith.constant 0 : index
    %c0_44 = arith.constant 0 : index
    %118 = vector.load %arg9[%c0_42, %c0_43, %c0_44] : memref<1x1x32xf32, #tpu.memory_space<vmem>>, vector<1x1x32xf32>
    %119 = vector.shape_cast %118 : vector<1x1x32xf32> to vector<1x32xf32>
    %120 = vector.broadcast %119 : vector<1x32xf32> to vector<16x32xf32>
    %121 = arith.addf %117, %120 : vector<16x32xf32>
    %c0_45 = arith.constant 0 : index
    %c0_46 = arith.constant 0 : index
    %c0_47 = arith.constant 0 : index
    %122 = vector.load %arg10[%c0_45, %c0_46, %c0_47] : memref<1x1x32xf32, #tpu.memory_space<vmem>>, vector<1x1x32xf32>
    %123 = vector.shape_cast %122 : vector<1x1x32xf32> to vector<1x32xf32>
    %124 = vector.broadcast %123 : vector<1x32xf32> to vector<16x32xf32>
    %125 = arith.mulf %124, %121 : vector<16x32xf32>
    %126 = arith.addf %3, %125 : vector<16x32xf32>
    %c0_48 = arith.constant 0 : index
    %c0_49 = arith.constant 0 : index
    %c0_50 = arith.constant 0 : index
    %127 = vector.load %arg11[%c0_48, %c0_49, %c0_50] : memref<1x1x32xf32, #tpu.memory_space<vmem>>, vector<1x1x32xf32>
    %128 = vector.shape_cast %127 : vector<1x1x32xf32> to vector<1x32xf32>
    %c0_51 = arith.constant 0 : index
    %c0_52 = arith.constant 0 : index
    %c0_53 = arith.constant 0 : index
    %129 = vector.load %arg12[%c0_51, %c0_52, %c0_53] : memref<1x1x32xf32, #tpu.memory_space<vmem>>, vector<1x1x32xf32>
    %130 = vector.shape_cast %129 : vector<1x1x32xf32> to vector<1x32xf32>
    %cst_54 = arith.constant dense<0.000000e+00> : vector<16xf32>
    %131 = vector.multi_reduction <add>, %126, %cst_54 [1] : vector<16x32xf32> to vector<16xf32>
    %132 = vector.shape_cast %131 : vector<16xf32> to vector<16x1xf32>
    %cst_55 = arith.constant 3.200000e+01 : f32
    %133 = vector.broadcast %cst_55 : f32 to vector<16x1xf32>
    %134 = arith.divf %132, %133 : vector<16x1xf32>
    %135 = vector.broadcast %134 : vector<16x1xf32> to vector<16x32xf32>
    %136 = arith.subf %126, %135 : vector<16x32xf32>
    %137 = arith.mulf %136, %136 : vector<16x32xf32>
    %cst_56 = arith.constant dense<0.000000e+00> : vector<16xf32>
    %138 = vector.multi_reduction <add>, %137, %cst_56 [1] : vector<16x32xf32> to vector<16xf32>
    %139 = vector.shape_cast %138 : vector<16xf32> to vector<16x1xf32>
    %cst_57 = arith.constant 3.200000e+01 : f32
    %140 = vector.broadcast %cst_57 : f32 to vector<16x1xf32>
    %141 = arith.divf %139, %140 : vector<16x1xf32>
    %cst_58 = arith.constant 9.99999997E-7 : f32
    %142 = vector.broadcast %cst_58 : f32 to vector<16x1xf32>
    %143 = arith.addf %141, %142 : vector<16x1xf32>
    %144 = math.rsqrt %143 : vector<16x1xf32>
    %145 = vector.broadcast %144 : vector<16x1xf32> to vector<16x32xf32>
    %146 = arith.mulf %136, %145 : vector<16x32xf32>
    %147 = vector.broadcast %128 : vector<1x32xf32> to vector<16x32xf32>
    %148 = arith.mulf %146, %147 : vector<16x32xf32>
    %149 = vector.broadcast %130 : vector<1x32xf32> to vector<16x32xf32>
    %150 = arith.addf %148, %149 : vector<16x32xf32>
    %c0_59 = arith.constant 0 : index
    %c0_60 = arith.constant 0 : index
    %c0_61 = arith.constant 0 : index
    %151 = vector.load %arg13[%c0_59, %c0_60, %c0_61] : memref<1x32x128xf32, #tpu.memory_space<vmem>>, vector<1x32x128xf32>
    %152 = vector.shape_cast %151 : vector<1x32x128xf32> to vector<32x128xf32>
    %cst_62 = arith.constant dense<0.000000e+00> : vector<16x128xf32>
    %153 = tpu.matmul %150, %152, %cst_62 {dimension_numbers = #tpu.dot_dimension_numbers<[1], [0], [0], [1], [0, 0, 1, 1], [], []>} : vector<16x32xf32>, vector<32x128xf32>, vector<16x128xf32> -> vector<16x128xf32>
    %c0_63 = arith.constant 0 : index
    %c0_64 = arith.constant 0 : index
    %c0_65 = arith.constant 0 : index
    %154 = vector.load %arg14[%c0_63, %c0_64, %c0_65] : memref<1x1x128xf32, #tpu.memory_space<vmem>>, vector<1x1x128xf32>
    %155 = vector.shape_cast %154 : vector<1x1x128xf32> to vector<1x128xf32>
    %156 = vector.broadcast %155 : vector<1x128xf32> to vector<16x128xf32>
    %157 = arith.addf %153, %156 : vector<16x128xf32>
    %cst_66 = arith.constant 5.000000e-01 : f32
    %158 = vector.broadcast %cst_66 : f32 to vector<16x128xf32>
    %159 = arith.mulf %158, %157 : vector<16x128xf32>
    %cst_67 = arith.constant 4.471500e-02 : f32
    %160 = vector.broadcast %cst_67 : f32 to vector<16x128xf32>
    %161 = arith.mulf %160, %157 : vector<16x128xf32>
    %162 = arith.mulf %161, %157 : vector<16x128xf32>
    %163 = arith.mulf %162, %157 : vector<16x128xf32>
    %164 = arith.addf %157, %163 : vector<16x128xf32>
    %cst_68 = arith.constant 0.797884583 : f32
    %165 = vector.broadcast %cst_68 : f32 to vector<16x128xf32>
    %166 = arith.mulf %165, %164 : vector<16x128xf32>
    %167 = math.tanh %166 : vector<16x128xf32>
    %cst_69 = arith.constant 1.000000e+00 : f32
    %168 = vector.broadcast %cst_69 : f32 to vector<16x128xf32>
    %169 = arith.addf %168, %167 : vector<16x128xf32>
    %170 = arith.mulf %159, %169 : vector<16x128xf32>
    %c0_70 = arith.constant 0 : index
    %c0_71 = arith.constant 0 : index
    %c0_72 = arith.constant 0 : index
    %171 = vector.load %arg15[%c0_70, %c0_71, %c0_72] : memref<1x128x32xf32, #tpu.memory_space<vmem>>, vector<1x128x32xf32>
    %172 = vector.shape_cast %171 : vector<1x128x32xf32> to vector<128x32xf32>
    %cst_73 = arith.constant dense<0.000000e+00> : vector<16x32xf32>
    %173 = tpu.matmul %170, %172, %cst_73 {dimension_numbers = #tpu.dot_dimension_numbers<[1], [0], [0], [1], [0, 0, 1, 1], [], []>} : vector<16x128xf32>, vector<128x32xf32>, vector<16x32xf32> -> vector<16x32xf32>
    %c0_74 = arith.constant 0 : index
    %c0_75 = arith.constant 0 : index
    %c0_76 = arith.constant 0 : index
    %174 = vector.load %arg16[%c0_74, %c0_75, %c0_76] : memref<1x1x32xf32, #tpu.memory_space<vmem>>, vector<1x1x32xf32>
    %175 = vector.shape_cast %174 : vector<1x1x32xf32> to vector<1x32xf32>
    %176 = vector.broadcast %175 : vector<1x32xf32> to vector<16x32xf32>
    %177 = arith.addf %173, %176 : vector<16x32xf32>
    %c0_77 = arith.constant 0 : index
    %c0_78 = arith.constant 0 : index
    %c0_79 = arith.constant 0 : index
    %178 = vector.load %arg17[%c0_77, %c0_78, %c0_79] : memref<1x1x32xf32, #tpu.memory_space<vmem>>, vector<1x1x32xf32>
    %179 = vector.shape_cast %178 : vector<1x1x32xf32> to vector<1x32xf32>
    %180 = vector.broadcast %179 : vector<1x32xf32> to vector<16x32xf32>
    %181 = arith.mulf %180, %177 : vector<16x32xf32>
    %182 = arith.addf %126, %181 : vector<16x32xf32>
    %c0_80 = arith.constant 0 : index
    %c0_81 = arith.constant 0 : index
    %183 = vector.load %arg23[%c0_80, %c0_81] : memref<16x32xf32, #tpu.memory_space<vmem>>, vector<16x32xf32>
    tpu.vector_store %arg23[%c0_80, %c0_81], %182 {strides = array<i32>} : memref<16x32xf32, #tpu.memory_space<vmem>>, vector<16x32xf32>,
    %c1_i32 = arith.constant 1 : i32
    %184 = arith.cmpi eq, %arg0, %c1_i32 : i32
    %185 = arith.extui %184 : i1 to i32
    %c0_i32_82 = arith.constant 0 : i32
    %186 = arith.cmpi ne, %185, %c0_i32_82 : i32
    scf.if %186 {
      %c0_83 = arith.constant 0 : index
      %c0_84 = arith.constant 0 : index
      %187 = vector.load %arg18[%c0_83, %c0_84] : memref<1x32xf32, #tpu.memory_space<vmem>>, vector<1x32xf32>
      %c0_85 = arith.constant 0 : index
      %c0_86 = arith.constant 0 : index
      %188 = vector.load %arg19[%c0_85, %c0_86] : memref<1x32xf32, #tpu.memory_space<vmem>>, vector<1x32xf32>
      %cst_87 = arith.constant dense<0.000000e+00> : vector<16xf32>
      %189 = vector.multi_reduction <add>, %182, %cst_87 [1] : vector<16x32xf32> to vector<16xf32>
      %190 = vector.shape_cast %189 : vector<16xf32> to vector<16x1xf32>
      %cst_88 = arith.constant 3.200000e+01 : f32
      %191 = vector.broadcast %cst_88 : f32 to vector<16x1xf32>
      %192 = arith.divf %190, %191 : vector<16x1xf32>
      %193 = vector.broadcast %192 : vector<16x1xf32> to vector<16x32xf32>
      %194 = arith.subf %182, %193 : vector<16x32xf32>
      %195 = arith.mulf %194, %194 : vector<16x32xf32>
      %cst_89 = arith.constant dense<0.000000e+00> : vector<16xf32>
      %196 = vector.multi_reduction <add>, %195, %cst_89 [1] : vector<16x32xf32> to vector<16xf32>
      %197 = vector.shape_cast %196 : vector<16xf32> to vector<16x1xf32>
      %cst_90 = arith.constant 3.200000e+01 : f32
      %198 = vector.broadcast %cst_90 : f32 to vector<16x1xf32>
      %199 = arith.divf %197, %198 : vector<16x1xf32>
      %cst_91 = arith.constant 9.99999997E-7 : f32
      %200 = vector.broadcast %cst_91 : f32 to vector<16x1xf32>
      %201 = arith.addf %199, %200 : vector<16x1xf32>
      %202 = math.rsqrt %201 : vector<16x1xf32>
      %203 = vector.broadcast %202 : vector<16x1xf32> to vector<16x32xf32>
      %204 = arith.mulf %194, %203 : vector<16x32xf32>
      %205 = vector.broadcast %187 : vector<1x32xf32> to vector<16x32xf32>
      %206 = arith.mulf %204, %205 : vector<16x32xf32>
      %207 = vector.broadcast %188 : vector<1x32xf32> to vector<16x32xf32>
      %208 = arith.addf %206, %207 : vector<16x32xf32>
      %c0_92 = arith.constant 0 : index
      %c0_93 = arith.constant 0 : index
      %209 = vector.load %arg20[%c0_92, %c0_93] : memref<32x128xf32, #tpu.memory_space<vmem>>, vector<32x128xf32>
      %cst_94 = arith.constant dense<0.000000e+00> : vector<16x128xf32>
      %210 = tpu.matmul %208, %209, %cst_94 {dimension_numbers = #tpu.dot_dimension_numbers<[1], [0], [0], [1], [0, 0, 1, 1], [], []>} : vector<16x32xf32>, vector<32x128xf32>, vector<16x128xf32> -> vector<16x128xf32>
      %c0_95 = arith.constant 0 : index
      %c0_96 = arith.constant 0 : index
      %211 = vector.load %arg21[%c0_95, %c0_96] : memref<1x128xf32, #tpu.memory_space<vmem>>, vector<1x128xf32>
      %212 = vector.broadcast %211 : vector<1x128xf32> to vector<16x128xf32>
      %213 = arith.addf %210, %212 : vector<16x128xf32>
      %c0_97 = arith.constant 0 : index
      %c0_98 = arith.constant 0 : index
      %214 = vector.load %arg22[%c0_97, %c0_98] : memref<16x128xf32, #tpu.memory_space<vmem>>, vector<16x128xf32>
      tpu.vector_store %arg22[%c0_97, %c0_98], %213 {strides = array<i32>} : memref<16x128xf32, #tpu.memory_space<vmem>>, vector<16x128xf32>,
    } else {
    }
    return
  }
  func.func @transform_0(%arg0: i32) -> (i32, i32) {
    %c0_i32 = arith.constant 0 : i32
    %c0_i32_0 = arith.constant 0 : i32
    %c0_i32_1 = arith.constant 0 : i32
    return %c0_i32, %c0_i32_0 : i32, i32
  }
  func.func @transform_1(%arg0: i32) -> (i32, i32) {
    %c0_i32 = arith.constant 0 : i32
    %c0_i32_0 = arith.constant 0 : i32
    %c0_i32_1 = arith.constant 0 : i32
    return %c0_i32, %c0_i32_0 : i32, i32
  }
  func.func @transform_2(%arg0: i32) -> (i32, i32) {
    %c0_i32 = arith.constant 0 : i32
    %c0_i32_0 = arith.constant 0 : i32
    %c0_i32_1 = arith.constant 0 : i32
    return %c0_i32, %c0_i32_0 : i32, i32
  }
  func.func @transform_3(%arg0: i32) -> (i32, i32, i32) {
    %c0_i32 = arith.constant 0 : i32
    %c0_i32_0 = arith.constant 0 : i32
    %c0_i32_1 = arith.constant 0 : i32
    return %arg0, %c0_i32, %c0_i32_0 : i32, i32, i32
  }
  func.func @transform_4(%arg0: i32) -> (i32, i32, i32) {
    %c0_i32 = arith.constant 0 : i32
    %c0_i32_0 = arith.constant 0 : i32
    %c0_i32_1 = arith.constant 0 : i32
    return %arg0, %c0_i32, %c0_i32_0 : i32, i32, i32
  }
  func.func @transform_5(%arg0: i32) -> (i32, i32, i32) {
    %c0_i32 = arith.constant 0 : i32
    %c0_i32_0 = arith.constant 0 : i32
    %c0_i32_1 = arith.constant 0 : i32
    return %arg0, %c0_i32, %c0_i32_0 : i32, i32, i32
  }
  func.func @transform_6(%arg0: i32) -> (i32, i32, i32) {
    %c0_i32 = arith.constant 0 : i32
    %c0_i32_0 = arith.constant 0 : i32
    %c0_i32_1 = arith.constant 0 : i32
    return %arg0, %c0_i32, %c0_i32_0 : i32, i32, i32
  }
  func.func @transform_7(%arg0: i32) -> (i32, i32, i32) {
    %c0_i32 = arith.constant 0 : i32
    %c0_i32_0 = arith.constant 0 : i32
    %c0_i32_1 = arith.constant 0 : i32
    return %arg0, %c0_i32, %c0_i32_0 : i32, i32, i32
  }
  func.func @transform_8(%arg0: i32) -> (i32, i32, i32) {
    %c0_i32 = arith.constant 0 : i32
    %c0_i32_0 = arith.constant 0 : i32
    %c0_i32_1 = arith.constant 0 : i32
    return %arg0, %c0_i32, %c0_i32_0 : i32, i32, i32
  }
  func.func @transform_9(%arg0: i32) -> (i32, i32, i32) {
    %c0_i32 = arith.constant 0 : i32
    %c0_i32_0 = arith.constant 0 : i32
    %c0_i32_1 = arith.constant 0 : i32
    return %arg0, %c0_i32, %c0_i32_0 : i32, i32, i32
  }
  func.func @transform_10(%arg0: i32) -> (i32, i32, i32) {
    %c0_i32 = arith.constant 0 : i32
    %c0_i32_0 = arith.constant 0 : i32
    %c0_i32_1 = arith.constant 0 : i32
    return %arg0, %c0_i32, %c0_i32_0 : i32, i32, i32
  }
  func.func @transform_11(%arg0: i32) -> (i32, i32, i32) {
    %c0_i32 = arith.constant 0 : i32
    %c0_i32_0 = arith.constant 0 : i32
    %c0_i32_1 = arith.constant 0 : i32
    return %arg0, %c0_i32, %c0_i32_0 : i32, i32, i32
  }
  func.func @transform_12(%arg0: i32) -> (i32, i32, i32) {
    %c0_i32 = arith.constant 0 : i32
    %c0_i32_0 = arith.constant 0 : i32
    %c0_i32_1 = arith.constant 0 : i32
    return %arg0, %c0_i32, %c0_i32_0 : i32, i32, i32
  }
  func.func @transform_13(%arg0: i32) -> (i32, i32, i32) {
    %c0_i32 = arith.constant 0 : i32
    %c0_i32_0 = arith.constant 0 : i32
    %c0_i32_1 = arith.constant 0 : i32
    return %arg0, %c0_i32, %c0_i32_0 : i32, i32, i32
  }
  func.func @transform_14(%arg0: i32) -> (i32, i32, i32) {
    %c0_i32 = arith.constant 0 : i32
    %c0_i32_0 = arith.constant 0 : i32
    %c0_i32_1 = arith.constant 0 : i32
    return %arg0, %c0_i32, %c0_i32_0 : i32, i32, i32
  }
  func.func @transform_15(%arg0: i32) -> (i32, i32, i32) {
    %c0_i32 = arith.constant 0 : i32
    %c0_i32_0 = arith.constant 0 : i32
    %c0_i32_1 = arith.constant 0 : i32
    return %arg0, %c0_i32, %c0_i32_0 : i32, i32, i32
  }
  func.func @transform_16(%arg0: i32) -> (i32, i32, i32) {
    %c0_i32 = arith.constant 0 : i32
    %c0_i32_0 = arith.constant 0 : i32
    %c0_i32_1 = arith.constant 0 : i32
    return %arg0, %c0_i32, %c0_i32_0 : i32, i32, i32
  }
  func.func @transform_17(%arg0: i32) -> (i32, i32) {
    %c0_i32 = arith.constant 0 : i32
    %c0_i32_0 = arith.constant 0 : i32
    %c0_i32_1 = arith.constant 0 : i32
    return %c0_i32, %c0_i32_0 : i32, i32
  }
  func.func @transform_18(%arg0: i32) -> (i32, i32) {
    %c0_i32 = arith.constant 0 : i32
    %c0_i32_0 = arith.constant 0 : i32
    %c0_i32_1 = arith.constant 0 : i32
    return %c0_i32, %c0_i32_0 : i32, i32
  }
  func.func @transform_19(%arg0: i32) -> (i32, i32) {
    %c0_i32 = arith.constant 0 : i32
    %c0_i32_0 = arith.constant 0 : i32
    %c0_i32_1 = arith.constant 0 : i32
    return %c0_i32, %c0_i32_0 : i32, i32
  }
  func.func @transform_20(%arg0: i32) -> (i32, i32) {
    %c0_i32 = arith.constant 0 : i32
    %c0_i32_0 = arith.constant 0 : i32
    %c0_i32_1 = arith.constant 0 : i32
    return %c0_i32, %c0_i32_0 : i32, i32
  }
  func.func @transform_21(%arg0: i32) -> (i32, i32) {
    %c0_i32 = arith.constant 0 : i32
    %c0_i32_0 = arith.constant 0 : i32
    %c0_i32_1 = arith.constant 0 : i32
    return %c0_i32, %c0_i32_0 : i32, i32
  }
}

</mosaic_0001>

<llo_original>
// kernel: custom_dinov2_forward.1
$region0: #{custom_dinov2_forward.1}
  #allocation0 [shape = 'u32[]', space=smem, size = 0x4, offset = 0x4, fixed_abs, tag = 'smem constant byte address 0x4 - core index']
  #allocation1 [shape = 'u32[144,128]{1,0:T(1,128)}', space=vmem, size = 0x12000, scoped, tag = 'internal scratch']
  #allocation2 [shape = 'f32[16,32]{1,0:T(8,128)}', space=vmem, size = 0x2000, scoped, tag = 'scratch operand']
  %s0 = inlined_call_operand.vmem [shape: f32[16,640], index: 0, kind: input, shape index: {}]
  %s1 = inlined_call_operand.vmem [shape: f32[640,32], index: 1, kind: input, shape index: {}]
  %s2 = inlined_call_operand.vmem [shape: f32[16,32], index: 2, kind: input, shape index: {}]
  %s3 = inlined_call_operand.vmem [shape: f32[2,1,32], index: 3, kind: input, shape index: {}]
  %s4 = inlined_call_operand.vmem [shape: f32[2,1,32], index: 4, kind: input, shape index: {}]
  %s5 = inlined_call_operand.vmem [shape: f32[2,32,128], index: 5, kind: input, shape index: {}]
  %s6 = inlined_call_operand.vmem [shape: f32[2,1,128], index: 6, kind: input, shape index: {}]
  %s7 = inlined_call_operand.vmem [shape: f32[2,32,32], index: 7, kind: input, shape index: {}]
  %s8 = inlined_call_operand.vmem [shape: f32[2,1,32], index: 8, kind: input, shape index: {}]
  %s9 = inlined_call_operand.vmem [shape: f32[2,1,32], index: 9, kind: input, shape index: {}]
  %s10 = inlined_call_operand.vmem [shape: f32[2,1,32], index: 10, kind: input, shape index: {}]
  %s11 = inlined_call_operand.vmem [shape: f32[2,1,32], index: 11, kind: input, shape index: {}]
  %s12 = inlined_call_operand.vmem [shape: f32[2,32,128], index: 12, kind: input, shape index: {}]
  %s13 = inlined_call_operand.vmem [shape: f32[2,1,128], index: 13, kind: input, shape index: {}]
  %s14 = inlined_call_operand.vmem [shape: f32[2,128,32], index: 14, kind: input, shape index: {}]
  %s15 = inlined_call_operand.vmem [shape: f32[2,1,32], index: 15, kind: input, shape index: {}]
  %s16 = inlined_call_operand.vmem [shape: f32[2,1,32], index: 16, kind: input, shape index: {}]
  %s17 = inlined_call_operand.vmem [shape: f32[1,32], index: 17, kind: input, shape index: {}]
  %s18 = inlined_call_operand.vmem [shape: f32[1,32], index: 18, kind: input, shape index: {}]
  %s19 = inlined_call_operand.vmem [shape: f32[32,128], index: 19, kind: input, shape index: {}]
  %s20 = inlined_call_operand.vmem [shape: f32[1,128], index: 20, kind: input, shape index: {}]
  %s21 = inlined_call_operand.vmem [shape: f32[16,128], index: 21, kind: output, shape index: {}]
  %s22 = sld [smem:[#allocation0]]
  $region125: #{custom_dinov2_forward.1} parent=0
    _
  %s24 = ssub.s32 1, %s22
  %s25 = scalar_select 0, %s24, %s22
  loop: start=0, step=1, limit=4
  $region2: #{custom_dinov2_forward.1} parent=0 // loop_pre_header
    _
  $region3: #{custom_dinov2_forward.1} parent=0 // loop_header
    %s27 = sphi 0, %s31
    %p28 = scmp.ge.s32.totalorder %s27, 4
    %s35 = sphi 0, %s35
    %s37 = sphi 0, %s35
    %s38 = sphi 0, %s37
    %s52 = sphi 0, %s38
    %s56 = sphi 0, %s56
    %s58 = sphi 0, %s56
    %s59 = sphi 0, %s58
    %s73 = sphi 0, %s59
    %s77 = sphi 0, %s77
    %s79 = sphi 0, %s77
    %s80 = sphi 0, %s79
    %s94 = sphi 0, %s80
    %s100 = sphi 0, %s102
    %s103 = sphi 0, %s100
    %s104 = sphi 0, %s103
    %s120 = sphi 0, %s104
    %s126 = sphi 0, %s128
    %s129 = sphi 0, %s126
    %s130 = sphi 0, %s129
    %s146 = sphi 0, %s130
    %s152 = sphi 0, %s154
    %s155 = sphi 0, %s152
    %s156 = sphi 0, %s155
    %s172 = sphi 0, %s156
    %s178 = sphi 0, %s180
    %s181 = sphi 0, %s178
    %s182 = sphi 0, %s181
    %s198 = sphi 0, %s182
    %s204 = sphi 0, %s206
    %s207 = sphi 0, %s204
    %s208 = sphi 0, %s207
    %s224 = sphi 0, %s208
    %s230 = sphi 0, %s232
    %s233 = sphi 0, %s230
    %s234 = sphi 0, %s233
    %s250 = sphi 0, %s234
    %s256 = sphi 0, %s258
    %s259 = sphi 0, %s256
    %s260 = sphi 0, %s259
    %s276 = sphi 0, %s260
    %s282 = sphi 0, %s284
    %s285 = sphi 0, %s282
    %s286 = sphi 0, %s285
    %s302 = sphi 0, %s286
    %s308 = sphi 0, %s310
    %s311 = sphi 0, %s308
    %s312 = sphi 0, %s311
    %s328 = sphi 0, %s312
    %s334 = sphi 0, %s336
    %s337 = sphi 0, %s334
    %s338 = sphi 0, %s337
    %s354 = sphi 0, %s338
    %s360 = sphi 0, %s362
    %s363 = sphi 0, %s360
    %s364 = sphi 0, %s363
    %s380 = sphi 0, %s364
    %s386 = sphi 0, %s388
    %s389 = sphi 0, %s386
    %s390 = sphi 0, %s389
    %s406 = sphi 0, %s390
    %s412 = sphi 0, %s414
    %s415 = sphi 0, %s412
    %s416 = sphi 0, %s415
    %s432 = sphi 0, %s416
    %s438 = sphi 0, %s440
    %s441 = sphi 0, %s438
    %s442 = sphi 0, %s441
    %s458 = sphi 0, %s442
    %s462 = sphi 0, %s462
    %s464 = sphi 0, %s462
    %s465 = sphi 0, %s464
    %s479 = sphi 0, %s465
    %s483 = sphi 0, %s483
    %s485 = sphi 0, %s483
    %s486 = sphi 0, %s485
    %s500 = sphi 0, %s486
    %s504 = sphi 0, %s504
    %s506 = sphi 0, %s504
    %s507 = sphi 0, %s506
    %s521 = sphi 0, %s507
    %s525 = sphi 0, %s525
    %s527 = sphi 0, %s525
    %s528 = sphi 0, %s527
    %s542 = sphi 0, %s528
    %s546 = sphi 0, %s546
    %s548 = sphi 0, %s546
    %s549 = sphi 0, %s548
    %s563 = sphi 0, %s549
  $region4: #{custom_dinov2_forward.1} parent=0 // loop_header_branch
    %30 = sbr.rel (%p28) target = $region8
  $region5: #{custom_dinov2_forward.1} parent=0 // loop_body
    %s32 = ssub.s32 %s27, 1
    %s33 = ssub.s32 %s27, 2
    %s34 = sadd.s32 %s27, 1
    %s36 = sadd.s32 %s35, 1
    %p39 = scmp.eq.s32.totalorder %s27, 1
    %p40 = scmp.ne.s32.totalorder %s35, %s37
    %p41 = scmp.eq.s32.totalorder %s27, 0
    %p42 = por %p40, %p41
    %p43 = scmp.ne.s32.totalorder %s35, %s37
    %p44 = scmp.eq.s32.totalorder %s32, 1
    %p45 = por %p43, %p44
    %p46 = scmp.ne.s32.totalorder %s37, %s38
    %p47 = scmp.eq.s32.totalorder %s32, 0
    %p48 = por %p46, %p47
    %p49 = scmp.ne.s32.totalorder %s37, %s38
    %p50 = scmp.eq.s32.totalorder %s33, 1
    %p51 = por %p49, %p50
    %p53 = scmp.ne.s32.totalorder %s38, %s52
    %p54 = scmp.eq.s32.totalorder %s33, 0
    %p55 = por %p53, %p54
    %s57 = sadd.s32 %s56, 1
    %p60 = scmp.eq.s32.totalorder %s27, 1
    %p61 = scmp.ne.s32.totalorder %s56, %s58
    %p62 = scmp.eq.s32.totalorder %s27, 0
    %p63 = por %p61, %p62
    %p64 = scmp.ne.s32.totalorder %s56, %s58
    %p65 = scmp.eq.s32.totalorder %s32, 1
    %p66 = por %p64, %p65
    %p67 = scmp.ne.s32.totalorder %s58, %s59
    %p68 = scmp.eq.s32.totalorder %s32, 0
    %p69 = por %p67, %p68
    %p70 = scmp.ne.s32.totalorder %s58, %s59
    %p71 = scmp.eq.s32.totalorder %s33, 1
    %p72 = por %p70, %p71
    %p74 = scmp.ne.s32.totalorder %s59, %s73
    %p75 = scmp.eq.s32.totalorder %s33, 0
    %p76 = por %p74, %p75
    %s78 = sadd.s32 %s77, 1
    %p81 = scmp.eq.s32.totalorder %s27, 1
    %p82 = scmp.ne.s32.totalorder %s77, %s79
    %p83 = scmp.eq.s32.totalorder %s27, 0
    %p84 = por %p82, %p83
    %p85 = scmp.ne.s32.totalorder %s77, %s79
    %p86 = scmp.eq.s32.totalorder %s32, 1
    %p87 = por %p85, %p86
    %p88 = scmp.ne.s32.totalorder %s79, %s80
    %p89 = scmp.eq.s32.totalorder %s32, 0
    %p90 = por %p88, %p89
    %p91 = scmp.ne.s32.totalorder %s79, %s80
    %p92 = scmp.eq.s32.totalorder %s33, 1
    %p93 = por %p91, %p92
    %p95 = scmp.ne.s32.totalorder %s80, %s94
    %p96 = scmp.eq.s32.totalorder %s33, 0
    %p97 = por %p95, %p96
    %s98 = ssub.s32 %s27, %s34
    %p99 = scmp.eq.s32.totalorder %s98, 0
    %s101 = sadd.s32 %s100, 1
    %s102 = scalar_select %p99, %s100, %s101
    %p105 = pneg %p99
    %p106 = scmp.eq.s32.totalorder %s27, 1
    %p107 = por %p105, %p106
    %p108 = scmp.ne.s32.totalorder %s100, %s103
    %p109 = scmp.eq.s32.totalorder %s27, 0
    %p110 = por %p108, %p109
    %p111 = scmp.ne.s32.totalorder %s100, %s103
    %p112 = scmp.eq.s32.totalorder %s32, 1
    %p113 = por %p111, %p112
    %p114 = scmp.ne.s32.totalorder %s103, %s104
    %p115 = scmp.eq.s32.totalorder %s32, 0
    %p116 = por %p114, %p115
    %p117 = scmp.ne.s32.totalorder %s103, %s104
    %p118 = scmp.eq.s32.totalorder %s33, 1
    %p119 = por %p117, %p118
    %p121 = scmp.ne.s32.totalorder %s104, %s120
    %p122 = scmp.eq.s32.totalorder %s33, 0
    %p123 = por %p121, %p122
    %s124 = ssub.s32 %s27, %s34
    %p125 = scmp.eq.s32.totalorder %s124, 0
    %s127 = sadd.s32 %s126, 1
    %s128 = scalar_select %p125, %s126, %s127
    %p131 = pneg %p125
    %p132 = scmp.eq.s32.totalorder %s27, 1
    %p133 = por %p131, %p132
    %p134 = scmp.ne.s32.totalorder %s126, %s129
    %p135 = scmp.eq.s32.totalorder %s27, 0
    %p136 = por %p134, %p135
    %p137 = scmp.ne.s32.totalorder %s126, %s129
    %p138 = scmp.eq.s32.totalorder %s32, 1
    %p139 = por %p137, %p138
    %p140 = scmp.ne.s32.totalorder %s129, %s130
    %p141 = scmp.eq.s32.totalorder %s32, 0
    %p142 = por %p140, %p141
    %p143 = scmp.ne.s32.totalorder %s129, %s130
    %p144 = scmp.eq.s32.totalorder %s33, 1
    %p145 = por %p143, %p144
    %p147 = scmp.ne.s32.totalorder %s130, %s146
    %p148 = scmp.eq.s32.totalorder %s33, 0
    %p149 = por %p147, %p148
    %s150 = ssub.s32 %s27, %s34
    %p151 = scmp.eq.s32.totalorder %s150, 0
    %s153 = sadd.s32 %s152, 1
    %s154 = scalar_select %p151, %s152, %s153
    %p157 = pneg %p151
    %p158 = scmp.eq.s32.totalorder %s27, 1
    %p159 = por %p157, %p158
    %p160 = scmp.ne.s32.totalorder %s152, %s155
    %p161 = scmp.eq.s32.totalorder %s27, 0
    %p162 = por %p160, %p161
    %p163 = scmp.ne.s32.totalorder %s152, %s155
    %p164 = scmp.eq.s32.totalorder %s32, 1
    %p165 = por %p163, %p164
    %p166 = scmp.ne.s32.totalorder %s155, %s156
    %p167 = scmp.eq.s32.totalorder %s32, 0
    %p168 = por %p166, %p167
    %p169 = scmp.ne.s32.totalorder %s155, %s156
    %p170 = scmp.eq.s32.totalorder %s33, 1
    %p171 = por %p169, %p170
    %p173 = scmp.ne.s32.totalorder %s156, %s172
    %p174 = scmp.eq.s32.totalorder %s33, 0
    %p175 = por %p173, %p174
    %s176 = ssub.s32 %s27, %s34
    %p177 = scmp.eq.s32.totalorder %s176, 0
    %s179 = sadd.s32 %s178, 1
    %s180 = scalar_select %p177, %s178, %s179
    %p183 = pneg %p177
    %p184 = scmp.eq.s32.totalorder %s27, 1
    %p185 = por %p183, %p184
    %p186 = scmp.ne.s32.totalorder %s178, %s181
    %p187 = scmp.eq.s32.totalorder %s27, 0
    %p188 = por %p186, %p187
    %p189 = scmp.ne.s32.totalorder %s178, %s181
    %p190 = scmp.eq.s32.totalorder %s32, 1
    %p191 = por %p189, %p190
    %p192 = scmp.ne.s32.totalorder %s181, %s182
    %p193 = scmp.eq.s32.totalorder %s32, 0
    %p194 = por %p192, %p193
    %p195 = scmp.ne.s32.totalorder %s181, %s182
    %p196 = scmp.eq.s32.totalorder %s33, 1
    %p197 = por %p195, %p196
    %p199 = scmp.ne.s32.totalorder %s182, %s198
    %p200 = scmp.eq.s32.totalorder %s33, 0
    %p201 = por %p199, %p200
    %s202 = ssub.s32 %s27, %s34
    %p203 = scmp.eq.s32.totalorder %s202, 0
    %s205 = sadd.s32 %s204, 1
    %s206 = scalar_select %p203, %s204, %s205
    %p209 = pneg %p203
    %p210 = scmp.eq.s32.totalorder %s27, 1
    %p211 = por %p209, %p210
    %p212 = scmp.ne.s32.totalorder %s204, %s207
    %p213 = scmp.eq.s32.totalorder %s27, 0
    %p214 = por %p212, %p213
    %p215 = scmp.ne.s32.totalorder %s204, %s207
    %p216 = scmp.eq.s32.totalorder %s32, 1
    %p217 = por %p215, %p216
    %p218 = scmp.ne.s32.totalorder %s207, %s208
    %p219 = scmp.eq.s32.totalorder %s32, 0
    %p220 = por %p218, %p219
    %p221 = scmp.ne.s32.totalorder %s207, %s208
    %p222 = scmp.eq.s32.totalorder %s33, 1
    %p223 = por %p221, %p222
    %p225 = scmp.ne.s32.totalorder %s208, %s224
    %p226 = scmp.eq.s32.totalorder %s33, 0
    %p227 = por %p225, %p226
    %s228 = ssub.s32 %s27, %s34
    %p229 = scmp.eq.s32.totalorder %s228, 0
    %s231 = sadd.s32 %s230, 1
    %s232 = scalar_select %p229, %s230, %s231
    %p235 = pneg %p229
    %p236 = scmp.eq.s32.totalorder %s27, 1
    %p237 = por %p235, %p236
    %p238 = scmp.ne.s32.totalorder %s230, %s233
    %p239 = scmp.eq.s32.totalorder %s27, 0
    %p240 = por %p238, %p239
    %p241 = scmp.ne.s32.totalorder %s230, %s233
    %p242 = scmp.eq.s32.totalorder %s32, 1
    %p243 = por %p241, %p242
    %p244 = scmp.ne.s32.totalorder %s233, %s234
    %p245 = scmp.eq.s32.totalorder %s32, 0
    %p246 = por %p244, %p245
    %p247 = scmp.ne.s32.totalorder %s233, %s234
    %p248 = scmp.eq.s32.totalorder %s33, 1
    %p249 = por %p247, %p248
    %p251 = scmp.ne.s32.totalorder %s234, %s250
    %p252 = scmp.eq.s32.totalorder %s33, 0
    %p253 = por %p251, %p252
    %s254 = ssub.s32 %s27, %s34
    %p255 = scmp.eq.s32.totalorder %s254, 0
    %s257 = sadd.s32 %s256, 1
    %s258 = scalar_select %p255, %s256, %s257
    %p261 = pneg %p255
    %p262 = scmp.eq.s32.totalorder %s27, 1
    %p263 = por %p261, %p262
    %p264 = scmp.ne.s32.totalorder %s256, %s259
    %p265 = scmp.eq.s32.totalorder %s27, 0
    %p266 = por %p264, %p265
    %p267 = scmp.ne.s32.totalorder %s256, %s259
    %p268 = scmp.eq.s32.totalorder %s32, 1
    %p269 = por %p267, %p268
    %p270 = scmp.ne.s32.totalorder %s259, %s260
    %p271 = scmp.eq.s32.totalorder %s32, 0
    %p272 = por %p270, %p271
    %p273 = scmp.ne.s32.totalorder %s259, %s260
    %p274 = scmp.eq.s32.totalorder %s33, 1
    %p275 = por %p273, %p274
    %p277 = scmp.ne.s32.totalorder %s260, %s276
    %p278 = scmp.eq.s32.totalorder %s33, 0
    %p279 = por %p277, %p278
    %s280 = ssub.s32 %s27, %s34
    %p281 = scmp.eq.s32.totalorder %s280, 0
    %s283 = sadd.s32 %s282, 1
    %s284 = scalar_select %p281, %s282, %s283
    %p287 = pneg %p281
    %p288 = scmp.eq.s32.totalorder %s27, 1
    %p289 = por %p287, %p288
    %p290 = scmp.ne.s32.totalorder %s282, %s285
    %p291 = scmp.eq.s32.totalorder %s27, 0
    %p292 = por %p290, %p291
    %p293 = scmp.ne.s32.totalorder %s282, %s285
    %p294 = scmp.eq.s32.totalorder %s32, 1
    %p295 = por %p293, %p294
    %p296 = scmp.ne.s32.totalorder %s285, %s286
    %p297 = scmp.eq.s32.totalorder %s32, 0
    %p298 = por %p296, %p297
    %p299 = scmp.ne.s32.totalorder %s285, %s286
    %p300 = scmp.eq.s32.totalorder %s33, 1
    %p301 = por %p299, %p300
    %p303 = scmp.ne.s32.totalorder %s286, %s302
    %p304 = scmp.eq.s32.totalorder %s33, 0
    %p305 = por %p303, %p304
    %s306 = ssub.s32 %s27, %s34
    %p307 = scmp.eq.s32.totalorder %s306, 0
    %s309 = sadd.s32 %s308, 1
    %s310 = scalar_select %p307, %s308, %s309
    %p313 = pneg %p307
    %p314 = scmp.eq.s32.totalorder %s27, 1
    %p315 = por %p313, %p314
    %p316 = scmp.ne.s32.totalorder %s308, %s311
    %p317 = scmp.eq.s32.totalorder %s27, 0
    %p318 = por %p316, %p317
    %p319 = scmp.ne.s32.totalorder %s308, %s311
    %p320 = scmp.eq.s32.totalorder %s32, 1
    %p321 = por %p319, %p320
    %p322 = scmp.ne.s32.totalorder %s311, %s312
    %p323 = scmp.eq.s32.totalorder %s32, 0
    %p324 = por %p322, %p323
    %p325 = scmp.ne.s32.totalorder %s311, %s312
    %p326 = scmp.eq.s32.totalorder %s33, 1
    %p327 = por %p325, %p326
    %p329 = scmp.ne.s32.totalorder %s312, %s328
    %p330 = scmp.eq.s32.totalorder %s33, 0
    %p331 = por %p329, %p330
    %s332 = ssub.s32 %s27, %s34
    %p333 = scmp.eq.s32.totalorder %s332, 0
    %s335 = sadd.s32 %s334, 1
    %s336 = scalar_select %p333, %s334, %s335
    %p339 = pneg %p333
    %p340 = scmp.eq.s32.totalorder %s27, 1
    %p341 = por %p339, %p340
    %p342 = scmp.ne.s32.totalorder %s334, %s337
    %p343 = scmp.eq.s32.totalorder %s27, 0
    %p344 = por %p342, %p343
    %p345 = scmp.ne.s32.totalorder %s334, %s337
    %p346 = scmp.eq.s32.totalorder %s32, 1
    %p347 = por %p345, %p346
    %p348 = scmp.ne.s32.totalorder %s337, %s338
    %p349 = scmp.eq.s32.totalorder %s32, 0
    %p350 = por %p348, %p349
    %p351 = scmp.ne.s32.totalorder %s337, %s338
    %p352 = scmp.eq.s32.totalorder %s33, 1
    %p353 = por %p351, %p352
    %p355 = scmp.ne.s32.totalorder %s338, %s354
    %p356 = scmp.eq.s32.totalorder %s33, 0
    %p357 = por %p355, %p356
    %s358 = ssub.s32 %s27, %s34
    %p359 = scmp.eq.s32.totalorder %s358, 0
    %s361 = sadd.s32 %s360, 1
    %s362 = scalar_select %p359, %s360, %s361
    %p365 = pneg %p359
    %p366 = scmp.eq.s32.totalorder %s27, 1
    %p367 = por %p365, %p366
    %p368 = scmp.ne.s32.totalorder %s360, %s363
    %p369 = scmp.eq.s32.totalorder %s27, 0
    %p370 = por %p368, %p369
    %p371 = scmp.ne.s32.totalorder %s360, %s363
    %p372 = scmp.eq.s32.totalorder %s32, 1
    %p373 = por %p371, %p372
    %p374 = scmp.ne.s32.totalorder %s363, %s364
    %p375 = scmp.eq.s32.totalorder %s32, 0
    %p376 = por %p374, %p375
    %p377 = scmp.ne.s32.totalorder %s363, %s364
    %p378 = scmp.eq.s32.totalorder %s33, 1
    %p379 = por %p377, %p378
    %p381 = scmp.ne.s32.totalorder %s364, %s380
    %p382 = scmp.eq.s32.totalorder %s33, 0
    %p383 = por %p381, %p382
    %s384 = ssub.s32 %s27, %s34
    %p385 = scmp.eq.s32.totalorder %s384, 0
    %s387 = sadd.s32 %s386, 1
    %s388 = scalar_select %p385, %s386, %s387
    %p391 = pneg %p385
    %p392 = scmp.eq.s32.totalorder %s27, 1
    %p393 = por %p391, %p392
    %p394 = scmp.ne.s32.totalorder %s386, %s389
    %p395 = scmp.eq.s32.totalorder %s27, 0
    %p396 = por %p394, %p395
    %p397 = scmp.ne.s32.totalorder %s386, %s389
    %p398 = scmp.eq.s32.totalorder %s32, 1
    %p399 = por %p397, %p398
    %p400 = scmp.ne.s32.totalorder %s389, %s390
    %p401 = scmp.eq.s32.totalorder %s32, 0
    %p402 = por %p400, %p401
    %p403 = scmp.ne.s32.totalorder %s389, %s390
    %p404 = scmp.eq.s32.totalorder %s33, 1
    %p405 = por %p403, %p404
    %p407 = scmp.ne.s32.totalorder %s390, %s406
    %p408 = scmp.eq.s32.totalorder %s33, 0
    %p409 = por %p407, %p408
    %s410 = ssub.s32 %s27, %s34
    %p411 = scmp.eq.s32.totalorder %s410, 0
    %s413 = sadd.s32 %s412, 1
    %s414 = scalar_select %p411, %s412, %s413
    %p417 = pneg %p411
    %p418 = scmp.eq.s32.totalorder %s27, 1
    %p419 = por %p417, %p418
    %p420 = scmp.ne.s32.totalorder %s412, %s415
    %p421 = scmp.eq.s32.totalorder %s27, 0
    %p422 = por %p420, %p421
    %p423 = scmp.ne.s32.totalorder %s412, %s415
    %p424 = scmp.eq.s32.totalorder %s32, 1
    %p425 = por %p423, %p424
    %p426 = scmp.ne.s32.totalorder %s415, %s416
    %p427 = scmp.eq.s32.totalorder %s32, 0
    %p428 = por %p426, %p427
    %p429 = scmp.ne.s32.totalorder %s415, %s416
    %p430 = scmp.eq.s32.totalorder %s33, 1
    %p431 = por %p429, %p430
    %p433 = scmp.ne.s32.totalorder %s416, %s432
    %p434 = scmp.eq.s32.totalorder %s33, 0
    %p435 = por %p433, %p434
    %s436 = ssub.s32 %s27, %s34
    %p437 = scmp.eq.s32.totalorder %s436, 0
    %s439 = sadd.s32 %s438, 1
    %s440 = scalar_select %p437, %s438, %s439
    %p443 = pneg %p437
    %p444 = scmp.eq.s32.totalorder %s27, 1
    %p445 = por %p443, %p444
    %p446 = scmp.ne.s32.totalorder %s438, %s441
    %p447 = scmp.eq.s32.totalorder %s27, 0
    %p448 = por %p446, %p447
    %p449 = scmp.ne.s32.totalorder %s438, %s441
    %p450 = scmp.eq.s32.totalorder %s32, 1
    %p451 = por %p449, %p450
    %p452 = scmp.ne.s32.totalorder %s441, %s442
    %p453 = scmp.eq.s32.totalorder %s32, 0
    %p454 = por %p452, %p453
    %p455 = scmp.ne.s32.totalorder %s441, %s442
    %p456 = scmp.eq.s32.totalorder %s33, 1
    %p457 = por %p455, %p456
    %p459 = scmp.ne.s32.totalorder %s442, %s458
    %p460 = scmp.eq.s32.totalorder %s33, 0
    %p461 = por %p459, %p460
    %s463 = sadd.s32 %s462, 1
    %p466 = scmp.eq.s32.totalorder %s27, 1
    %p467 = scmp.ne.s32.totalorder %s462, %s464
    %p468 = scmp.eq.s32.totalorder %s27, 0
    %p469 = por %p467, %p468
    %p470 = scmp.ne.s32.totalorder %s462, %s464
    %p471 = scmp.eq.s32.totalorder %s32, 1
    %p472 = por %p470, %p471
    %p473 = scmp.ne.s32.totalorder %s464, %s465
    %p474 = scmp.eq.s32.totalorder %s32, 0
    %p475 = por %p473, %p474
    %p476 = scmp.ne.s32.totalorder %s464, %s465
    %p477 = scmp.eq.s32.totalorder %s33, 1
    %p478 = por %p476, %p477
    %p480 = scmp.ne.s32.totalorder %s465, %s479
    %p481 = scmp.eq.s32.totalorder %s33, 0
    %p482 = por %p480, %p481
    %s484 = sadd.s32 %s483, 1
    %p487 = scmp.eq.s32.totalorder %s27, 1
    %p488 = scmp.ne.s32.totalorder %s483, %s485
    %p489 = scmp.eq.s32.totalorder %s27, 0
    %p490 = por %p488, %p489
    %p491 = scmp.ne.s32.totalorder %s483, %s485
    %p492 = scmp.eq.s32.totalorder %s32, 1
    %p493 = por %p491, %p492
    %p494 = scmp.ne.s32.totalorder %s485, %s486
    %p495 = scmp.eq.s32.totalorder %s32, 0
    %p496 = por %p494, %p495
    %p497 = scmp.ne.s32.totalorder %s485, %s486
    %p498 = scmp.eq.s32.totalorder %s33, 1
    %p499 = por %p497, %p498
    %p501 = scmp.ne.s32.totalorder %s486, %s500
    %p502 = scmp.eq.s32.totalorder %s33, 0
    %p503 = por %p501, %p502
    %s505 = sadd.s32 %s504, 1
    %p508 = scmp.eq.s32.totalorder %s27, 1
    %p509 = scmp.ne.s32.totalorder %s504, %s506
    %p510 = scmp.eq.s32.totalorder %s27, 0
    %p511 = por %p509, %p510
    %p512 = scmp.ne.s32.totalorder %s504, %s506
    %p513 = scmp.eq.s32.totalorder %s32, 1
    %p514 = por %p512, %p513
    %p515 = scmp.ne.s32.totalorder %s506, %s507
    %p516 = scmp.eq.s32.totalorder %s32, 0
    %p517 = por %p515, %p516
    %p518 = scmp.ne.s32.totalorder %s506, %s507
    %p519 = scmp.eq.s32.totalorder %s33, 1
    %p520 = por %p518, %p519
    %p522 = scmp.ne.s32.totalorder %s507, %s521
    %p523 = scmp.eq.s32.totalorder %s33, 0
    %p524 = por %p522, %p523
    %s526 = sadd.s32 %s525, 1
    %p529 = scmp.eq.s32.totalorder %s27, 1
    %p530 = scmp.ne.s32.totalorder %s525, %s527
    %p531 = scmp.eq.s32.totalorder %s27, 0
    %p532 = por %p530, %p531
    %p533 = scmp.ne.s32.totalorder %s525, %s527
    %p534 = scmp.eq.s32.totalorder %s32, 1
    %p535 = por %p533, %p534
    %p536 = scmp.ne.s32.totalorder %s527, %s528
    %p537 = scmp.eq.s32.totalorder %s32, 0
    %p538 = por %p536, %p537
    %p539 = scmp.ne.s32.totalorder %s527, %s528
    %p540 = scmp.eq.s32.totalorder %s33, 1
    %p541 = por %p539, %p540
    %p543 = scmp.ne.s32.totalorder %s528, %s542
    %p544 = scmp.eq.s32.totalorder %s33, 0
    %p545 = por %p543, %p544
    %s547 = sadd.s32 %s546, 1
    %p550 = scmp.eq.s32.totalorder %s27, 1
    %p551 = scmp.ne.s32.totalorder %s546, %s548
    %p552 = scmp.eq.s32.totalorder %s27, 0
    %p553 = por %p551, %p552
    %p554 = scmp.ne.s32.totalorder %s546, %s548
    %p555 = scmp.eq.s32.totalorder %s32, 1
    %p556 = por %p554, %p555
    %p557 = scmp.ne.s32.totalorder %s548, %s549
    %p558 = scmp.eq.s32.totalorder %s32, 0
    %p559 = por %p557, %p558
    %p560 = scmp.ne.s32.totalorder %s548, %s549
    %p561 = scmp.eq.s32.totalorder %s33, 1
    %p562 = por %p560, %p561
    %p564 = scmp.ne.s32.totalorder %s549, %s563
    %p565 = scmp.eq.s32.totalorder %s33, 0
    %p566 = por %p564, %p565
    %p567 = scmp.le.s32.totalorder 1, %s27
    %p568 = scmp.lt.s32.totalorder %s27, 3
    %p569 = pnand %p567, %p568
    %p570 = pneg %p569
    // Predicated region
    $region9: #{custom_dinov2_forward.1} parent=5 // pred_check
      _
    $region10: #{custom_dinov2_forward.1} parent=5 // pred_check_branch
      %572 = sbr.rel (%p569) target = $region12
    $region11: #{custom_dinov2_forward.1} parent=5 // pred_region
      %s573 = ssub.s32 %s27, 1
      // Predicated region
      $region13: #{custom_dinov2_forward.1} parent=11 // pred_check
        %p574 = pneg %p48
      $region14: #{custom_dinov2_forward.1} parent=11 // pred_check_branch
        %576 = sbr.rel (%p574) target = $region16
      $region15: #{custom_dinov2_forward.1} parent=11 // pred_region
        _
      $region16: #{custom_dinov2_forward.1} parent=11 // pred_fallthru
        _
      // Predicated region
      $region17: #{custom_dinov2_forward.1} parent=11 // pred_check
        %p577 = pneg %p69
      $region18: #{custom_dinov2_forward.1} parent=11 // pred_check_branch
        %579 = sbr.rel (%p577) target = $region20
      $region19: #{custom_dinov2_forward.1} parent=11 // pred_region
        _
      $region20: #{custom_dinov2_forward.1} parent=11 // pred_fallthru
        _
      // Predicated region
      $region21: #{custom_dinov2_forward.1} parent=11 // pred_check
        %p580 = pneg %p90
      $region22: #{custom_dinov2_forward.1} parent=11 // pred_check_branch
        %582 = sbr.rel (%p580) target = $region24
      $region23: #{custom_dinov2_forward.1} parent=11 // pred_region
        _
      $region24: #{custom_dinov2_forward.1} parent=11 // pred_fallthru
        _
      // Predicated region
      $region25: #{custom_dinov2_forward.1} parent=11 // pred_check
        %p583 = pneg %p475
      $region26: #{custom_dinov2_forward.1} parent=11 // pred_check_branch
        %585 = sbr.rel (%p583) target = $region28
      $region27: #{custom_dinov2_forward.1} parent=11 // pred_region
        _
      $region28: #{custom_dinov2_forward.1} parent=11 // pred_fallthru
        _
      // Predicated region
      $region29: #{custom_dinov2_forward.1} parent=11 // pred_check
        %p586 = pneg %p496
      $region30: #{custom_dinov2_forward.1} parent=11 // pred_check_branch
        %588 = sbr.rel (%p586) target = $region32
      $region31: #{custom_dinov2_forward.1} parent=11 // pred_region
        _
      $region32: #{custom_dinov2_forward.1} parent=11 // pred_fallthru
        _
      // Predicated region
      $region33: #{custom_dinov2_forward.1} parent=11 // pred_check
        %p589 = pneg %p517
      $region34: #{custom_dinov2_forward.1} parent=11 // pred_check_branch
        %591 = sbr.rel (%p589) target = $region36
      $region35: #{custom_dinov2_forward.1} parent=11 // pred_region
        _
      $region36: #{custom_dinov2_forward.1} parent=11 // pred_fallthru
        _
      // Predicated region
      $region37: #{custom_dinov2_forward.1} parent=11 // pred_check
        %p592 = pneg %p538
      $region38: #{custom_dinov2_forward.1} parent=11 // pred_check_branch
        %594 = sbr.rel (%p592) target = $region40
      $region39: #{custom_dinov2_forward.1} parent=11 // pred_region
        _
      $region40: #{custom_dinov2_forward.1} parent=11 // pred_fallthru
        _
    $region12: #{custom_dinov2_forward.1} parent=5 // pred_fallthru
      _
    %p595 = scmp.lt.s32.totalorder %s27, 2
    // Predicated region
    $region41: #{custom_dinov2_forward.1} parent=5 // pred_check
      %p596 = pneg %p595
    $region42: #{custom_dinov2_forward.1} parent=5 // pred_check_branch
      %598 = sbr.rel (%p596) target = $region44
    $region43: #{custom_dinov2_forward.1} parent=5 // pred_region
      // Predicated region
      $region45: #{custom_dinov2_forward.1} parent=43 // pred_check
        %p599 = pneg %p110
      $region46: #{custom_dinov2_forward.1} parent=43 // pred_check_branch
        %601 = sbr.rel (%p599) target = $region48
      $region47: #{custom_dinov2_forward.1} parent=43 // pred_region
        %p602 = scmp.lt.s32.totalorder %s27, 1
        %s603 = scalar_select %p602, %s27, 1
        %s604 = scalar_lea.vmem %s3, %s603
      $region48: #{custom_dinov2_forward.1} parent=43 // pred_fallthru
        _
      // Predicated region
      $region49: #{custom_dinov2_forward.1} parent=43 // pred_check
        %p605 = pneg %p136
      $region50: #{custom_dinov2_forward.1} parent=43 // pred_check_branch
        %607 = sbr.rel (%p605) target = $region52
      $region51: #{custom_dinov2_forward.1} parent=43 // pred_region
        %p608 = scmp.lt.s32.totalorder %s27, 1
        %s609 = scalar_select %p608, %s27, 1
        %s610 = scalar_lea.vmem %s4, %s609
      $region52: #{custom_dinov2_forward.1} parent=43 // pred_fallthru
        _
      // Predicated region
      $region53: #{custom_dinov2_forward.1} parent=43 // pred_check
        %p611 = pneg %p162
      $region54: #{custom_dinov2_forward.1} parent=43 // pred_check_branch
        %613 = sbr.rel (%p611) target = $region56
      $region55: #{custom_dinov2_forward.1} parent=43 // pred_region
        %p614 = scmp.lt.s32.totalorder %s27, 1
        %s615 = scalar_select %p614, %s27, 1
        %s616 = smul.addr %s615, 4
        %s617 = smul.addr %s616, 8
        %s618 = scalar_lea.vmem %s5, %s617
      $region56: #{custom_dinov2_forward.1} parent=43 // pred_fallthru
        _
      // Predicated region
      $region57: #{custom_dinov2_forward.1} parent=43 // pred_check
        %p619 = pneg %p188
      $region58: #{custom_dinov2_forward.1} parent=43 // pred_check_branch
        %621 = sbr.rel (%p619) target = $region60
      $region59: #{custom_dinov2_forward.1} parent=43 // pred_region
        %p622 = scmp.lt.s32.totalorder %s27, 1
        %s623 = scalar_select %p622, %s27, 1
        %s624 = scalar_lea.vmem %s6, %s623
      $region60: #{custom_dinov2_forward.1} parent=43 // pred_fallthru
        _
      // Predicated region
      $region61: #{custom_dinov2_forward.1} parent=43 // pred_check
        %p625 = pneg %p214
      $region62: #{custom_dinov2_forward.1} parent=43 // pred_check_branch
        %627 = sbr.rel (%p625) target = $region64
      $region63: #{custom_dinov2_forward.1} parent=43 // pred_region
        %p628 = scmp.lt.s32.totalorder %s27, 1
        %s629 = scalar_select %p628, %s27, 1
        %s630 = smul.addr %s629, 4
        %s631 = smul.addr %s630, 8
        %s632 = scalar_lea.vmem %s7, %s631
      $region64: #{custom_dinov2_forward.1} parent=43 // pred_fallthru
        _
      // Predicated region
      $region65: #{custom_dinov2_forward.1} parent=43 // pred_check
        %p633 = pneg %p240
      $region66: #{custom_dinov2_forward.1} parent=43 // pred_check_branch
        %635 = sbr.rel (%p633) target = $region68
      $region67: #{custom_dinov2_forward.1} parent=43 // pred_region
        %p636 = scmp.lt.s32.totalorder %s27, 1
        %s637 = scalar_select %p636, %s27, 1
        %s638 = scalar_lea.vmem %s8, %s637
      $region68: #{custom_dinov2_forward.1} parent=43 // pred_fallthru
        _
      // Predicated region
      $region69: #{custom_dinov2_forward.1} parent=43 // pred_check
        %p639 = pneg %p266
      $region70: #{custom_dinov2_forward.1} parent=43 // pred_check_branch
        %641 = sbr.rel (%p639) target = $region72
      $region71: #{custom_dinov2_forward.1} parent=43 // pred_region
        %p642 = scmp.lt.s32.totalorder %s27, 1
        %s643 = scalar_select %p642, %s27, 1
        %s644 = scalar_lea.vmem %s9, %s643
      $region72: #{custom_dinov2_forward.1} parent=43 // pred_fallthru
        _
      // Predicated region
      $region73: #{custom_dinov2_forward.1} parent=43 // pred_check
        %p645 = pneg %p292
      $region74: #{custom_dinov2_forward.1} parent=43 // pred_check_branch
        %647 = sbr.rel (%p645) target = $region76
      $region75: #{custom_dinov2_forward.1} parent=43 // pred_region
        %p648 = scmp.lt.s32.totalorder %s27, 1
        %s649 = scalar_select %p648, %s27, 1
        %s650 = scalar_lea.vmem %s10, %s649
      $region76: #{custom_dinov2_forward.1} parent=43 // pred_fallthru
        _
      // Predicated region
      $region77: #{custom_dinov2_forward.1} parent=43 // pred_check
        %p651 = pneg %p318
      $region78: #{custom_dinov2_forward.1} parent=43 // pred_check_branch
        %653 = sbr.rel (%p651) target = $region80
      $region79: #{custom_dinov2_forward.1} parent=43 // pred_region
        %p654 = scmp.lt.s32.totalorder %s27, 1
        %s655 = scalar_select %p654, %s27, 1
        %s656 = scalar_lea.vmem %s11, %s655
      $region80: #{custom_dinov2_forward.1} parent=43 // pred_fallthru
        _
      // Predicated region
      $region81: #{custom_dinov2_forward.1} parent=43 // pred_check
        %p657 = pneg %p344
      $region82: #{custom_dinov2_forward.1} parent=43 // pred_check_branch
        %659 = sbr.rel (%p657) target = $region84
      $region83: #{custom_dinov2_forward.1} parent=43 // pred_region
        %p660 = scmp.lt.s32.totalorder %s27, 1
        %s661 = scalar_select %p660, %s27, 1
        %s662 = smul.addr %s661, 4
        %s663 = smul.addr %s662, 8
        %s664 = scalar_lea.vmem %s12, %s663
      $region84: #{custom_dinov2_forward.1} parent=43 // pred_fallthru
        _
      // Predicated region
      $region85: #{custom_dinov2_forward.1} parent=43 // pred_check
        %p665 = pneg %p370
      $region86: #{custom_dinov2_forward.1} parent=43 // pred_check_branch
        %667 = sbr.rel (%p665) target = $region88
      $region87: #{custom_dinov2_forward.1} parent=43 // pred_region
        %p668 = scmp.lt.s32.totalorder %s27, 1
        %s669 = scalar_select %p668, %s27, 1
        %s670 = scalar_lea.vmem %s13, %s669
      $region88: #{custom_dinov2_forward.1} parent=43 // pred_fallthru
        _
      // Predicated region
      $region89: #{custom_dinov2_forward.1} parent=43 // pred_check
        %p671 = pneg %p396
      $region90: #{custom_dinov2_forward.1} parent=43 // pred_check_branch
        %673 = sbr.rel (%p671) target = $region92
      $region91: #{custom_dinov2_forward.1} parent=43 // pred_region
        %p674 = scmp.lt.s32.totalorder %s27, 1
        %s675 = scalar_select %p674, %s27, 1
        %s676 = smul.addr %s675, 16
        %s677 = smul.addr %s676, 8
        %s678 = scalar_lea.vmem %s14, %s677
      $region92: #{custom_dinov2_forward.1} parent=43 // pred_fallthru
        _
      // Predicated region
      $region93: #{custom_dinov2_forward.1} parent=43 // pred_check
        %p679 = pneg %p422
      $region94: #{custom_dinov2_forward.1} parent=43 // pred_check_branch
        %681 = sbr.rel (%p679) target = $region96
      $region95: #{custom_dinov2_forward.1} parent=43 // pred_region
        %p682 = scmp.lt.s32.totalorder %s27, 1
        %s683 = scalar_select %p682, %s27, 1
        %s684 = scalar_lea.vmem %s15, %s683
      $region96: #{custom_dinov2_forward.1} parent=43 // pred_fallthru
        _
      // Predicated region
      $region97: #{custom_dinov2_forward.1} parent=43 // pred_check
        %p685 = pneg %p448
      $region98: #{custom_dinov2_forward.1} parent=43 // pred_check_branch
        %687 = sbr.rel (%p685) target = $region100
      $region99: #{custom_dinov2_forward.1} parent=43 // pred_region
        %p688 = scmp.lt.s32.totalorder %s27, 1
        %s689 = scalar_select %p688, %s27, 1
        %s690 = scalar_lea.vmem %s16, %s689
      $region100: #{custom_dinov2_forward.1} parent=43 // pred_fallthru
        _
    $region44: #{custom_dinov2_forward.1} parent=5 // pred_fallthru
      _
    %p691 = scmp.le.s32.totalorder 1, %s27
    %p692 = scmp.lt.s32.totalorder %s27, 3
    %p693 = pnand %p691, %p692
    %p694 = pneg %p693
    // Predicated region
    $region101: #{custom_dinov2_forward.1} parent=5 // pred_check
      _
    $region102: #{custom_dinov2_forward.1} parent=5 // pred_check_branch
      %696 = sbr.rel (%p693) target = $region104
    $region103: #{custom_dinov2_forward.1} parent=5 // pred_region
      %s697 = ssub.s32 %s27, 1
      %p698 = pneg %p48
      %p699 = pneg %p45
      %p700 = pneg %p69
      %p701 = pneg %p66
      %p702 = pneg %p90
      %p703 = pneg %p87
      %p704 = scmp.lt.s32.totalorder %s32, 1
      %s705 = scalar_select %p704, %s32, 1
      %s706 = scalar_lea.vmem %s3, %s705
      %p707 = pneg %p116
      %p708 = pneg %p113
      %p709 = scmp.lt.s32.totalorder %s32, 1
      %s710 = scalar_select %p709, %s32, 1
      %s711 = scalar_lea.vmem %s4, %s710
      %p712 = pneg %p142
      %p713 = pneg %p139
      %p714 = scmp.lt.s32.totalorder %s32, 1
      %s715 = scalar_select %p714, %s32, 1
      %s716 = smul.addr %s715, 4
      %s717 = smul.addr %s716, 8
      %s718 = scalar_lea.vmem %s5, %s717
      %p719 = pneg %p168
      %p720 = pneg %p165
      %p721 = scmp.lt.s32.totalorder %s32, 1
      %s722 = scalar_select %p721, %s32, 1
      %s723 = scalar_lea.vmem %s6, %s722
      %p724 = pneg %p194
      %p725 = pneg %p191
      %p726 = scmp.lt.s32.totalorder %s32, 1
      %s727 = scalar_select %p726, %s32, 1
      %s728 = smul.addr %s727, 4
      %s729 = smul.addr %s728, 8
      %s730 = scalar_lea.vmem %s7, %s729
      %p731 = pneg %p220
      %p732 = pneg %p217
      %p733 = scmp.lt.s32.totalorder %s32, 1
      %s734 = scalar_select %p733, %s32, 1
      %s735 = scalar_lea.vmem %s8, %s734
      %p736 = pneg %p246
      %p737 = pneg %p243
      %p738 = scmp.lt.s32.totalorder %s32, 1
      %s739 = scalar_select %p738, %s32, 1
      %s740 = scalar_lea.vmem %s9, %s739
      %p741 = pneg %p272
      %p742 = pneg %p269
      %p743 = scmp.lt.s32.totalorder %s32, 1
      %s744 = scalar_select %p743, %s32, 1
      %s745 = scalar_lea.vmem %s10, %s744
      %p746 = pneg %p298
      %p747 = pneg %p295
      %p748 = scmp.lt.s32.totalorder %s32, 1
      %s749 = scalar_select %p748, %s32, 1
      %s750 = scalar_lea.vmem %s11, %s749
      %p751 = pneg %p324
      %p752 = pneg %p321
      %p753 = scmp.lt.s32.totalorder %s32, 1
      %s754 = scalar_select %p753, %s32, 1
      %s755 = smul.addr %s754, 4
      %s756 = smul.addr %s755, 8
      %s757 = scalar_lea.vmem %s12, %s756
      %p758 = pneg %p350
      %p759 = pneg %p347
      %p760 = scmp.lt.s32.totalorder %s32, 1
      %s761 = scalar_select %p760, %s32, 1
      %s762 = scalar_lea.vmem %s13, %s761
      %p763 = pneg %p376
      %p764 = pneg %p373
      %p765 = scmp.lt.s32.totalorder %s32, 1
      %s766 = scalar_select %p765, %s32, 1
      %s767 = smul.addr %s766, 16
      %s768 = smul.addr %s767, 8
      %s769 = scalar_lea.vmem %s14, %s768
      %p770 = pneg %p402
      %p771 = pneg %p399
      %p772 = scmp.lt.s32.totalorder %s32, 1
      %s773 = scalar_select %p772, %s32, 1
      %s774 = scalar_lea.vmem %s15, %s773
      %p775 = pneg %p428
      %p776 = pneg %p425
      %p777 = scmp.lt.s32.totalorder %s32, 1
      %s778 = scalar_select %p777, %s32, 1
      %s779 = scalar_lea.vmem %s16, %s778
      %p780 = pneg %p454
      %p781 = pneg %p451
      %p782 = pneg %p475
      %p783 = pneg %p472
      %p784 = pneg %p496
      %p785 = pneg %p493
      %p786 = pneg %p517
      %p787 = pneg %p514
      %p788 = pneg %p538
      %p789 = pneg %p535
      %p790 = pneg %p559
      %p791 = pneg %p556
      %p792 = scmp.lt.s32.totalorder %s32, 1
      %s793 = scalar_select %p792, %s32, 1
      %s794 = scalar_lea.vmem %s3, %s793
      %p795 = scmp.lt.s32.totalorder %s32, 1
      %s796 = scalar_select %p795, %s32, 1
      %s797 = scalar_lea.vmem %s4, %s796
      %p798 = scmp.lt.s32.totalorder %s32, 1
      %s799 = scalar_select %p798, %s32, 1
      %s800 = smul.addr %s799, 4
      %s801 = smul.addr %s800, 8
      %s802 = scalar_lea.vmem %s5, %s801
      %p803 = scmp.lt.s32.totalorder %s32, 1
      %s804 = scalar_select %p803, %s32, 1
      %s805 = scalar_lea.vmem %s6, %s804
      %p806 = scmp.lt.s32.totalorder %s32, 1
      %s807 = scalar_select %p806, %s32, 1
      %s808 = smul.addr %s807, 4
      %s809 = smul.addr %s808, 8
      %s810 = scalar_lea.vmem %s7, %s809
      %p811 = scmp.lt.s32.totalorder %s32, 1
      %s812 = scalar_select %p811, %s32, 1
      %s813 = scalar_lea.vmem %s8, %s812
      %p814 = scmp.lt.s32.totalorder %s32, 1
      %s815 = scalar_select %p814, %s32, 1
      %s816 = scalar_lea.vmem %s9, %s815
      %p817 = scmp.lt.s32.totalorder %s32, 1
      %s818 = scalar_select %p817, %s32, 1
      %s819 = scalar_lea.vmem %s10, %s818
      %p820 = scmp.lt.s32.totalorder %s32, 1
      %s821 = scalar_select %p820, %s32, 1
      %s822 = scalar_lea.vmem %s11, %s821
      %p823 = scmp.lt.s32.totalorder %s32, 1
      %s824 = scalar_select %p823, %s32, 1
      %s825 = smul.addr %s824, 4
      %s826 = smul.addr %s825, 8
      %s827 = scalar_lea.vmem %s12, %s826
      %p828 = scmp.lt.s32.totalorder %s32, 1
      %s829 = scalar_select %p828, %s32, 1
      %s830 = scalar_lea.vmem %s13, %s829
      %p831 = scmp.lt.s32.totalorder %s32, 1
      %s832 = scalar_select %p831, %s32, 1
      %s833 = smul.addr %s832, 16
      %s834 = smul.addr %s833, 8
      %s835 = scalar_lea.vmem %s14, %s834
      %p836 = scmp.lt.s32.totalorder %s32, 1
      %s837 = scalar_select %p836, %s32, 1
      %s838 = scalar_lea.vmem %s15, %s837
      %p839 = scmp.lt.s32.totalorder %s32, 1
      %s840 = scalar_select %p839, %s32, 1
      %s841 = scalar_lea.vmem %s16, %s840
      %p842 = scmp.eq.s32.totalorder %s32, 0
      // Predicated region
      $region105: #{custom_dinov2_forward.1} parent=103 // pred_check
        %p843 = pneg %p842
      $region106: #{custom_dinov2_forward.1} parent=103 // pred_check_branch
        %845 = sbr.rel (%p843) target = $region108
      $region107: #{custom_dinov2_forward.1} parent=103 // pred_region
        %v846 = vld [vmem:[%s0] sm:$0xff]
        %v847 = vld [vmem:[%s0 + $0x8] sm:$0xff]
        %v848 = vld [vmem:[%s0 + $0x10] sm:$0xff]
        %v849 = vld [vmem:[%s0 + $0x18] sm:$0xff]
        %v850 = vld [vmem:[%s0 + $0x20] sm:$0xff]
        %v851 = vld [vmem:[%s0 + $0x28] sm:$0xff]
        %v852 = vld [vmem:[%s0 + $0x30] sm:$0xff]
        %v853 = vld [vmem:[%s0 + $0x38] sm:$0xff]
        %v854 = vld [vmem:[%s0 + $0x40] sm:$0xff]
        %v855 = vld [vmem:[%s0 + $0x48] sm:$0xff]
        %v856 = vld [vmem:[%s1] sm:$0xff]
        %v857 = vld [vmem:[%s1 + $0x8] sm:$0xff]
        %v858 = vld [vmem:[%s1 + $0x10] sm:$0xff]
        %v859 = vld [vmem:[%s1 + $0x18] sm:$0xff]
        %v860 = vld [vmem:[%s1 + $0x20] sm:$0xff]
        %v861 = vld [vmem:[%s1 + $0x28] sm:$0xff]
        %v862 = vld [vmem:[%s1 + $0x30] sm:$0xff]
        %v863 = vld [vmem:[%s1 + $0x38] sm:$0xff]
        %v864 = vld [vmem:[%s1 + $0x40] sm:$0xff]
        %v865 = vld [vmem:[%s1 + $0x48] sm:$0xff]
        %v866 = vld [vmem:[%s1 + $0x50] sm:$0xff]
        %v867 = vld [vmem:[%s1 + $0x58] sm:$0xff]
        %v868 = vld [vmem:[%s1 + $0x60] sm:$0xff]
        %v869 = vld [vmem:[%s1 + $0x68] sm:$0xff]
        %v870 = vld [vmem:[%s1 + $0x70] sm:$0xff]
        %v871 = vld [vmem:[%s1 + $0x78] sm:$0xff]
        %v872 = vld [vmem:[%s1 + $0x80] sm:$0xff]
        %v873 = vld [vmem:[%s1 + $0x88] sm:$0xff]
        %v874 = vld [vmem:[%s1 + $0x90] sm:$0xff]
        %v875 = vld [vmem:[%s1 + $0x98] sm:$0xff]
        %v876 = vld [vmem:[%s1 + $0xa0] sm:$0xff]
        %v877 = vld [vmem:[%s1 + $0xa8] sm:$0xff]
        %v878 = vld [vmem:[%s1 + $0xb0] sm:$0xff]
        %v879 = vld [vmem:[%s1 + $0xb8] sm:$0xff]
        %v880 = vld [vmem:[%s1 + $0xc0] sm:$0xff]
        %v881 = vld [vmem:[%s1 + $0xc8] sm:$0xff]
        %v882 = vld [vmem:[%s1 + $0xd0] sm:$0xff]
        %v883 = vld [vmem:[%s1 + $0xd8] sm:$0xff]
        %v884 = vld [vmem:[%s1 + $0xe0] sm:$0xff]
        %v885 = vld [vmem:[%s1 + $0xe8] sm:$0xff]
        %v886 = vld [vmem:[%s1 + $0xf0] sm:$0xff]
        %v887 = vld [vmem:[%s1 + $0xf8] sm:$0xff]
        %v888 = vld [vmem:[%s1 + $0x100] sm:$0xff]
        %v889 = vld [vmem:[%s1 + $0x108] sm:$0xff]
        %v890 = vld [vmem:[%s1 + $0x110] sm:$0xff]
        %v891 = vld [vmem:[%s1 + $0x118] sm:$0xff]
        %v892 = vld [vmem:[%s1 + $0x120] sm:$0xff]
        %v893 = vld [vmem:[%s1 + $0x128] sm:$0xff]
        %v894 = vld [vmem:[%s1 + $0x130] sm:$0xff]
        %v895 = vld [vmem:[%s1 + $0x138] sm:$0xff]
        %v896 = vld [vmem:[%s1 + $0x140] sm:$0xff]
        %v897 = vld [vmem:[%s1 + $0x148] sm:$0xff]
        %v898 = vld [vmem:[%s1 + $0x150] sm:$0xff]
        %v899 = vld [vmem:[%s1 + $0x158] sm:$0xff]
        %v900 = vld [vmem:[%s1 + $0x160] sm:$0xff]
        %v901 = vld [vmem:[%s1 + $0x168] sm:$0xff]
        %v902 = vld [vmem:[%s1 + $0x170] sm:$0xff]
        %v903 = vld [vmem:[%s1 + $0x178] sm:$0xff]
        %v904 = vld [vmem:[%s1 + $0x180] sm:$0xff]
        %v905 = vld [vmem:[%s1 + $0x188] sm:$0xff]
        %v906 = vld [vmem:[%s1 + $0x190] sm:$0xff]
        %v907 = vld [vmem:[%s1 + $0x198] sm:$0xff]
        %v908 = vld [vmem:[%s1 + $0x1a0] sm:$0xff]
        %v909 = vld [vmem:[%s1 + $0x1a8] sm:$0xff]
        %v910 = vld [vmem:[%s1 + $0x1b0] sm:$0xff]
        %v911 = vld [vmem:[%s1 + $0x1b8] sm:$0xff]
        %v912 = vld [vmem:[%s1 + $0x1c0] sm:$0xff]
        %v913 = vld [vmem:[%s1 + $0x1c8] sm:$0xff]
        %v914 = vld [vmem:[%s1 + $0x1d0] sm:$0xff]
        %v915 = vld [vmem:[%s1 + $0x1d8] sm:$0xff]
        %v916 = vld [vmem:[%s1 + $0x1e0] sm:$0xff]
        %v917 = vld [vmem:[%s1 + $0x1e8] sm:$0xff]
        %v918 = vld [vmem:[%s1 + $0x1f0] sm:$0xff]
        %v919 = vld [vmem:[%s1 + $0x1f8] sm:$0xff]
        %v920 = vld [vmem:[%s1 + $0x200] sm:$0xff]
        %v921 = vld [vmem:[%s1 + $0x208] sm:$0xff]
        %v922 = vld [vmem:[%s1 + $0x210] sm:$0xff]
        %v923 = vld [vmem:[%s1 + $0x218] sm:$0xff]
        %v924 = vld [vmem:[%s1 + $0x220] sm:$0xff]
        %v925 = vld [vmem:[%s1 + $0x228] sm:$0xff]
        %v926 = vld [vmem:[%s1 + $0x230] sm:$0xff]
        %v927 = vld [vmem:[%s1 + $0x238] sm:$0xff]
        %v928 = vld [vmem:[%s1 + $0x240] sm:$0xff]
        %v929 = vld [vmem:[%s1 + $0x248] sm:$0xff]
        %v930 = vld [vmem:[%s1 + $0x250] sm:$0xff]
        %v931 = vld [vmem:[%s1 + $0x258] sm:$0xff]
        %v932 = vld [vmem:[%s1 + $0x260] sm:$0xff]
        %v933 = vld [vmem:[%s1 + $0x268] sm:$0xff]
        %v934 = vld [vmem:[%s1 + $0x270] sm:$0xff]
        %v935 = vld [vmem:[%s1 + $0x278] sm:$0xff]
        %v936 = vld [vmem:[%s2] sm:$0xff]
        %v937 = vld [vmem:[%s2 + $0x8] sm:$0xff]
        %938 = vmatprep.subr.mxu0 0.0
        %939 = vmatpush1.msra.mxu0 %v856
        %940 = vmatprep.subr.mxu0 0.0
        %941 = vmatpush1.msra.mxu0 %v857
        %942 = vmatprep.subr.mxu0 0.0
        %943 = vmatpush1.msra.mxu0 %v858
        %944 = vmatprep.subr.mxu0 0.0
        %945 = vmatpush1.msra.mxu0 %v859
        %946 = vmatprep.subr.mxu0 0.0
        %947 = vmatpush1.msra.mxu0 %v860
        %948 = vmatprep.subr.mxu0 0.0
        %949 = vmatpush1.msra.mxu0 %v861
        %950 = vmatprep.subr.mxu0 0.0
        %951 = vmatpush1.msra.mxu0 %v862
        %952 = vmatprep.subr.mxu0 0.0
        %953 = vmatpush1.msra.mxu0 %v863
        %954 = vmatprep.subr.mxu0 0.0
        %955 = vmatpush1.msra.mxu0 %v864
        %956 = vmatprep.subr.mxu0 0.0
        %957 = vmatpush1.msra.mxu0 %v865
        %958 = vmatprep.subr.mxu0 0.0
        %959 = vmatpush1.msra.mxu0 %v866
        %960 = vmatprep.subr.mxu0 0.0
        %961 = vmatpush1.msra.mxu0 %v867
        %962 = vmatprep.subr.mxu0 0.0
        %963 = vmatpush1.msra.mxu0 %v868
        %964 = vmatprep.subr.mxu0 0.0
        %965 = vmatpush1.msra.mxu0 %v869
        %966 = vmatprep.subr.mxu0 0.0
        %967 = vmatpush1.msra.mxu0 %v870
        %968 = vmatprep.subr.mxu0 0.0
        %969 = vmatpush1.msra.mxu0 %v871
        %970 = vmatprep.subr.mxu0 0.0
        %971 = vmatpush1.msra.mxu0 %v872
        %972 = vmatprep.subr.mxu0 0.0
        %973 = vmatpush1.msra.mxu0 %v873
        %974 = vmatprep.subr.mxu0 0.0
        %975 = vmatpush1.msra.mxu0 %v874
        %976 = vmatprep.subr.mxu0 0.0
        %977 = vmatpush1.msra.mxu0 %v875
        %978 = vmatprep.subr.mxu0 0.0
        %979 = vmatpush1.msra.mxu0 %v876
        %980 = vmatprep.subr.mxu0 0.0
        %981 = vmatpush1.msra.mxu0 %v877
        %982 = vmatprep.subr.mxu0 0.0
        %983 = vmatpush1.msra.mxu0 %v878
        %984 = vmatprep.subr.mxu0 0.0
        %985 = vmatpush1.msra.mxu0 %v879
        %986 = vmatprep.subr.mxu0 0.0
        %987 = vmatpush1.msra.mxu0 %v880
        %988 = vmatprep.subr.mxu0 0.0
        %989 = vmatpush1.msra.mxu0 %v881
        %990 = vmatprep.subr.mxu0 0.0
        %991 = vmatpush1.msra.mxu0 %v882
        %992 = vmatprep.subr.mxu0 0.0
        %993 = vmatpush1.msra.mxu0 %v883
        %994 = vmatprep.subr.mxu0 0.0
        %995 = vmatpush1.msra.mxu0 %v884
        %996 = vmatprep.subr.mxu0 0.0
        %997 = vmatpush1.msra.mxu0 %v885
        %998 = vmatprep.subr.mxu0 0.0
        %999 = vmatpush1.msra.mxu0 %v886
        %1000 = vmatprep.subr.mxu0 0.0
        %1001 = vmatpush1.msra.mxu0 %v887
        %1002 = vmatprep.mubr.f32.mxu0 %v847
        %1003 = vmatmul.mubr.f32.gmra.mrb[0].mxu0 %v846
        %v1004 = vpop.f32.mrb[0].mxu0
        %v1005 = vadd.f32 %v936, %v1004
        %v1006 = vpop.f32.mrb[0].mxu0
        %1007 = vmatprep.mubr.f32.mxu0 %v852
        %1008 = vmatmul.mubr.f32.gmra.mrb[0].mxu0 %v851
        %v1009 = vpop.f32.mrb[0].mxu0
        %v1010 = vadd.f32 %v937, %v1009
        %v1011 = vpop.f32.mrb[0].mxu0
        %1012 = vdwg.mxu0
        %1013 = vmatprep.subr.mxu0 0.0
        %1014 = vmatpush1.msra.mxu0 %v888
        %1015 = vmatprep.subr.mxu0 0.0
        %1016 = vmatpush1.msra.mxu0 %v889
        %1017 = vmatprep.subr.mxu0 0.0
        %1018 = vmatpush1.msra.mxu0 %v890
        %1019 = vmatprep.subr.mxu0 0.0
        %1020 = vmatpush1.msra.mxu0 %v891
        %1021 = vmatprep.subr.mxu0 0.0
        %1022 = vmatpush1.msra.mxu0 %v892
        %1023 = vmatprep.subr.mxu0 0.0
        %1024 = vmatpush1.msra.mxu0 %v893
        %1025 = vmatprep.subr.mxu0 0.0
        %1026 = vmatpush1.msra.mxu0 %v894
        %1027 = vmatprep.subr.mxu0 0.0
        %1028 = vmatpush1.msra.mxu0 %v895
        %1029 = vmatprep.subr.mxu0 0.0
        %1030 = vmatpush1.msra.mxu0 %v896
        %1031 = vmatprep.subr.mxu0 0.0
        %1032 = vmatpush1.msra.mxu0 %v897
        %1033 = vmatprep.subr.mxu0 0.0
        %1034 = vmatpush1.msra.mxu0 %v898
        %1035 = vmatprep.subr.mxu0 0.0
        %1036 = vmatpush1.msra.mxu0 %v899
        %1037 = vmatprep.subr.mxu0 0.0
        %1038 = vmatpush1.msra.mxu0 %v900
        %1039 = vmatprep.subr.mxu0 0.0
        %1040 = vmatpush1.msra.mxu0 %v901
        %1041 = vmatprep.subr.mxu0 0.0
        %1042 = vmatpush1.msra.mxu0 %v902
        %1043 = vmatprep.subr.mxu0 0.0
        %1044 = vmatpush1.msra.mxu0 %v903
        %1045 = vmatprep.subr.mxu0 0.0
        %1046 = vmatpush1.msra.mxu0 %v904
        %1047 = vmatprep.subr.mxu0 0.0
        %1048 = vmatpush1.msra.mxu0 %v905
        %1049 = vmatprep.subr.mxu0 0.0
        %1050 = vmatpush1.msra.mxu0 %v906
        %1051 = vmatprep.subr.mxu0 0.0
        %1052 = vmatpush1.msra.mxu0 %v907
        %1053 = vmatprep.subr.mxu0 0.0
        %1054 = vmatpush1.msra.mxu0 %v908
        %1055 = vmatprep.subr.mxu0 0.0
        %1056 = vmatpush1.msra.mxu0 %v909
        %1057 = vmatprep.subr.mxu0 0.0
        %1058 = vmatpush1.msra.mxu0 %v910
        %1059 = vmatprep.subr.mxu0 0.0
        %1060 = vmatpush1.msra.mxu0 %v911
        %1061 = vmatprep.subr.mxu0 0.0
        %1062 = vmatpush1.msra.mxu0 %v912
        %1063 = vmatprep.subr.mxu0 0.0
        %1064 = vmatpush1.msra.mxu0 %v913
        %1065 = vmatprep.subr.mxu0 0.0
        %1066 = vmatpush1.msra.mxu0 %v914
        %1067 = vmatprep.subr.mxu0 0.0
        %1068 = vmatpush1.msra.mxu0 %v915
        %1069 = vmatprep.subr.mxu0 0.0
        %1070 = vmatpush1.msra.mxu0 %v916
        %1071 = vmatprep.subr.mxu0 0.0
        %1072 = vmatpush1.msra.mxu0 %v917
        %1073 = vmatprep.subr.mxu0 0.0
        %1074 = vmatpush1.msra.mxu0 %v918
        %1075 = vmatprep.subr.mxu0 0.0
        %1076 = vmatpush1.msra.mxu0 %v919
        %1077 = vmatprep.mubr.f32.mxu0 %v849
        %1078 = vmatmul.mubr.f32.gmra.mrb[0].mxu0 %v848
        %v1079 = vpop.f32.mrb[0].mxu0
        %v1080 = vadd.f32 %v1005, %v1079
        %v1081 = vpop.f32.mrb[0].mxu0
        %1082 = vmatprep.mubr.f32.mxu0 %v854
        %1083 = vmatmul.mubr.f32.gmra.mrb[0].mxu0 %v853
        %v1084 = vpop.f32.mrb[0].mxu0
        %v1085 = vadd.f32 %v1010, %v1084
        %v1086 = vpop.f32.mrb[0].mxu0
        %1087 = vdwg.mxu0
        %1088 = vmatprep.subr.mxu0 0.0
        %1089 = vmatpush1.msra.mxu0 %v920
        %1090 = vmatprep.subr.mxu0 0.0
        %1091 = vmatpush1.msra.mxu0 %v921
        %1092 = vmatprep.subr.mxu0 0.0
        %1093 = vmatpush1.msra.mxu0 %v922
        %1094 = vmatprep.subr.mxu0 0.0
        %1095 = vmatpush1.msra.mxu0 %v923
        %1096 = vmatprep.subr.mxu0 0.0
        %1097 = vmatpush1.msra.mxu0 %v924
        %1098 = vmatprep.subr.mxu0 0.0
        %1099 = vmatpush1.msra.mxu0 %v925
        %1100 = vmatprep.subr.mxu0 0.0
        %1101 = vmatpush1.msra.mxu0 %v926
        %1102 = vmatprep.subr.mxu0 0.0
        %1103 = vmatpush1.msra.mxu0 %v927
        %1104 = vmatprep.subr.mxu0 0.0
        %1105 = vmatpush1.msra.mxu0 %v928
        %1106 = vmatprep.subr.mxu0 0.0
        %1107 = vmatpush1.msra.mxu0 %v929
        %1108 = vmatprep.subr.mxu0 0.0
        %1109 = vmatpush1.msra.mxu0 %v930
        %1110 = vmatprep.subr.mxu0 0.0
        %1111 = vmatpush1.msra.mxu0 %v931
        %1112 = vmatprep.subr.mxu0 0.0
        %1113 = vmatpush1.msra.mxu0 %v932
        %1114 = vmatprep.subr.mxu0 0.0
        %1115 = vmatpush1.msra.mxu0 %v933
        %1116 = vmatprep.subr.mxu0 0.0
        %1117 = vmatpush1.msra.mxu0 %v934
        %1118 = vmatprep.subr.mxu0 0.0
        %1119 = vmatpush1.msra.mxu0 %v935
        %1120 = vmatprep.subr.mxu0 0.0
        %1121 = vmatpush1.msra.mxu0 0.0
        %1122 = vmatprep.subr.mxu0 0.0
        %1123 = vmatpush1.msra.mxu0 0.0
        %1124 = vmatprep.subr.mxu0 0.0
        %1125 = vmatpush1.msra.mxu0 0.0
        %1126 = vmatprep.subr.mxu0 0.0
        %1127 = vmatpush1.msra.mxu0 0.0
        %1128 = vmatprep.subr.mxu0 0.0
        %1129 = vmatpush1.msra.mxu0 0.0
        %1130 = vmatprep.subr.mxu0 0.0
        %1131 = vmatpush1.msra.mxu0 0.0
        %1132 = vmatprep.subr.mxu0 0.0
        %1133 = vmatpush1.msra.mxu0 0.0
        %1134 = vmatprep.subr.mxu0 0.0
        %1135 = vmatpush1.msra.mxu0 0.0
        %1136 = vmatprep.subr.mxu0 0.0
        %1137 = vmatpush1.msra.mxu0 0.0
        %1138 = vmatprep.subr.mxu0 0.0
        %1139 = vmatpush1.msra.mxu0 0.0
        %1140 = vmatprep.subr.mxu0 0.0
        %1141 = vmatpush1.msra.mxu0 0.0
        %1142 = vmatprep.subr.mxu0 0.0
        %1143 = vmatpush1.msra.mxu0 0.0
        %1144 = vmatprep.subr.mxu0 0.0
        %1145 = vmatpush1.msra.mxu0 0.0
        %1146 = vmatprep.subr.mxu0 0.0
        %1147 = vmatpush1.msra.mxu0 0.0
        %1148 = vmatprep.subr.mxu0 0.0
        %1149 = vmatpush1.msra.mxu0 0.0
        %1150 = vmatprep.subr.mxu0 0.0
        %1151 = vmatpush1.msra.mxu0 0.0
        %1152 = vmatprep.mubr.f32.mxu0 0.0
        %1153 = vmatmul.mubr.f32.gmra.mrb[0].mxu0 %v850
        %v1154 = vpop.f32.mrb[0].mxu0
        %v1155 = vadd.f32 %v1080, %v1154
        %v1156 = vpop.f32.mrb[0].mxu0
        %1157 = vmatprep.mubr.f32.mxu0 0.0
        %1158 = vmatmul.mubr.f32.gmra.mrb[0].mxu0 %v855
        %v1159 = vpop.f32.mrb[0].mxu0
        %v1160 = vadd.f32 %v1085, %v1159
        %v1161 = vpop.f32.mrb[0].mxu0
        %1162 = vdwg.mxu0
        %vm1163 = vcmask 261120
        %1164 = vst.msk [vmem:[#allocation2] sm:$0xff] %vm1163, %v1155
        %1165 = vst.msk [vmem:[#allocation2 + $0x8] sm:$0xff] %vm1163, %v1160
      $region108: #{custom_dinov2_forward.1} parent=103 // pred_fallthru
        _
      %v1166 = vld [vmem:[#allocation2] sm:$0xff]
      %v1167 = vld [vmem:[#allocation2 + $0x8] sm:$0xff]
      %v1168 = vld [vmem:[%s794] sm:$0x1]
      %v1169 = vld [vmem:[%s797] sm:$0x1]
      %vm1170 = vcmask 261120
      %v1171 = vsel %vm1170, %v1166, 0.0
      %1172 = vadd.xlane.f32.xlu0 %v1171
      %v1173 = vpop.xlane.xlu0 %1172
      %v1174 = vsel %vm1170, %v1167, 0.0
      %1175 = vadd.xlane.f32.xlu0 %v1174
      %v1176 = vpop.xlane.xlu0 %1175
      %v1177 = vrcp.pop 32.0
      %v1178 = vmul.f32 %v1173, %v1177
      %v1179 = vmul.f32 %v1176, %v1177
      %v1180 = vsub.f32 %v1166, %v1178
      %v1181 = vsub.f32 %v1167, %v1179
      %v1182 = vmul.f32 %v1180, %v1180
      %v1183 = vmul.f32 %v1181, %v1181
      %v1184 = vsel %vm1170, %v1182, 0.0
      %1185 = vadd.xlane.f32.xlu0 %v1184
      %v1186 = vpop.xlane.xlu0 %1185
      %v1187 = vsel %vm1170, %v1183, 0.0
      %1188 = vadd.xlane.f32.xlu0 %v1187
      %v1189 = vpop.xlane.xlu0 %1188
      %v1190 = vmul.f32 %v1186, %v1177
      %v1191 = vmul.f32 %v1189, %v1177
      %v1192 = vadd.f32 %v1190, 1e-06
      %v1193 = vadd.f32 %v1191, 1e-06
      %v1194 = vrsqrt.pop %v1192
      %v1195 = vrsqrt.pop %v1193
      %v1196 = vmul.f32 %v1180, %v1194
      %v1197 = vmul.f32 %v1181, %v1195
      %v1199 = vlaneseq
      %v1200 = vshrl.u32 %v1199, 7
      %v1201 = vsub.s32 0, %v1200
      %v1202 = vrot.slane %v1168, %v1201
      %v1204 = vmul.f32 %v1196, %v1202
      %v1205 = vmul.f32 %v1197, %v1202
      %v1207 = vlaneseq
      %v1208 = vshrl.u32 %v1207, 7
      %v1209 = vsub.s32 0, %v1208
      %v1210 = vrot.slane %v1169, %v1209
      %v1212 = vadd.f32 %v1204, %v1210
      %v1213 = vadd.f32 %v1205, %v1210
      %v1214 = vld [vmem:[%s802] sm:$0xff]
      %v1215 = vld [vmem:[%s802 + $0x8] sm:$0xff]
      %v1216 = vld [vmem:[%s802 + $0x10] sm:$0xff]
      %v1217 = vld [vmem:[%s802 + $0x18] sm:$0xff]
      %v1218 = vld [vmem:[%s805] sm:$0x1]
      %v1220 = vlaneseq
      %v1221 = vshrl.u32 %v1220, 7
      %v1222 = vsub.s32 0, %v1221
      %v1223 = vrot.slane %v1218, %v1222
      %v1226 = vsel %vm1170, %v1212, 0
      %v1229 = vsel %vm1170, %v1213, 0
      %1231 = vmatprep.subr.mxu0 0.0
      %1232 = vmatpush1.msra.mxu0 %v1214
      %1233 = vmatprep.subr.mxu0 0.0
      %1234 = vmatpush1.msra.mxu0 %v1215
      %1235 = vmatprep.subr.mxu0 0.0
      %1236 = vmatpush1.msra.mxu0 %v1216
      %1237 = vmatprep.subr.mxu0 0.0
      %1238 = vmatpush1.msra.mxu0 %v1217
      %1239 = vmatprep.subr.mxu0 0.0
      %1240 = vmatpush1.msra.mxu0 0.0
      %1241 = vmatprep.subr.mxu0 0.0
      %1242 = vmatpush1.msra.mxu0 0.0
      %1243 = vmatprep.subr.mxu0 0.0
      %1244 = vmatpush1.msra.mxu0 0.0
      %1245 = vmatprep.subr.mxu0 0.0
      %1246 = vmatpush1.msra.mxu0 0.0
      %1247 = vmatprep.subr.mxu0 0.0
      %1248 = vmatpush1.msra.mxu0 0.0
      %1249 = vmatprep.subr.mxu0 0.0
      %1250 = vmatpush1.msra.mxu0 0.0
      %1251 = vmatprep.subr.mxu0 0.0
      %1252 = vmatpush1.msra.mxu0 0.0
      %1253 = vmatprep.subr.mxu0 0.0
      %1254 = vmatpush1.msra.mxu0 0.0
      %1255 = vmatprep.subr.mxu0 0.0
      %1256 = vmatpush1.msra.mxu0 0.0
      %1257 = vmatprep.subr.mxu0 0.0
      %1258 = vmatpush1.msra.mxu0 0.0
      %1259 = vmatprep.subr.mxu0 0.0
      %1260 = vmatpush1.msra.mxu0 0.0
      %1261 = vmatprep.subr.mxu0 0.0
      %1262 = vmatpush1.msra.mxu0 0.0
      %1263 = vmatprep.subr.mxu0 0.0
      %1264 = vmatpush1.msra.mxu0 0.0
      %1265 = vmatprep.subr.mxu0 0.0
      %1266 = vmatpush1.msra.mxu0 0.0
      %1267 = vmatprep.subr.mxu0 0.0
      %1268 = vmatpush1.msra.mxu0 0.0
      %1269 = vmatprep.subr.mxu0 0.0
      %1270 = vmatpush1.msra.mxu0 0.0
      %1271 = vmatprep.subr.mxu0 0.0
      %1272 = vmatpush1.msra.mxu0 0.0
      %1273 = vmatprep.subr.mxu0 0.0
      %1274 = vmatpush1.msra.mxu0 0.0
      %1275 = vmatprep.subr.mxu0 0.0
      %1276 = vmatpush1.msra.mxu0 0.0
      %1277 = vmatprep.subr.mxu0 0.0
      %1278 = vmatpush1.msra.mxu0 0.0
      %1279 = vmatprep.subr.mxu0 0.0
      %1280 = vmatpush1.msra.mxu0 0.0
      %1281 = vmatprep.subr.mxu0 0.0
      %1282 = vmatpush1.msra.mxu0 0.0
      %1283 = vmatprep.subr.mxu0 0.0
      %1284 = vmatpush1.msra.mxu0 0.0
      %1285 = vmatprep.subr.mxu0 0.0
      %1286 = vmatpush1.msra.mxu0 0.0
      %1287 = vmatprep.subr.mxu0 0.0
      %1288 = vmatpush1.msra.mxu0 0.0
      %1289 = vmatprep.subr.mxu0 0.0
      %1290 = vmatpush1.msra.mxu0 0.0
      %1291 = vmatprep.subr.mxu0 0.0
      %1292 = vmatpush1.msra.mxu0 0.0
      %1293 = vmatprep.subr.mxu0 0.0
      %1294 = vmatpush1.msra.mxu0 0.0
      %1295 = vmatprep.mubr.f32.mxu0 0.0
      %1296 = vmatmul.mubr.f32.gmra.mrb[0].mxu0 %v1226
      %v1297 = vpop.f32.mrb[0].mxu0
      %v1298 = vadd.f32 %v1223, %v1297
      %v1299 = vpop.f32.mrb[0].mxu0
      %1300 = vmatprep.mubr.f32.mxu0 0.0
      %1301 = vmatmul.mubr.f32.gmra.mrb[0].mxu0 %v1229
      %v1302 = vpop.f32.mrb[0].mxu0
      %v1303 = vadd.f32 %v1223, %v1302
      %v1304 = vpop.f32.mrb[0].mxu0
      %1305 = vdwg.mxu0
      %v1306 = vmul.f32 %v1298, 0.35355338
      %v1307 = vmul.f32 %v1303, 0.35355338
      %v1308 = vlaneseq
      %v1309 = vand.u32 %v1308, 127
      %vm1310 = vcmp.ge.s32.totalorder %v1309, 5
      %v1311 = vsel %vm1310, -1e+30, 0.0
      %1313 = vrot.lane.b32.xlu0 %v1298, 96
      %v1314 = vpop.permute.xlu0 %1313
      %vm1315 = vcmask 64512
      %v1317 = vsel %vm1315, %v1306, 0
      %v1319 = vsel %vm1315, %v1314, 0
      %1321 = vmatprep.subr.mxu0 0.0
      %1322 = vmatpush1.xpose.msra.mxu0 %v1319
      %1323 = vmatprep.subr.mxu0 0.0
      %1324 = vmatpush1.xpose.msra.mxu0 0.0
      %1325 = vmatprep.subr.mxu0 0.0
      %1326 = vmatpush1.xpose.msra.mxu0 0.0
      %1327 = vmatprep.subr.mxu0 0.0
      %1328 = vmatpush1.xpose.msra.mxu0 0.0
      %1329 = vmatprep.subr.mxu0 0.0
      %1330 = vmatpush1.xpose.msra.mxu0 0.0
      %1331 = vmatprep.subr.mxu0 0.0
      %1332 = vmatpush1.xpose.msra.mxu0 0.0
      %1333 = vmatprep.subr.mxu0 0.0
      %1334 = vmatpush1.xpose.msra.mxu0 0.0
      %1335 = vmatprep.subr.mxu0 0.0
      %1336 = vmatpush1.xpose.msra.mxu0 0.0
      %1337 = vmatprep.subr.mxu0 0.0
      %1338 = vmatpush1.xpose.msra.mxu0 0.0
      %1339 = vmatprep.subr.mxu0 0.0
      %1340 = vmatpush1.xpose.msra.mxu0 0.0
      %1341 = vmatprep.subr.mxu0 0.0
      %1342 = vmatpush1.xpose.msra.mxu0 0.0
      %1343 = vmatprep.subr.mxu0 0.0
      %1344 = vmatpush1.xpose.msra.mxu0 0.0
      %1345 = vmatprep.subr.mxu0 0.0
      %1346 = vmatpush1.xpose.msra.mxu0 0.0
      %1347 = vmatprep.subr.mxu0 0.0
      %1348 = vmatpush1.xpose.msra.mxu0 0.0
      %1349 = vmatprep.subr.mxu0 0.0
      %1350 = vmatpush1.xpose.msra.mxu0 0.0
      %1351 = vmatprep.subr.mxu0 0.0
      %1352 = vmatpush1.xpose.msra.mxu0 0.0
      %1353 = vmatprep.subr.mxu0 0.0
      %1354 = vmatpush1.xpose.msra.mxu0 0.0
      %1355 = vmatprep.subr.mxu0 0.0
      %1356 = vmatpush1.xpose.msra.mxu0 0.0
      %1357 = vmatprep.subr.mxu0 0.0
      %1358 = vmatpush1.xpose.msra.mxu0 0.0
      %1359 = vmatprep.subr.mxu0 0.0
      %1360 = vmatpush1.xpose.msra.mxu0 0.0
      %1361 = vmatprep.subr.mxu0 0.0
      %1362 = vmatpush1.xpose.msra.mxu0 0.0
      %1363 = vmatprep.subr.mxu0 0.0
      %1364 = vmatpush1.xpose.msra.mxu0 0.0
      %1365 = vmatprep.subr.mxu0 0.0
      %1366 = vmatpush1.xpose.msra.mxu0 0.0
      %1367 = vmatprep.subr.mxu0 0.0
      %1368 = vmatpush1.xpose.msra.mxu0 0.0
      %1369 = vmatprep.subr.mxu0 0.0
      %1370 = vmatpush1.xpose.msra.mxu0 0.0
      %1371 = vmatprep.subr.mxu0 0.0
      %1372 = vmatpush1.xpose.msra.mxu0 0.0
      %1373 = vmatprep.subr.mxu0 0.0
      %1374 = vmatpush1.xpose.msra.mxu0 0.0
      %1375 = vmatprep.subr.mxu0 0.0
      %1376 = vmatpush1.xpose.msra.mxu0 0.0
      %1377 = vmatprep.subr.mxu0 0.0
      %1378 = vmatpush1.xpose.msra.mxu0 0.0
      %1379 = vmatprep.subr.mxu0 0.0
      %1380 = vmatpush1.xpose.msra.mxu0 0.0
      %1381 = vmatprep.subr.mxu0 0.0
      %1382 = vmatpush1.xpose.msra.mxu0 0.0
      %1383 = vmatprep.subr.mxu0 0.0
      %1384 = vmatpush1.xpose.msra.mxu0 0.0
      %1385 = vmatprep.mubr.f32.mxu0 0.0
      %1386 = vmatmul.mubr.f32.gmra.mrb[0].mxu0 %v1317
      %v1387 = vpop.f32.mrb[0].mxu0
      %v1388 = vadd.f32 %v1311, %v1387
      %v1389 = vpop.f32.mrb[0].mxu0
      %1390 = vdwg.mxu0
      %1392 = vrot.lane.b32.xlu0 %v1303, 96
      %v1393 = vpop.permute.xlu0 %1392
      %v1395 = vsel %vm1315, %v1307, 0
      %v1397 = vsel %vm1315, %v1393, 0
      %1399 = vmatprep.subr.mxu0 0.0
      %1400 = vmatpush1.xpose.msra.mxu0 %v1397
      %1401 = vmatprep.subr.mxu0 0.0
      %1402 = vmatpush1.xpose.msra.mxu0 0.0
      %1403 = vmatprep.subr.mxu0 0.0
      %1404 = vmatpush1.xpose.msra.mxu0 0.0
      %1405 = vmatprep.subr.mxu0 0.0
      %1406 = vmatpush1.xpose.msra.mxu0 0.0
      %1407 = vmatprep.subr.mxu0 0.0
      %1408 = vmatpush1.xpose.msra.mxu0 0.0
      %1409 = vmatprep.subr.mxu0 0.0
      %1410 = vmatpush1.xpose.msra.mxu0 0.0
      %1411 = vmatprep.subr.mxu0 0.0
      %1412 = vmatpush1.xpose.msra.mxu0 0.0
      %1413 = vmatprep.subr.mxu0 0.0
      %1414 = vmatpush1.xpose.msra.mxu0 0.0
      %1415 = vmatprep.subr.mxu0 0.0
      %1416 = vmatpush1.xpose.msra.mxu0 0.0
      %1417 = vmatprep.subr.mxu0 0.0
      %1418 = vmatpush1.xpose.msra.mxu0 0.0
      %1419 = vmatprep.subr.mxu0 0.0
      %1420 = vmatpush1.xpose.msra.mxu0 0.0
      %1421 = vmatprep.subr.mxu0 0.0
      %1422 = vmatpush1.xpose.msra.mxu0 0.0
      %1423 = vmatprep.subr.mxu0 0.0
      %1424 = vmatpush1.xpose.msra.mxu0 0.0
      %1425 = vmatprep.subr.mxu0 0.0
      %1426 = vmatpush1.xpose.msra.mxu0 0.0
      %1427 = vmatprep.subr.mxu0 0.0
      %1428 = vmatpush1.xpose.msra.mxu0 0.0
      %1429 = vmatprep.subr.mxu0 0.0
      %1430 = vmatpush1.xpose.msra.mxu0 0.0
      %1431 = vmatprep.subr.mxu0 0.0
      %1432 = vmatpush1.xpose.msra.mxu0 0.0
      %1433 = vmatprep.subr.mxu0 0.0
      %1434 = vmatpush1.xpose.msra.mxu0 0.0
      %1435 = vmatprep.subr.mxu0 0.0
      %1436 = vmatpush1.xpose.msra.mxu0 0.0
      %1437 = vmatprep.subr.mxu0 0.0
      %1438 = vmatpush1.xpose.msra.mxu0 0.0
      %1439 = vmatprep.subr.mxu0 0.0
      %1440 = vmatpush1.xpose.msra.mxu0 0.0
      %1441 = vmatprep.subr.mxu0 0.0
      %1442 = vmatpush1.xpose.msra.mxu0 0.0
      %1443 = vmatprep.subr.mxu0 0.0
      %1444 = vmatpush1.xpose.msra.mxu0 0.0
      %1445 = vmatprep.subr.mxu0 0.0
      %1446 = vmatpush1.xpose.msra.mxu0 0.0
      %1447 = vmatprep.subr.mxu0 0.0
      %1448 = vmatpush1.xpose.msra.mxu0 0.0
      %1449 = vmatprep.subr.mxu0 0.0
      %1450 = vmatpush1.xpose.msra.mxu0 0.0
      %1451 = vmatprep.subr.mxu0 0.0
      %1452 = vmatpush1.xpose.msra.mxu0 0.0
      %1453 = vmatprep.subr.mxu0 0.0
      %1454 = vmatpush1.xpose.msra.mxu0 0.0
      %1455 = vmatprep.subr.mxu0 0.0
      %1456 = vmatpush1.xpose.msra.mxu0 0.0
      %1457 = vmatprep.subr.mxu0 0.0
      %1458 = vmatpush1.xpose.msra.mxu0 0.0
      %1459 = vmatprep.subr.mxu0 0.0
      %1460 = vmatpush1.xpose.msra.mxu0 0.0
      %1461 = vmatprep.subr.mxu0 0.0
      %1462 = vmatpush1.xpose.msra.mxu0 0.0
      %1463 = vmatprep.mubr.f32.mxu0 0.0
      %1464 = vmatmul.mubr.f32.gmra.mrb[0].mxu0 %v1395
      %v1465 = vpop.f32.mrb[0].mxu0
      %v1466 = vadd.f32 %v1311, %v1465
      %v1467 = vpop.f32.mrb[0].mxu0
      %1468 = vdwg.mxu0
      %v1469 = vsel %vm1315, %v1388, -inf
      %1470 = vmax.xlane.f32.xlu0 %v1469
      %v1471 = vpop.xlane.xlu0 %1470
      %v1472 = vsel %vm1315, %v1466, -inf
      %1473 = vmax.xlane.f32.xlu0 %v1472
      %v1474 = vpop.xlane.xlu0 %1473
      %v1475 = vsub.f32 %v1388, %v1471
      %v1476 = vsub.f32 %v1466, %v1474
      %v1477 = vmul.f32 %v1475, 1.442695
      %v1478 = vpow.pop %v1477
      %v1479 = vmul.f32 %v1476, 1.442695
      %v1480 = vpow.pop %v1479
      %v1481 = vsel %vm1315, %v1478, 0.0
      %1482 = vadd.xlane.f32.xlu0 %v1481
      %v1483 = vpop.xlane.xlu0 %1482
      %v1484 = vsel %vm1315, %v1480, 0.0
      %1485 = vadd.xlane.f32.xlu0 %v1484
      %v1486 = vpop.xlane.xlu0 %1485
      %v1487 = vrcp.pop %v1483
      %v1488 = vrcp.pop %v1486
      %v1489 = vmul.f32 %v1478, %v1487
      %v1490 = vmul.f32 %v1480, %v1488
      %1491 = vrot.lane.b32.xlu0 %v1298, 64
      %v1492 = vpop.permute.xlu0 %1491
      %v1495 = vsel %vm1315, %v1489, 0
      %1497 = vmatprep.subr.mxu0 0.0
      %1498 = vmatpush1.msra.mxu0 %v1492
      %1499 = vmatprep.subr.mxu0 0.0
      %1500 = vmatpush1.msra.mxu0 0.0
      %1501 = vmatprep.subr.mxu0 0.0
      %1502 = vmatpush1.msra.mxu0 0.0
      %1503 = vmatprep.subr.mxu0 0.0
      %1504 = vmatpush1.msra.mxu0 0.0
      %1505 = vmatprep.subr.mxu0 0.0
      %1506 = vmatpush1.msra.mxu0 0.0
      %1507 = vmatprep.subr.mxu0 0.0
      %1508 = vmatpush1.msra.mxu0 0.0
      %1509 = vmatprep.subr.mxu0 0.0
      %1510 = vmatpush1.msra.mxu0 0.0
      %1511 = vmatprep.subr.mxu0 0.0
      %1512 = vmatpush1.msra.mxu0 0.0
      %1513 = vmatprep.subr.mxu0 0.0
      %1514 = vmatpush1.msra.mxu0 0.0
      %1515 = vmatprep.subr.mxu0 0.0
      %1516 = vmatpush1.msra.mxu0 0.0
      %1517 = vmatprep.subr.mxu0 0.0
      %1518 = vmatpush1.msra.mxu0 0.0
      %1519 = vmatprep.subr.mxu0 0.0
      %1520 = vmatpush1.msra.mxu0 0.0
      %1521 = vmatprep.subr.mxu0 0.0
      %1522 = vmatpush1.msra.mxu0 0.0
      %1523 = vmatprep.subr.mxu0 0.0
      %1524 = vmatpush1.msra.mxu0 0.0
      %1525 = vmatprep.subr.mxu0 0.0
      %1526 = vmatpush1.msra.mxu0 0.0
      %1527 = vmatprep.subr.mxu0 0.0
      %1528 = vmatpush1.msra.mxu0 0.0
      %1529 = vmatprep.subr.mxu0 0.0
      %1530 = vmatpush1.msra.mxu0 0.0
      %1531 = vmatprep.subr.mxu0 0.0
      %1532 = vmatpush1.msra.mxu0 0.0
      %1533 = vmatprep.subr.mxu0 0.0
      %1534 = vmatpush1.msra.mxu0 0.0
      %1535 = vmatprep.subr.mxu0 0.0
      %1536 = vmatpush1.msra.mxu0 0.0
      %1537 = vmatprep.subr.mxu0 0.0
      %1538 = vmatpush1.msra.mxu0 0.0
      %1539 = vmatprep.subr.mxu0 0.0
      %1540 = vmatpush1.msra.mxu0 0.0
      %1541 = vmatprep.subr.mxu0 0.0
      %1542 = vmatpush1.msra.mxu0 0.0
      %1543 = vmatprep.subr.mxu0 0.0
      %1544 = vmatpush1.msra.mxu0 0.0
      %1545 = vmatprep.subr.mxu0 0.0
      %1546 = vmatpush1.msra.mxu0 0.0
      %1547 = vmatprep.subr.mxu0 0.0
      %1548 = vmatpush1.msra.mxu0 0.0
      %1549 = vmatprep.subr.mxu0 0.0
      %1550 = vmatpush1.msra.mxu0 0.0
      %1551 = vmatprep.subr.mxu0 0.0
      %1552 = vmatpush1.msra.mxu0 0.0
      %1553 = vmatprep.subr.mxu0 0.0
      %1554 = vmatpush1.msra.mxu0 0.0
      %1555 = vmatprep.subr.mxu0 0.0
      %1556 = vmatpush1.msra.mxu0 0.0
      %1557 = vmatprep.subr.mxu0 0.0
      %1558 = vmatpush1.msra.mxu0 0.0
      %1559 = vmatprep.subr.mxu0 0.0
      %1560 = vmatpush1.msra.mxu0 0.0
      %1561 = vmatprep.mubr.f32.mxu0 0.0
      %1562 = vmatmul.mubr.f32.gmra.mrb[0].mxu0 %v1495
      %v1563 = vpop.f32.mrb[0].mxu0
      %v1564 = vadd.f32 0.0, %v1563
      %v1565 = vpop.f32.mrb[0].mxu0
      %1566 = vdwg.mxu0
      %1567 = vrot.lane.b32.xlu0 %v1303, 64
      %v1568 = vpop.permute.xlu0 %1567
      %v1571 = vsel %vm1315, %v1490, 0
      %1573 = vmatprep.subr.mxu0 0.0
      %1574 = vmatpush1.msra.mxu0 %v1568
      %1575 = vmatprep.subr.mxu0 0.0
      %1576 = vmatpush1.msra.mxu0 0.0
      %1577 = vmatprep.subr.mxu0 0.0
      %1578 = vmatpush1.msra.mxu0 0.0
      %1579 = vmatprep.subr.mxu0 0.0
      %1580 = vmatpush1.msra.mxu0 0.0
      %1581 = vmatprep.subr.mxu0 0.0
      %1582 = vmatpush1.msra.mxu0 0.0
      %1583 = vmatprep.subr.mxu0 0.0
      %1584 = vmatpush1.msra.mxu0 0.0
      %1585 = vmatprep.subr.mxu0 0.0
      %1586 = vmatpush1.msra.mxu0 0.0
      %1587 = vmatprep.subr.mxu0 0.0
      %1588 = vmatpush1.msra.mxu0 0.0
      %1589 = vmatprep.subr.mxu0 0.0
      %1590 = vmatpush1.msra.mxu0 0.0
      %1591 = vmatprep.subr.mxu0 0.0
      %1592 = vmatpush1.msra.mxu0 0.0
      %1593 = vmatprep.subr.mxu0 0.0
      %1594 = vmatpush1.msra.mxu0 0.0
      %1595 = vmatprep.subr.mxu0 0.0
      %1596 = vmatpush1.msra.mxu0 0.0
      %1597 = vmatprep.subr.mxu0 0.0
      %1598 = vmatpush1.msra.mxu0 0.0
      %1599 = vmatprep.subr.mxu0 0.0
      %1600 = vmatpush1.msra.mxu0 0.0
      %1601 = vmatprep.subr.mxu0 0.0
      %1602 = vmatpush1.msra.mxu0 0.0
      %1603 = vmatprep.subr.mxu0 0.0
      %1604 = vmatpush1.msra.mxu0 0.0
      %1605 = vmatprep.subr.mxu0 0.0
      %1606 = vmatpush1.msra.mxu0 0.0
      %1607 = vmatprep.subr.mxu0 0.0
      %1608 = vmatpush1.msra.mxu0 0.0
      %1609 = vmatprep.subr.mxu0 0.0
      %1610 = vmatpush1.msra.mxu0 0.0
      %1611 = vmatprep.subr.mxu0 0.0
      %1612 = vmatpush1.msra.mxu0 0.0
      %1613 = vmatprep.subr.mxu0 0.0
      %1614 = vmatpush1.msra.mxu0 0.0
      %1615 = vmatprep.subr.mxu0 0.0
      %1616 = vmatpush1.msra.mxu0 0.0
      %1617 = vmatprep.subr.mxu0 0.0
      %1618 = vmatpush1.msra.mxu0 0.0
      %1619 = vmatprep.subr.mxu0 0.0
      %1620 = vmatpush1.msra.mxu0 0.0
      %1621 = vmatprep.subr.mxu0 0.0
      %1622 = vmatpush1.msra.mxu0 0.0
      %1623 = vmatprep.subr.mxu0 0.0
      %1624 = vmatpush1.msra.mxu0 0.0
      %1625 = vmatprep.subr.mxu0 0.0
      %1626 = vmatpush1.msra.mxu0 0.0
      %1627 = vmatprep.subr.mxu0 0.0
      %1628 = vmatpush1.msra.mxu0 0.0
      %1629 = vmatprep.subr.mxu0 0.0
      %1630 = vmatpush1.msra.mxu0 0.0
      %1631 = vmatprep.subr.mxu0 0.0
      %1632 = vmatpush1.msra.mxu0 0.0
      %1633 = vmatprep.subr.mxu0 0.0
      %1634 = vmatpush1.msra.mxu0 0.0
      %1635 = vmatprep.subr.mxu0 0.0
      %1636 = vmatpush1.msra.mxu0 0.0
      %1637 = vmatprep.mubr.f32.mxu0 0.0
      %1638 = vmatmul.mubr.f32.gmra.mrb[0].mxu0 %v1571
      %v1639 = vpop.f32.mrb[0].mxu0
      %v1640 = vadd.f32 0.0, %v1639
      %v1641 = vpop.f32.mrb[0].mxu0
      %1642 = vdwg.mxu0
      %1643 = vrot.lane.b32.xlu0 %v1306, 120
      %v1644 = vpop.permute.xlu0 %1643
      %1645 = vrot.lane.b32.xlu0 %v1298, 88
      %v1646 = vpop.permute.xlu0 %1645
      %v1647 = vsel %vm1315, %v1644, 0
      %v1649 = vsel %vm1315, %v1646, 0
      %1651 = vmatprep.subr.mxu0 0.0
      %1652 = vmatpush1.xpose.msra.mxu0 %v1649
      %1653 = vmatprep.subr.mxu0 0.0
      %1654 = vmatpush1.xpose.msra.mxu0 0.0
      %1655 = vmatprep.subr.mxu0 0.0
      %1656 = vmatpush1.xpose.msra.mxu0 0.0
      %1657 = vmatprep.subr.mxu0 0.0
      %1658 = vmatpush1.xpose.msra.mxu0 0.0
      %1659 = vmatprep.subr.mxu0 0.0
      %1660 = vmatpush1.xpose.msra.mxu0 0.0
      %1661 = vmatprep.subr.mxu0 0.0
      %1662 = vmatpush1.xpose.msra.mxu0 0.0
      %1663 = vmatprep.subr.mxu0 0.0
      %1664 = vmatpush1.xpose.msra.mxu0 0.0
      %1665 = vmatprep.subr.mxu0 0.0
      %1666 = vmatpush1.xpose.msra.mxu0 0.0
      %1667 = vmatprep.subr.mxu0 0.0
      %1668 = vmatpush1.xpose.msra.mxu0 0.0
      %1669 = vmatprep.subr.mxu0 0.0
      %1670 = vmatpush1.xpose.msra.mxu0 0.0
      %1671 = vmatprep.subr.mxu0 0.0
      %1672 = vmatpush1.xpose.msra.mxu0 0.0
      %1673 = vmatprep.subr.mxu0 0.0
      %1674 = vmatpush1.xpose.msra.mxu0 0.0
      %1675 = vmatprep.subr.mxu0 0.0
      %1676 = vmatpush1.xpose.msra.mxu0 0.0
      %1677 = vmatprep.subr.mxu0 0.0
      %1678 = vmatpush1.xpose.msra.mxu0 0.0
      %1679 = vmatprep.subr.mxu0 0.0
      %1680 = vmatpush1.xpose.msra.mxu0 0.0
      %1681 = vmatprep.subr.mxu0 0.0
      %1682 = vmatpush1.xpose.msra.mxu0 0.0
      %1683 = vmatprep.subr.mxu0 0.0
      %1684 = vmatpush1.xpose.msra.mxu0 0.0
      %1685 = vmatprep.subr.mxu0 0.0
      %1686 = vmatpush1.xpose.msra.mxu0 0.0
      %1687 = vmatprep.subr.mxu0 0.0
      %1688 = vmatpush1.xpose.msra.mxu0 0.0
      %1689 = vmatprep.subr.mxu0 0.0
      %1690 = vmatpush1.xpose.msra.mxu0 0.0
      %1691 = vmatprep.subr.mxu0 0.0
      %1692 = vmatpush1.xpose.msra.mxu0 0.0
      %1693 = vmatprep.subr.mxu0 0.0
      %1694 = vmatpush1.xpose.msra.mxu0 0.0
      %1695 = vmatprep.subr.mxu0 0.0
      %1696 = vmatpush1.xpose.msra.mxu0 0.0
      %1697 = vmatprep.subr.mxu0 0.0
      %1698 = vmatpush1.xpose.msra.mxu0 0.0
      %1699 = vmatprep.subr.mxu0 0.0
      %1700 = vmatpush1.xpose.msra.mxu0 0.0
      %1701 = vmatprep.subr.mxu0 0.0
      %1702 = vmatpush1.xpose.msra.mxu0 0.0
      %1703 = vmatprep.subr.mxu0 0.0
      %1704 = vmatpush1.xpose.msra.mxu0 0.0
      %1705 = vmatprep.subr.mxu0 0.0
      %1706 = vmatpush1.xpose.msra.mxu0 0.0
      %1707 = vmatprep.subr.mxu0 0.0
      %1708 = vmatpush1.xpose.msra.mxu0 0.0
      %1709 = vmatprep.subr.mxu0 0.0
      %1710 = vmatpush1.xpose.msra.mxu0 0.0
      %1711 = vmatprep.subr.mxu0 0.0
      %1712 = vmatpush1.xpose.msra.mxu0 0.0
      %1713 = vmatprep.subr.mxu0 0.0
      %1714 = vmatpush1.xpose.msra.mxu0 0.0
      %1715 = vmatprep.mubr.f32.mxu0 0.0
      %1716 = vmatmul.mubr.f32.gmra.mrb[0].mxu0 %v1647
      %v1717 = vpop.f32.mrb[0].mxu0
      %v1718 = vadd.f32 %v1311, %v1717
      %v1719 = vpop.f32.mrb[0].mxu0
      %1720 = vdwg.mxu0
      %1721 = vrot.lane.b32.xlu0 %v1307, 120
      %v1722 = vpop.permute.xlu0 %1721
      %1723 = vrot.lane.b32.xlu0 %v1303, 88
      %v1724 = vpop.permute.xlu0 %1723
      %v1725 = vsel %vm1315, %v1722, 0
      %v1727 = vsel %vm1315, %v1724, 0
      %1729 = vmatprep.subr.mxu0 0.0
      %1730 = vmatpush1.xpose.msra.mxu0 %v1727
      %1731 = vmatprep.subr.mxu0 0.0
      %1732 = vmatpush1.xpose.msra.mxu0 0.0
      %1733 = vmatprep.subr.mxu0 0.0
      %1734 = vmatpush1.xpose.msra.mxu0 0.0
      %1735 = vmatprep.subr.mxu0 0.0
      %1736 = vmatpush1.xpose.msra.mxu0 0.0
      %1737 = vmatprep.subr.mxu0 0.0
      %1738 = vmatpush1.xpose.msra.mxu0 0.0
      %1739 = vmatprep.subr.mxu0 0.0
      %1740 = vmatpush1.xpose.msra.mxu0 0.0
      %1741 = vmatprep.subr.mxu0 0.0
      %1742 = vmatpush1.xpose.msra.mxu0 0.0
      %1743 = vmatprep.subr.mxu0 0.0
      %1744 = vmatpush1.xpose.msra.mxu0 0.0
      %1745 = vmatprep.subr.mxu0 0.0
      %1746 = vmatpush1.xpose.msra.mxu0 0.0
      %1747 = vmatprep.subr.mxu0 0.0
      %1748 = vmatpush1.xpose.msra.mxu0 0.0
      %1749 = vmatprep.subr.mxu0 0.0
      %1750 = vmatpush1.xpose.msra.mxu0 0.0
      %1751 = vmatprep.subr.mxu0 0.0
      %1752 = vmatpush1.xpose.msra.mxu0 0.0
      %1753 = vmatprep.subr.mxu0 0.0
      %1754 = vmatpush1.xpose.msra.mxu0 0.0
      %1755 = vmatprep.subr.mxu0 0.0
      %1756 = vmatpush1.xpose.msra.mxu0 0.0
      %1757 = vmatprep.subr.mxu0 0.0
      %1758 = vmatpush1.xpose.msra.mxu0 0.0
      %1759 = vmatprep.subr.mxu0 0.0
      %1760 = vmatpush1.xpose.msra.mxu0 0.0
      %1761 = vmatprep.subr.mxu0 0.0
      %1762 = vmatpush1.xpose.msra.mxu0 0.0
      %1763 = vmatprep.subr.mxu0 0.0
      %1764 = vmatpush1.xpose.msra.mxu0 0.0
      %1765 = vmatprep.subr.mxu0 0.0
      %1766 = vmatpush1.xpose.msra.mxu0 0.0
      %1767 = vmatprep.subr.mxu0 0.0
      %1768 = vmatpush1.xpose.msra.mxu0 0.0
      %1769 = vmatprep.subr.mxu0 0.0
      %1770 = vmatpush1.xpose.msra.mxu0 0.0
      %1771 = vmatprep.subr.mxu0 0.0
      %1772 = vmatpush1.xpose.msra.mxu0 0.0
      %1773 = vmatprep.subr.mxu0 0.0
      %1774 = vmatpush1.xpose.msra.mxu0 0.0
      %1775 = vmatprep.subr.mxu0 0.0
      %1776 = vmatpush1.xpose.msra.mxu0 0.0
      %1777 = vmatprep.subr.mxu0 0.0
      %1778 = vmatpush1.xpose.msra.mxu0 0.0
      %1779 = vmatprep.subr.mxu0 0.0
      %1780 = vmatpush1.xpose.msra.mxu0 0.0
      %1781 = vmatprep.subr.mxu0 0.0
      %1782 = vmatpush1.xpose.msra.mxu0 0.0
      %1783 = vmatprep.subr.mxu0 0.0
      %1784 = vmatpush1.xpose.msra.mxu0 0.0
      %1785 = vmatprep.subr.mxu0 0.0
      %1786 = vmatpush1.xpose.msra.mxu0 0.0
      %1787 = vmatprep.subr.mxu0 0.0
      %1788 = vmatpush1.xpose.msra.mxu0 0.0
      %1789 = vmatprep.subr.mxu0 0.0
      %1790 = vmatpush1.xpose.msra.mxu0 0.0
      %1791 = vmatprep.subr.mxu0 0.0
      %1792 = vmatpush1.xpose.msra.mxu0 0.0
      %1793 = vmatprep.mubr.f32.mxu0 0.0
      %1794 = vmatmul.mubr.f32.gmra.mrb[0].mxu0 %v1725
      %v1795 = vpop.f32.mrb[0].mxu0
      %v1796 = vadd.f32 %v1311, %v1795
      %v1797 = vpop.f32.mrb[0].mxu0
      %1798 = vdwg.mxu0
      %v1799 = vsel %vm1315, %v1718, -inf
      %1800 = vmax.xlane.f32.xlu0 %v1799
      %v1801 = vpop.xlane.xlu0 %1800
      %v1802 = vsel %vm1315, %v1796, -inf
      %1803 = vmax.xlane.f32.xlu0 %v1802
      %v1804 = vpop.xlane.xlu0 %1803
      %v1805 = vsub.f32 %v1718, %v1801
      %v1806 = vsub.f32 %v1796, %v1804
      %v1807 = vmul.f32 %v1805, 1.442695
      %v1808 = vpow.pop %v1807
      %v1809 = vmul.f32 %v1806, 1.442695
      %v1810 = vpow.pop %v1809
      %v1811 = vsel %vm1315, %v1808, 0.0
      %1812 = vadd.xlane.f32.xlu0 %v1811
      %v1813 = vpop.xlane.xlu0 %1812
      %v1814 = vsel %vm1315, %v1810, 0.0
      %1815 = vadd.xlane.f32.xlu0 %v1814
      %v1816 = vpop.xlane.xlu0 %1815
      %v1817 = vrcp.pop %v1813
      %v1818 = vrcp.pop %v1816
      %v1819 = vmul.f32 %v1808, %v1817
      %v1820 = vmul.f32 %v1810, %v1818
      %1821 = vrot.lane.b32.xlu0 %v1298, 56
      %v1822 = vpop.permute.xlu0 %1821
      %v1825 = vsel %vm1315, %v1819, 0
      %1827 = vmatprep.subr.mxu0 0.0
      %1828 = vmatpush1.msra.mxu0 %v1822
      %1829 = vmatprep.subr.mxu0 0.0
      %1830 = vmatpush1.msra.mxu0 0.0
      %1831 = vmatprep.subr.mxu0 0.0
      %1832 = vmatpush1.msra.mxu0 0.0
      %1833 = vmatprep.subr.mxu0 0.0
      %1834 = vmatpush1.msra.mxu0 0.0
      %1835 = vmatprep.subr.mxu0 0.0
      %1836 = vmatpush1.msra.mxu0 0.0
      %1837 = vmatprep.subr.mxu0 0.0
      %1838 = vmatpush1.msra.mxu0 0.0
      %1839 = vmatprep.subr.mxu0 0.0
      %1840 = vmatpush1.msra.mxu0 0.0
      %1841 = vmatprep.subr.mxu0 0.0
      %1842 = vmatpush1.msra.mxu0 0.0
      %1843 = vmatprep.subr.mxu0 0.0
      %1844 = vmatpush1.msra.mxu0 0.0
      %1845 = vmatprep.subr.mxu0 0.0
      %1846 = vmatpush1.msra.mxu0 0.0
      %1847 = vmatprep.subr.mxu0 0.0
      %1848 = vmatpush1.msra.mxu0 0.0
      %1849 = vmatprep.subr.mxu0 0.0
      %1850 = vmatpush1.msra.mxu0 0.0
      %1851 = vmatprep.subr.mxu0 0.0
      %1852 = vmatpush1.msra.mxu0 0.0
      %1853 = vmatprep.subr.mxu0 0.0
      %1854 = vmatpush1.msra.mxu0 0.0
      %1855 = vmatprep.subr.mxu0 0.0
      %1856 = vmatpush1.msra.mxu0 0.0
      %1857 = vmatprep.subr.mxu0 0.0
      %1858 = vmatpush1.msra.mxu0 0.0
      %1859 = vmatprep.subr.mxu0 0.0
      %1860 = vmatpush1.msra.mxu0 0.0
      %1861 = vmatprep.subr.mxu0 0.0
      %1862 = vmatpush1.msra.mxu0 0.0
      %1863 = vmatprep.subr.mxu0 0.0
      %1864 = vmatpush1.msra.mxu0 0.0
      %1865 = vmatprep.subr.mxu0 0.0
      %1866 = vmatpush1.msra.mxu0 0.0
      %1867 = vmatprep.subr.mxu0 0.0
      %1868 = vmatpush1.msra.mxu0 0.0
      %1869 = vmatprep.subr.mxu0 0.0
      %1870 = vmatpush1.msra.mxu0 0.0
      %1871 = vmatprep.subr.mxu0 0.0
      %1872 = vmatpush1.msra.mxu0 0.0
      %1873 = vmatprep.subr.mxu0 0.0
      %1874 = vmatpush1.msra.mxu0 0.0
      %1875 = vmatprep.subr.mxu0 0.0
      %1876 = vmatpush1.msra.mxu0 0.0
      %1877 = vmatprep.subr.mxu0 0.0
      %1878 = vmatpush1.msra.mxu0 0.0
      %1879 = vmatprep.subr.mxu0 0.0
      %1880 = vmatpush1.msra.mxu0 0.0
      %1881 = vmatprep.subr.mxu0 0.0
      %1882 = vmatpush1.msra.mxu0 0.0
      %1883 = vmatprep.subr.mxu0 0.0
      %1884 = vmatpush1.msra.mxu0 0.0
      %1885 = vmatprep.subr.mxu0 0.0
      %1886 = vmatpush1.msra.mxu0 0.0
      %1887 = vmatprep.subr.mxu0 0.0
      %1888 = vmatpush1.msra.mxu0 0.0
      %1889 = vmatprep.subr.mxu0 0.0
      %1890 = vmatpush1.msra.mxu0 0.0
      %1891 = vmatprep.mubr.f32.mxu0 0.0
      %1892 = vmatmul.mubr.f32.gmra.mrb[0].mxu0 %v1825
      %v1893 = vpop.f32.mrb[0].mxu0
      %v1894 = vadd.f32 0.0, %v1893
      %v1895 = vpop.f32.mrb[0].mxu0
      %1896 = vdwg.mxu0
      %1897 = vrot.lane.b32.xlu0 %v1303, 56
      %v1898 = vpop.permute.xlu0 %1897
      %v1901 = vsel %vm1315, %v1820, 0
      %1903 = vmatprep.subr.mxu0 0.0
      %1904 = vmatpush1.msra.mxu0 %v1898
      %1905 = vmatprep.subr.mxu0 0.0
      %1906 = vmatpush1.msra.mxu0 0.0
      %1907 = vmatprep.subr.mxu0 0.0
      %1908 = vmatpush1.msra.mxu0 0.0
      %1909 = vmatprep.subr.mxu0 0.0
      %1910 = vmatpush1.msra.mxu0 0.0
      %1911 = vmatprep.subr.mxu0 0.0
      %1912 = vmatpush1.msra.mxu0 0.0
      %1913 = vmatprep.subr.mxu0 0.0
      %1914 = vmatpush1.msra.mxu0 0.0
      %1915 = vmatprep.subr.mxu0 0.0
      %1916 = vmatpush1.msra.mxu0 0.0
      %1917 = vmatprep.subr.mxu0 0.0
      %1918 = vmatpush1.msra.mxu0 0.0
      %1919 = vmatprep.subr.mxu0 0.0
      %1920 = vmatpush1.msra.mxu0 0.0
      %1921 = vmatprep.subr.mxu0 0.0
      %1922 = vmatpush1.msra.mxu0 0.0
      %1923 = vmatprep.subr.mxu0 0.0
      %1924 = vmatpush1.msra.mxu0 0.0
      %1925 = vmatprep.subr.mxu0 0.0
      %1926 = vmatpush1.msra.mxu0 0.0
      %1927 = vmatprep.subr.mxu0 0.0
      %1928 = vmatpush1.msra.mxu0 0.0
      %1929 = vmatprep.subr.mxu0 0.0
      %1930 = vmatpush1.msra.mxu0 0.0
      %1931 = vmatprep.subr.mxu0 0.0
      %1932 = vmatpush1.msra.mxu0 0.0
      %1933 = vmatprep.subr.mxu0 0.0
      %1934 = vmatpush1.msra.mxu0 0.0
      %1935 = vmatprep.subr.mxu0 0.0
      %1936 = vmatpush1.msra.mxu0 0.0
      %1937 = vmatprep.subr.mxu0 0.0
      %1938 = vmatpush1.msra.mxu0 0.0
      %1939 = vmatprep.subr.mxu0 0.0
      %1940 = vmatpush1.msra.mxu0 0.0
      %1941 = vmatprep.subr.mxu0 0.0
      %1942 = vmatpush1.msra.mxu0 0.0
      %1943 = vmatprep.subr.mxu0 0.0
      %1944 = vmatpush1.msra.mxu0 0.0
      %1945 = vmatprep.subr.mxu0 0.0
      %1946 = vmatpush1.msra.mxu0 0.0
      %1947 = vmatprep.subr.mxu0 0.0
      %1948 = vmatpush1.msra.mxu0 0.0
      %1949 = vmatprep.subr.mxu0 0.0
      %1950 = vmatpush1.msra.mxu0 0.0
      %1951 = vmatprep.subr.mxu0 0.0
      %1952 = vmatpush1.msra.mxu0 0.0
      %1953 = vmatprep.subr.mxu0 0.0
      %1954 = vmatpush1.msra.mxu0 0.0
      %1955 = vmatprep.subr.mxu0 0.0
      %1956 = vmatpush1.msra.mxu0 0.0
      %1957 = vmatprep.subr.mxu0 0.0
      %1958 = vmatpush1.msra.mxu0 0.0
      %1959 = vmatprep.subr.mxu0 0.0
      %1960 = vmatpush1.msra.mxu0 0.0
      %1961 = vmatprep.subr.mxu0 0.0
      %1962 = vmatpush1.msra.mxu0 0.0
      %1963 = vmatprep.subr.mxu0 0.0
      %1964 = vmatpush1.msra.mxu0 0.0
      %1965 = vmatprep.subr.mxu0 0.0
      %1966 = vmatpush1.msra.mxu0 0.0
      %1967 = vmatprep.mubr.f32.mxu0 0.0
      %1968 = vmatmul.mubr.f32.gmra.mrb[0].mxu0 %v1901
      %v1969 = vpop.f32.mrb[0].mxu0
      %v1970 = vadd.f32 0.0, %v1969
      %v1971 = vpop.f32.mrb[0].mxu0
      %1972 = vdwg.mxu0
      %1973 = vrot.lane.b32.xlu0 %v1306, 112
      %v1974 = vpop.permute.xlu0 %1973
      %1975 = vrot.lane.b32.xlu0 %v1298, 80
      %v1976 = vpop.permute.xlu0 %1975
      %v1977 = vsel %vm1315, %v1974, 0
      %v1979 = vsel %vm1315, %v1976, 0
      %1981 = vmatprep.subr.mxu0 0.0
      %1982 = vmatpush1.xpose.msra.mxu0 %v1979
      %1983 = vmatprep.subr.mxu0 0.0
      %1984 = vmatpush1.xpose.msra.mxu0 0.0
      %1985 = vmatprep.subr.mxu0 0.0
      %1986 = vmatpush1.xpose.msra.mxu0 0.0
      %1987 = vmatprep.subr.mxu0 0.0
      %1988 = vmatpush1.xpose.msra.mxu0 0.0
      %1989 = vmatprep.subr.mxu0 0.0
      %1990 = vmatpush1.xpose.msra.mxu0 0.0
      %1991 = vmatprep.subr.mxu0 0.0
      %1992 = vmatpush1.xpose.msra.mxu0 0.0
      %1993 = vmatprep.subr.mxu0 0.0
      %1994 = vmatpush1.xpose.msra.mxu0 0.0
      %1995 = vmatprep.subr.mxu0 0.0
      %1996 = vmatpush1.xpose.msra.mxu0 0.0
      %1997 = vmatprep.subr.mxu0 0.0
      %1998 = vmatpush1.xpose.msra.mxu0 0.0
      %1999 = vmatprep.subr.mxu0 0.0
      %2000 = vmatpush1.xpose.msra.mxu0 0.0
      %2001 = vmatprep.subr.mxu0 0.0
      %2002 = vmatpush1.xpose.msra.mxu0 0.0
      %2003 = vmatprep.subr.mxu0 0.0
      %2004 = vmatpush1.xpose.msra.mxu0 0.0
      %2005 = vmatprep.subr.mxu0 0.0
      %2006 = vmatpush1.xpose.msra.mxu0 0.0
      %2007 = vmatprep.subr.mxu0 0.0
      %2008 = vmatpush1.xpose.msra.mxu0 0.0
      %2009 = vmatprep.subr.mxu0 0.0
      %2010 = vmatpush1.xpose.msra.mxu0 0.0
      %2011 = vmatprep.subr.mxu0 0.0
      %2012 = vmatpush1.xpose.msra.mxu0 0.0
      %2013 = vmatprep.subr.mxu0 0.0
      %2014 = vmatpush1.xpose.msra.mxu0 0.0
      %2015 = vmatprep.subr.mxu0 0.0
      %2016 = vmatpush1.xpose.msra.mxu0 0.0
      %2017 = vmatprep.subr.mxu0 0.0
      %2018 = vmatpush1.xpose.msra.mxu0 0.0
      %2019 = vmatprep.subr.mxu0 0.0
      %2020 = vmatpush1.xpose.msra.mxu0 0.0
      %2021 = vmatprep.subr.mxu0 0.0
      %2022 = vmatpush1.xpose.msra.mxu0 0.0
      %2023 = vmatprep.subr.mxu0 0.0
      %2024 = vmatpush1.xpose.msra.mxu0 0.0
      %2025 = vmatprep.subr.mxu0 0.0
      %2026 = vmatpush1.xpose.msra.mxu0 0.0
      %2027 = vmatprep.subr.mxu0 0.0
      %2028 = vmatpush1.xpose.msra.mxu0 0.0
      %2029 = vmatprep.subr.mxu0 0.0
      %2030 = vmatpush1.xpose.msra.mxu0 0.0
      %2031 = vmatprep.subr.mxu0 0.0
      %2032 = vmatpush1.xpose.msra.mxu0 0.0
      %2033 = vmatprep.subr.mxu0 0.0
      %2034 = vmatpush1.xpose.msra.mxu0 0.0
      %2035 = vmatprep.subr.mxu0 0.0
      %2036 = vmatpush1.xpose.msra.mxu0 0.0
      %2037 = vmatprep.subr.mxu0 0.0
      %2038 = vmatpush1.xpose.msra.mxu0 0.0
      %2039 = vmatprep.subr.mxu0 0.0
      %2040 = vmatpush1.xpose.msra.mxu0 0.0
      %2041 = vmatprep.subr.mxu0 0.0
      %2042 = vmatpush1.xpose.msra.mxu0 0.0
      %2043 = vmatprep.subr.mxu0 0.0
      %2044 = vmatpush1.xpose.msra.mxu0 0.0
      %2045 = vmatprep.mubr.f32.mxu0 0.0
      %2046 = vmatmul.mubr.f32.gmra.mrb[0].mxu0 %v1977
      %v2047 = vpop.f32.mrb[0].mxu0
      %v2048 = vadd.f32 %v1311, %v2047
      %v2049 = vpop.f32.mrb[0].mxu0
      %2050 = vdwg.mxu0
      %2051 = vrot.lane.b32.xlu0 %v1307, 112
      %v2052 = vpop.permute.xlu0 %2051
      %2053 = vrot.lane.b32.xlu0 %v1303, 80
      %v2054 = vpop.permute.xlu0 %2053
      %v2055 = vsel %vm1315, %v2052, 0
      %v2057 = vsel %vm1315, %v2054, 0
      %2059 = vmatprep.subr.mxu0 0.0
      %2060 = vmatpush1.xpose.msra.mxu0 %v2057
      %2061 = vmatprep.subr.mxu0 0.0
      %2062 = vmatpush1.xpose.msra.mxu0 0.0
      %2063 = vmatprep.subr.mxu0 0.0
      %2064 = vmatpush1.xpose.msra.mxu0 0.0
      %2065 = vmatprep.subr.mxu0 0.0
      %2066 = vmatpush1.xpose.msra.mxu0 0.0
      %2067 = vmatprep.subr.mxu0 0.0
      %2068 = vmatpush1.xpose.msra.mxu0 0.0
      %2069 = vmatprep.subr.mxu0 0.0
      %2070 = vmatpush1.xpose.msra.mxu0 0.0
      %2071 = vmatprep.subr.mxu0 0.0
      %2072 = vmatpush1.xpose.msra.mxu0 0.0
      %2073 = vmatprep.subr.mxu0 0.0
      %2074 = vmatpush1.xpose.msra.mxu0 0.0
      %2075 = vmatprep.subr.mxu0 0.0
      %2076 = vmatpush1.xpose.msra.mxu0 0.0
      %2077 = vmatprep.subr.mxu0 0.0
      %2078 = vmatpush1.xpose.msra.mxu0 0.0
      %2079 = vmatprep.subr.mxu0 0.0
      %2080 = vmatpush1.xpose.msra.mxu0 0.0
      %2081 = vmatprep.subr.mxu0 0.0
      %2082 = vmatpush1.xpose.msra.mxu0 0.0
      %2083 = vmatprep.subr.mxu0 0.0
      %2084 = vmatpush1.xpose.msra.mxu0 0.0
      %2085 = vmatprep.subr.mxu0 0.0
      %2086 = vmatpush1.xpose.msra.mxu0 0.0
      %2087 = vmatprep.subr.mxu0 0.0
      %2088 = vmatpush1.xpose.msra.mxu0 0.0
      %2089 = vmatprep.subr.mxu0 0.0
      %2090 = vmatpush1.xpose.msra.mxu0 0.0
      %2091 = vmatprep.subr.mxu0 0.0
      %2092 = vmatpush1.xpose.msra.mxu0 0.0
      %2093 = vmatprep.subr.mxu0 0.0
      %2094 = vmatpush1.xpose.msra.mxu0 0.0
      %2095 = vmatprep.subr.mxu0 0.0
      %2096 = vmatpush1.xpose.msra.mxu0 0.0
      %2097 = vmatprep.subr.mxu0 0.0
      %2098 = vmatpush1.xpose.msra.mxu0 0.0
      %2099 = vmatprep.subr.mxu0 0.0
      %2100 = vmatpush1.xpose.msra.mxu0 0.0
      %2101 = vmatprep.subr.mxu0 0.0
      %2102 = vmatpush1.xpose.msra.mxu0 0.0
      %2103 = vmatprep.subr.mxu0 0.0
      %2104 = vmatpush1.xpose.msra.mxu0 0.0
      %2105 = vmatprep.subr.mxu0 0.0
      %2106 = vmatpush1.xpose.msra.mxu0 0.0
      %2107 = vmatprep.subr.mxu0 0.0
      %2108 = vmatpush1.xpose.msra.mxu0 0.0
      %2109 = vmatprep.subr.mxu0 0.0
      %2110 = vmatpush1.xpose.msra.mxu0 0.0
      %2111 = vmatprep.subr.mxu0 0.0
      %2112 = vmatpush1.xpose.msra.mxu0 0.0
      %2113 = vmatprep.subr.mxu0 0.0
      %2114 = vmatpush1.xpose.msra.mxu0 0.0
      %2115 = vmatprep.subr.mxu0 0.0
      %2116 = vmatpush1.xpose.msra.mxu0 0.0
      %2117 = vmatprep.subr.mxu0 0.0
      %2118 = vmatpush1.xpose.msra.mxu0 0.0
      %2119 = vmatprep.subr.mxu0 0.0
      %2120 = vmatpush1.xpose.msra.mxu0 0.0
      %2121 = vmatprep.subr.mxu0 0.0
      %2122 = vmatpush1.xpose.msra.mxu0 0.0
      %2123 = vmatprep.mubr.f32.mxu0 0.0
      %2124 = vmatmul.mubr.f32.gmra.mrb[0].mxu0 %v2055
      %v2125 = vpop.f32.mrb[0].mxu0
      %v2126 = vadd.f32 %v1311, %v2125
      %v2127 = vpop.f32.mrb[0].mxu0
      %2128 = vdwg.mxu0
      %v2129 = vsel %vm1315, %v2048, -inf
      %2130 = vmax.xlane.f32.xlu0 %v2129
      %v2131 = vpop.xlane.xlu0 %2130
      %v2132 = vsel %vm1315, %v2126, -inf
      %2133 = vmax.xlane.f32.xlu0 %v2132
      %v2134 = vpop.xlane.xlu0 %2133
      %v2135 = vsub.f32 %v2048, %v2131
      %v2136 = vsub.f32 %v2126, %v2134
      %v2137 = vmul.f32 %v2135, 1.442695
      %v2138 = vpow.pop %v2137
      %v2139 = vmul.f32 %v2136, 1.442695
      %v2140 = vpow.pop %v2139
      %v2141 = vsel %vm1315, %v2138, 0.0
      %2142 = vadd.xlane.f32.xlu0 %v2141
      %v2143 = vpop.xlane.xlu0 %2142
      %v2144 = vsel %vm1315, %v2140, 0.0
      %2145 = vadd.xlane.f32.xlu0 %v2144
      %v2146 = vpop.xlane.xlu0 %2145
      %v2147 = vrcp.pop %v2143
      %v2148 = vrcp.pop %v2146
      %v2149 = vmul.f32 %v2138, %v2147
      %v2150 = vmul.f32 %v2140, %v2148
      %2151 = vrot.lane.b32.xlu0 %v1298, 48
      %v2152 = vpop.permute.xlu0 %2151
      %v2155 = vsel %vm1315, %v2149, 0
      %2157 = vmatprep.subr.mxu0 0.0
      %2158 = vmatpush1.msra.mxu0 %v2152
      %2159 = vmatprep.subr.mxu0 0.0
      %2160 = vmatpush1.msra.mxu0 0.0
      %2161 = vmatprep.subr.mxu0 0.0
      %2162 = vmatpush1.msra.mxu0 0.0
      %2163 = vmatprep.subr.mxu0 0.0
      %2164 = vmatpush1.msra.mxu0 0.0
      %2165 = vmatprep.subr.mxu0 0.0
      %2166 = vmatpush1.msra.mxu0 0.0
      %2167 = vmatprep.subr.mxu0 0.0
      %2168 = vmatpush1.msra.mxu0 0.0
      %2169 = vmatprep.subr.mxu0 0.0
      %2170 = vmatpush1.msra.mxu0 0.0
      %2171 = vmatprep.subr.mxu0 0.0
      %2172 = vmatpush1.msra.mxu0 0.0
      %2173 = vmatprep.subr.mxu0 0.0
      %2174 = vmatpush1.msra.mxu0 0.0
      %2175 = vmatprep.subr.mxu0 0.0
      %2176 = vmatpush1.msra.mxu0 0.0
      %2177 = vmatprep.subr.mxu0 0.0
      %2178 = vmatpush1.msra.mxu0 0.0
      %2179 = vmatprep.subr.mxu0 0.0
      %2180 = vmatpush1.msra.mxu0 0.0
      %2181 = vmatprep.subr.mxu0 0.0
      %2182 = vmatpush1.msra.mxu0 0.0
      %2183 = vmatprep.subr.mxu0 0.0
      %2184 = vmatpush1.msra.mxu0 0.0
      %2185 = vmatprep.subr.mxu0 0.0
      %2186 = vmatpush1.msra.mxu0 0.0
      %2187 = vmatprep.subr.mxu0 0.0
      %2188 = vmatpush1.msra.mxu0 0.0
      %2189 = vmatprep.subr.mxu0 0.0
      %2190 = vmatpush1.msra.mxu0 0.0
      %2191 = vmatprep.subr.mxu0 0.0
      %2192 = vmatpush1.msra.mxu0 0.0
      %2193 = vmatprep.subr.mxu0 0.0
      %2194 = vmatpush1.msra.mxu0 0.0
      %2195 = vmatprep.subr.mxu0 0.0
      %2196 = vmatpush1.msra.mxu0 0.0
      %2197 = vmatprep.subr.mxu0 0.0
      %2198 = vmatpush1.msra.mxu0 0.0
      %2199 = vmatprep.subr.mxu0 0.0
      %2200 = vmatpush1.msra.mxu0 0.0
      %2201 = vmatprep.subr.mxu0 0.0
      %2202 = vmatpush1.msra.mxu0 0.0
      %2203 = vmatprep.subr.mxu0 0.0
      %2204 = vmatpush1.msra.mxu0 0.0
      %2205 = vmatprep.subr.mxu0 0.0
      %2206 = vmatpush1.msra.mxu0 0.0
      %2207 = vmatprep.subr.mxu0 0.0
      %2208 = vmatpush1.msra.mxu0 0.0
      %2209 = vmatprep.subr.mxu0 0.0
      %2210 = vmatpush1.msra.mxu0 0.0
      %2211 = vmatprep.subr.mxu0 0.0
      %2212 = vmatpush1.msra.mxu0 0.0
      %2213 = vmatprep.subr.mxu0 0.0
      %2214 = vmatpush1.msra.mxu0 0.0
      %2215 = vmatprep.subr.mxu0 0.0
      %2216 = vmatpush1.msra.mxu0 0.0
      %2217 = vmatprep.subr.mxu0 0.0
      %2218 = vmatpush1.msra.mxu0 0.0
      %2219 = vmatprep.subr.mxu0 0.0
      %2220 = vmatpush1.msra.mxu0 0.0
      %2221 = vmatprep.mubr.f32.mxu0 0.0
      %2222 = vmatmul.mubr.f32.gmra.mrb[0].mxu0 %v2155
      %v2223 = vpop.f32.mrb[0].mxu0
      %v2224 = vadd.f32 0.0, %v2223
      %v2225 = vpop.f32.mrb[0].mxu0
      %2226 = vdwg.mxu0
      %2227 = vrot.lane.b32.xlu0 %v1303, 48
      %v2228 = vpop.permute.xlu0 %2227
      %v2231 = vsel %vm1315, %v2150, 0
      %2233 = vmatprep.subr.mxu0 0.0
      %2234 = vmatpush1.msra.mxu0 %v2228
      %2235 = vmatprep.subr.mxu0 0.0
      %2236 = vmatpush1.msra.mxu0 0.0
      %2237 = vmatprep.subr.mxu0 0.0
      %2238 = vmatpush1.msra.mxu0 0.0
      %2239 = vmatprep.subr.mxu0 0.0
      %2240 = vmatpush1.msra.mxu0 0.0
      %2241 = vmatprep.subr.mxu0 0.0
      %2242 = vmatpush1.msra.mxu0 0.0
      %2243 = vmatprep.subr.mxu0 0.0
      %2244 = vmatpush1.msra.mxu0 0.0
      %2245 = vmatprep.subr.mxu0 0.0
      %2246 = vmatpush1.msra.mxu0 0.0
      %2247 = vmatprep.subr.mxu0 0.0
      %2248 = vmatpush1.msra.mxu0 0.0
      %2249 = vmatprep.subr.mxu0 0.0
      %2250 = vmatpush1.msra.mxu0 0.0
      %2251 = vmatprep.subr.mxu0 0.0
      %2252 = vmatpush1.msra.mxu0 0.0
      %2253 = vmatprep.subr.mxu0 0.0
      %2254 = vmatpush1.msra.mxu0 0.0
      %2255 = vmatprep.subr.mxu0 0.0
      %2256 = vmatpush1.msra.mxu0 0.0
      %2257 = vmatprep.subr.mxu0 0.0
      %2258 = vmatpush1.msra.mxu0 0.0
      %2259 = vmatprep.subr.mxu0 0.0
      %2260 = vmatpush1.msra.mxu0 0.0
      %2261 = vmatprep.subr.mxu0 0.0
      %2262 = vmatpush1.msra.mxu0 0.0
      %2263 = vmatprep.subr.mxu0 0.0
      %2264 = vmatpush1.msra.mxu0 0.0
      %2265 = vmatprep.subr.mxu0 0.0
      %2266 = vmatpush1.msra.mxu0 0.0
      %2267 = vmatprep.subr.mxu0 0.0
      %2268 = vmatpush1.msra.mxu0 0.0
      %2269 = vmatprep.subr.mxu0 0.0
      %2270 = vmatpush1.msra.mxu0 0.0
      %2271 = vmatprep.subr.mxu0 0.0
      %2272 = vmatpush1.msra.mxu0 0.0
      %2273 = vmatprep.subr.mxu0 0.0
      %2274 = vmatpush1.msra.mxu0 0.0
      %2275 = vmatprep.subr.mxu0 0.0
      %2276 = vmatpush1.msra.mxu0 0.0
      %2277 = vmatprep.subr.mxu0 0.0
      %2278 = vmatpush1.msra.mxu0 0.0
      %2279 = vmatprep.subr.mxu0 0.0
      %2280 = vmatpush1.msra.mxu0 0.0
      %2281 = vmatprep.subr.mxu0 0.0
      %2282 = vmatpush1.msra.mxu0 0.0
      %2283 = vmatprep.subr.mxu0 0.0
      %2284 = vmatpush1.msra.mxu0 0.0
      %2285 = vmatprep.subr.mxu0 0.0
      %2286 = vmatpush1.msra.mxu0 0.0
      %2287 = vmatprep.subr.mxu0 0.0
      %2288 = vmatpush1.msra.mxu0 0.0
      %2289 = vmatprep.subr.mxu0 0.0
      %2290 = vmatpush1.msra.mxu0 0.0
      %2291 = vmatprep.subr.mxu0 0.0
      %2292 = vmatpush1.msra.mxu0 0.0
      %2293 = vmatprep.subr.mxu0 0.0
      %2294 = vmatpush1.msra.mxu0 0.0
      %2295 = vmatprep.subr.mxu0 0.0
      %2296 = vmatpush1.msra.mxu0 0.0
      %2297 = vmatprep.mubr.f32.mxu0 0.0
      %2298 = vmatmul.mubr.f32.gmra.mrb[0].mxu0 %v2231
      %v2299 = vpop.f32.mrb[0].mxu0
      %v2300 = vadd.f32 0.0, %v2299
      %v2301 = vpop.f32.mrb[0].mxu0
      %2302 = vdwg.mxu0
      %2303 = vrot.lane.b32.xlu0 %v1306, 104
      %v2304 = vpop.permute.xlu0 %2303
      %2305 = vrot.lane.b32.xlu0 %v1298, 72
      %v2306 = vpop.permute.xlu0 %2305
      %v2307 = vsel %vm1315, %v2304, 0
      %v2309 = vsel %vm1315, %v2306, 0
      %2311 = vmatprep.subr.mxu0 0.0
      %2312 = vmatpush1.xpose.msra.mxu0 %v2309
      %2313 = vmatprep.subr.mxu0 0.0
      %2314 = vmatpush1.xpose.msra.mxu0 0.0
      %2315 = vmatprep.subr.mxu0 0.0
      %2316 = vmatpush1.xpose.msra.mxu0 0.0
      %2317 = vmatprep.subr.mxu0 0.0
      %2318 = vmatpush1.xpose.msra.mxu0 0.0
      %2319 = vmatprep.subr.mxu0 0.0
      %2320 = vmatpush1.xpose.msra.mxu0 0.0
      %2321 = vmatprep.subr.mxu0 0.0
      %2322 = vmatpush1.xpose.msra.mxu0 0.0
      %2323 = vmatprep.subr.mxu0 0.0
      %2324 = vmatpush1.xpose.msra.mxu0 0.0
      %2325 = vmatprep.subr.mxu0 0.0
      %2326 = vmatpush1.xpose.msra.mxu0 0.0
      %2327 = vmatprep.subr.mxu0 0.0
      %2328 = vmatpush1.xpose.msra.mxu0 0.0
      %2329 = vmatprep.subr.mxu0 0.0
      %2330 = vmatpush1.xpose.msra.mxu0 0.0
      %2331 = vmatprep.subr.mxu0 0.0
      %2332 = vmatpush1.xpose.msra.mxu0 0.0
      %2333 = vmatprep.subr.mxu0 0.0
      %2334 = vmatpush1.xpose.msra.mxu0 0.0
      %2335 = vmatprep.subr.mxu0 0.0
      %2336 = vmatpush1.xpose.msra.mxu0 0.0
      %2337 = vmatprep.subr.mxu0 0.0
      %2338 = vmatpush1.xpose.msra.mxu0 0.0
      %2339 = vmatprep.subr.mxu0 0.0
      %2340 = vmatpush1.xpose.msra.mxu0 0.0
      %2341 = vmatprep.subr.mxu0 0.0
      %2342 = vmatpush1.xpose.msra.mxu0 0.0
      %2343 = vmatprep.subr.mxu0 0.0
      %2344 = vmatpush1.xpose.msra.mxu0 0.0
      %2345 = vmatprep.subr.mxu0 0.0
      %2346 = vmatpush1.xpose.msra.mxu0 0.0
      %2347 = vmatprep.subr.mxu0 0.0
      %2348 = vmatpush1.xpose.msra.mxu0 0.0
      %2349 = vmatprep.subr.mxu0 0.0
      %2350 = vmatpush1.xpose.msra.mxu0 0.0
      %2351 = vmatprep.subr.mxu0 0.0
      %2352 = vmatpush1.xpose.msra.mxu0 0.0
      %2353 = vmatprep.subr.mxu0 0.0
      %2354 = vmatpush1.xpose.msra.mxu0 0.0
      %2355 = vmatprep.subr.mxu0 0.0
      %2356 = vmatpush1.xpose.msra.mxu0 0.0
      %2357 = vmatprep.subr.mxu0 0.0
      %2358 = vmatpush1.xpose.msra.mxu0 0.0
      %2359 = vmatprep.subr.mxu0 0.0
      %2360 = vmatpush1.xpose.msra.mxu0 0.0
      %2361 = vmatprep.subr.mxu0 0.0
      %2362 = vmatpush1.xpose.msra.mxu0 0.0
      %2363 = vmatprep.subr.mxu0 0.0
      %2364 = vmatpush1.xpose.msra.mxu0 0.0
      %2365 = vmatprep.subr.mxu0 0.0
      %2366 = vmatpush1.xpose.msra.mxu0 0.0
      %2367 = vmatprep.subr.mxu0 0.0
      %2368 = vmatpush1.xpose.msra.mxu0 0.0
      %2369 = vmatprep.subr.mxu0 0.0
      %2370 = vmatpush1.xpose.msra.mxu0 0.0
      %2371 = vmatprep.subr.mxu0 0.0
      %2372 = vmatpush1.xpose.msra.mxu0 0.0
      %2373 = vmatprep.subr.mxu0 0.0
      %2374 = vmatpush1.xpose.msra.mxu0 0.0
      %2375 = vmatprep.mubr.f32.mxu0 0.0
      %2376 = vmatmul.mubr.f32.gmra.mrb[0].mxu0 %v2307
      %v2377 = vpop.f32.mrb[0].mxu0
      %v2378 = vadd.f32 %v1311, %v2377
      %v2379 = vpop.f32.mrb[0].mxu0
      %2380 = vdwg.mxu0
      %2381 = vrot.lane.b32.xlu0 %v1307, 104
      %v2382 = vpop.permute.xlu0 %2381
      %2383 = vrot.lane.b32.xlu0 %v1303, 72
      %v2384 = vpop.permute.xlu0 %2383
      %v2385 = vsel %vm1315, %v2382, 0
      %v2387 = vsel %vm1315, %v2384, 0
      %2389 = vmatprep.subr.mxu0 0.0
      %2390 = vmatpush1.xpose.msra.mxu0 %v2387
      %2391 = vmatprep.subr.mxu0 0.0
      %2392 = vmatpush1.xpose.msra.mxu0 0.0
      %2393 = vmatprep.subr.mxu0 0.0
      %2394 = vmatpush1.xpose.msra.mxu0 0.0
      %2395 = vmatprep.subr.mxu0 0.0
      %2396 = vmatpush1.xpose.msra.mxu0 0.0
      %2397 = vmatprep.subr.mxu0 0.0
      %2398 = vmatpush1.xpose.msra.mxu0 0.0
      %2399 = vmatprep.subr.mxu0 0.0
      %2400 = vmatpush1.xpose.msra.mxu0 0.0
      %2401 = vmatprep.subr.mxu0 0.0
      %2402 = vmatpush1.xpose.msra.mxu0 0.0
      %2403 = vmatprep.subr.mxu0 0.0
      %2404 = vmatpush1.xpose.msra.mxu0 0.0
      %2405 = vmatprep.subr.mxu0 0.0
      %2406 = vmatpush1.xpose.msra.mxu0 0.0
      %2407 = vmatprep.subr.mxu0 0.0
      %2408 = vmatpush1.xpose.msra.mxu0 0.0
      %2409 = vmatprep.subr.mxu0 0.0
      %2410 = vmatpush1.xpose.msra.mxu0 0.0
      %2411 = vmatprep.subr.mxu0 0.0
      %2412 = vmatpush1.xpose.msra.mxu0 0.0
      %2413 = vmatprep.subr.mxu0 0.0
      %2414 = vmatpush1.xpose.msra.mxu0 0.0
      %2415 = vmatprep.subr.mxu0 0.0
      %2416 = vmatpush1.xpose.msra.mxu0 0.0
      %2417 = vmatprep.subr.mxu0 0.0
      %2418 = vmatpush1.xpose.msra.mxu0 0.0
      %2419 = vmatprep.subr.mxu0 0.0
      %2420 = vmatpush1.xpose.msra.mxu0 0.0
      %2421 = vmatprep.subr.mxu0 0.0
      %2422 = vmatpush1.xpose.msra.mxu0 0.0
      %2423 = vmatprep.subr.mxu0 0.0
      %2424 = vmatpush1.xpose.msra.mxu0 0.0
      %2425 = vmatprep.subr.mxu0 0.0
      %2426 = vmatpush1.xpose.msra.mxu0 0.0
      %2427 = vmatprep.subr.mxu0 0.0
      %2428 = vmatpush1.xpose.msra.mxu0 0.0
      %2429 = vmatprep.subr.mxu0 0.0
      %2430 = vmatpush1.xpose.msra.mxu0 0.0
      %2431 = vmatprep.subr.mxu0 0.0
      %2432 = vmatpush1.xpose.msra.mxu0 0.0
      %2433 = vmatprep.subr.mxu0 0.0
      %2434 = vmatpush1.xpose.msra.mxu0 0.0
      %2435 = vmatprep.subr.mxu0 0.0
      %2436 = vmatpush1.xpose.msra.mxu0 0.0
      %2437 = vmatprep.subr.mxu0 0.0
      %2438 = vmatpush1.xpose.msra.mxu0 0.0
      %2439 = vmatprep.subr.mxu0 0.0
      %2440 = vmatpush1.xpose.msra.mxu0 0.0
      %2441 = vmatprep.subr.mxu0 0.0
      %2442 = vmatpush1.xpose.msra.mxu0 0.0
      %2443 = vmatprep.subr.mxu0 0.0
      %2444 = vmatpush1.xpose.msra.mxu0 0.0
      %2445 = vmatprep.subr.mxu0 0.0
      %2446 = vmatpush1.xpose.msra.mxu0 0.0
      %2447 = vmatprep.subr.mxu0 0.0
      %2448 = vmatpush1.xpose.msra.mxu0 0.0
      %2449 = vmatprep.subr.mxu0 0.0
      %2450 = vmatpush1.xpose.msra.mxu0 0.0
      %2451 = vmatprep.subr.mxu0 0.0
      %2452 = vmatpush1.xpose.msra.mxu0 0.0
      %2453 = vmatprep.mubr.f32.mxu0 0.0
      %2454 = vmatmul.mubr.f32.gmra.mrb[0].mxu0 %v2385
      %v2455 = vpop.f32.mrb[0].mxu0
      %v2456 = vadd.f32 %v1311, %v2455
      %v2457 = vpop.f32.mrb[0].mxu0
      %2458 = vdwg.mxu0
      %v2459 = vsel %vm1315, %v2378, -inf
      %2460 = vmax.xlane.f32.xlu0 %v2459
      %v2461 = vpop.xlane.xlu0 %2460
      %v2462 = vsel %vm1315, %v2456, -inf
      %2463 = vmax.xlane.f32.xlu0 %v2462
      %v2464 = vpop.xlane.xlu0 %2463
      %v2465 = vsub.f32 %v2378, %v2461
      %v2466 = vsub.f32 %v2456, %v2464
      %v2467 = vmul.f32 %v2465, 1.442695
      %v2468 = vpow.pop %v2467
      %v2469 = vmul.f32 %v2466, 1.442695
      %v2470 = vpow.pop %v2469
      %v2471 = vsel %vm1315, %v2468, 0.0
      %2472 = vadd.xlane.f32.xlu0 %v2471
      %v2473 = vpop.xlane.xlu0 %2472
      %v2474 = vsel %vm1315, %v2470, 0.0
      %2475 = vadd.xlane.f32.xlu0 %v2474
      %v2476 = vpop.xlane.xlu0 %2475
      %v2477 = vrcp.pop %v2473
      %v2478 = vrcp.pop %v2476
      %v2479 = vmul.f32 %v2468, %v2477
      %v2480 = vmul.f32 %v2470, %v2478
      %2481 = vrot.lane.b32.xlu0 %v1298, 40
      %v2482 = vpop.permute.xlu0 %2481
      %v2485 = vsel %vm1315, %v2479, 0
      %2487 = vmatprep.subr.mxu0 0.0
      %2488 = vmatpush1.msra.mxu0 %v2482
      %2489 = vmatprep.subr.mxu0 0.0
      %2490 = vmatpush1.msra.mxu0 0.0
      %2491 = vmatprep.subr.mxu0 0.0
      %2492 = vmatpush1.msra.mxu0 0.0
      %2493 = vmatprep.subr.mxu0 0.0
      %2494 = vmatpush1.msra.mxu0 0.0
      %2495 = vmatprep.subr.mxu0 0.0
      %2496 = vmatpush1.msra.mxu0 0.0
      %2497 = vmatprep.subr.mxu0 0.0
      %2498 = vmatpush1.msra.mxu0 0.0
      %2499 = vmatprep.subr.mxu0 0.0
      %2500 = vmatpush1.msra.mxu0 0.0
      %2501 = vmatprep.subr.mxu0 0.0
      %2502 = vmatpush1.msra.mxu0 0.0
      %2503 = vmatprep.subr.mxu0 0.0
      %2504 = vmatpush1.msra.mxu0 0.0
      %2505 = vmatprep.subr.mxu0 0.0
      %2506 = vmatpush1.msra.mxu0 0.0
      %2507 = vmatprep.subr.mxu0 0.0
      %2508 = vmatpush1.msra.mxu0 0.0
      %2509 = vmatprep.subr.mxu0 0.0
      %2510 = vmatpush1.msra.mxu0 0.0
      %2511 = vmatprep.subr.mxu0 0.0
      %2512 = vmatpush1.msra.mxu0 0.0
      %2513 = vmatprep.subr.mxu0 0.0
      %2514 = vmatpush1.msra.mxu0 0.0
      %2515 = vmatprep.subr.mxu0 0.0
      %2516 = vmatpush1.msra.mxu0 0.0
      %2517 = vmatprep.subr.mxu0 0.0
      %2518 = vmatpush1.msra.mxu0 0.0
      %2519 = vmatprep.subr.mxu0 0.0
      %2520 = vmatpush1.msra.mxu0 0.0
      %2521 = vmatprep.subr.mxu0 0.0
      %2522 = vmatpush1.msra.mxu0 0.0
      %2523 = vmatprep.subr.mxu0 0.0
      %2524 = vmatpush1.msra.mxu0 0.0
      %2525 = vmatprep.subr.mxu0 0.0
      %2526 = vmatpush1.msra.mxu0 0.0
      %2527 = vmatprep.subr.mxu0 0.0
      %2528 = vmatpush1.msra.mxu0 0.0
      %2529 = vmatprep.subr.mxu0 0.0
      %2530 = vmatpush1.msra.mxu0 0.0
      %2531 = vmatprep.subr.mxu0 0.0
      %2532 = vmatpush1.msra.mxu0 0.0
      %2533 = vmatprep.subr.mxu0 0.0
      %2534 = vmatpush1.msra.mxu0 0.0
      %2535 = vmatprep.subr.mxu0 0.0
      %2536 = vmatpush1.msra.mxu0 0.0
      %2537 = vmatprep.subr.mxu0 0.0
      %2538 = vmatpush1.msra.mxu0 0.0
      %2539 = vmatprep.subr.mxu0 0.0
      %2540 = vmatpush1.msra.mxu0 0.0
      %2541 = vmatprep.subr.mxu0 0.0
      %2542 = vmatpush1.msra.mxu0 0.0
      %2543 = vmatprep.subr.mxu0 0.0
      %2544 = vmatpush1.msra.mxu0 0.0
      %2545 = vmatprep.subr.mxu0 0.0
      %2546 = vmatpush1.msra.mxu0 0.0
      %2547 = vmatprep.subr.mxu0 0.0
      %2548 = vmatpush1.msra.mxu0 0.0
      %2549 = vmatprep.subr.mxu0 0.0
      %2550 = vmatpush1.msra.mxu0 0.0
      %2551 = vmatprep.mubr.f32.mxu0 0.0
      %2552 = vmatmul.mubr.f32.gmra.mrb[0].mxu0 %v2485
      %v2553 = vpop.f32.mrb[0].mxu0
      %v2554 = vadd.f32 0.0, %v2553
      %v2555 = vpop.f32.mrb[0].mxu0
      %2556 = vdwg.mxu0
      %2557 = vrot.lane.b32.xlu0 %v1303, 40
      %v2558 = vpop.permute.xlu0 %2557
      %v2561 = vsel %vm1315, %v2480, 0
      %2563 = vmatprep.subr.mxu0 0.0
      %2564 = vmatpush1.msra.mxu0 %v2558
      %2565 = vmatprep.subr.mxu0 0.0
      %2566 = vmatpush1.msra.mxu0 0.0
      %2567 = vmatprep.subr.mxu0 0.0
      %2568 = vmatpush1.msra.mxu0 0.0
      %2569 = vmatprep.subr.mxu0 0.0
      %2570 = vmatpush1.msra.mxu0 0.0
      %2571 = vmatprep.subr.mxu0 0.0
      %2572 = vmatpush1.msra.mxu0 0.0
      %2573 = vmatprep.subr.mxu0 0.0
      %2574 = vmatpush1.msra.mxu0 0.0
      %2575 = vmatprep.subr.mxu0 0.0
      %2576 = vmatpush1.msra.mxu0 0.0
      %2577 = vmatprep.subr.mxu0 0.0
      %2578 = vmatpush1.msra.mxu0 0.0
      %2579 = vmatprep.subr.mxu0 0.0
      %2580 = vmatpush1.msra.mxu0 0.0
      %2581 = vmatprep.subr.mxu0 0.0
      %2582 = vmatpush1.msra.mxu0 0.0
      %2583 = vmatprep.subr.mxu0 0.0
      %2584 = vmatpush1.msra.mxu0 0.0
      %2585 = vmatprep.subr.mxu0 0.0
      %2586 = vmatpush1.msra.mxu0 0.0
      %2587 = vmatprep.subr.mxu0 0.0
      %2588 = vmatpush1.msra.mxu0 0.0
      %2589 = vmatprep.subr.mxu0 0.0
      %2590 = vmatpush1.msra.mxu0 0.0
      %2591 = vmatprep.subr.mxu0 0.0
      %2592 = vmatpush1.msra.mxu0 0.0
      %2593 = vmatprep.subr.mxu0 0.0
      %2594 = vmatpush1.msra.mxu0 0.0
      %2595 = vmatprep.subr.mxu0 0.0
      %2596 = vmatpush1.msra.mxu0 0.0
      %2597 = vmatprep.subr.mxu0 0.0
      %2598 = vmatpush1.msra.mxu0 0.0
      %2599 = vmatprep.subr.mxu0 0.0
      %2600 = vmatpush1.msra.mxu0 0.0
      %2601 = vmatprep.subr.mxu0 0.0
      %2602 = vmatpush1.msra.mxu0 0.0
      %2603 = vmatprep.subr.mxu0 0.0
      %2604 = vmatpush1.msra.mxu0 0.0
      %2605 = vmatprep.subr.mxu0 0.0
      %2606 = vmatpush1.msra.mxu0 0.0
      %2607 = vmatprep.subr.mxu0 0.0
      %2608 = vmatpush1.msra.mxu0 0.0
      %2609 = vmatprep.subr.mxu0 0.0
      %2610 = vmatpush1.msra.mxu0 0.0
      %2611 = vmatprep.subr.mxu0 0.0
      %2612 = vmatpush1.msra.mxu0 0.0
      %2613 = vmatprep.subr.mxu0 0.0
      %2614 = vmatpush1.msra.mxu0 0.0
      %2615 = vmatprep.subr.mxu0 0.0
      %2616 = vmatpush1.msra.mxu0 0.0
      %2617 = vmatprep.subr.mxu0 0.0
      %2618 = vmatpush1.msra.mxu0 0.0
      %2619 = vmatprep.subr.mxu0 0.0
      %2620 = vmatpush1.msra.mxu0 0.0
      %2621 = vmatprep.subr.mxu0 0.0
      %2622 = vmatpush1.msra.mxu0 0.0
      %2623 = vmatprep.subr.mxu0 0.0
      %2624 = vmatpush1.msra.mxu0 0.0
      %2625 = vmatprep.subr.mxu0 0.0
      %2626 = vmatpush1.msra.mxu0 0.0
      %2627 = vmatprep.mubr.f32.mxu0 0.0
      %2628 = vmatmul.mubr.f32.gmra.mrb[0].mxu0 %v2561
      %v2629 = vpop.f32.mrb[0].mxu0
      %v2630 = vadd.f32 0.0, %v2629
      %v2631 = vpop.f32.mrb[0].mxu0
      %2632 = vdwg.mxu0
      %2635 = vrot.lane.b32.xlu0 %v1894, 8
      %v2636 = vpop.permute.xlu0 %2635
      %2637 = vrot.lane.b32.xlu0 %v1970, 8
      %v2638 = vpop.permute.xlu0 %2637
      %2643 = vrot.lane.b32.xlu0 %v2224, 16
      %v2644 = vpop.permute.xlu0 %2643
      %2645 = vrot.lane.b32.xlu0 %v2300, 16
      %v2646 = vpop.permute.xlu0 %2645
      %2651 = vrot.lane.b32.xlu0 %v2554, 24
      %v2652 = vpop.permute.xlu0 %2651
      %2653 = vrot.lane.b32.xlu0 %v2630, 24
      %v2654 = vpop.permute.xlu0 %2653
      %v2657 = vsel %vm1315, %v1564, %v2636
      %v2658 = vsel %vm1315, %v1640, %v2638
      %vm2659 = vcmask 130048
      %v2660 = vsel %vm2659, %v2657, %v2644
      %v2661 = vsel %vm2659, %v2658, %v2646
      %vm2662 = vcmask 195584
      %v2663 = vsel %vm2662, %v2660, %v2652
      %v2664 = vsel %vm2662, %v2661, %v2654
      %v2665 = vld [vmem:[%s810] sm:$0xff]
      %v2666 = vld [vmem:[%s810 + $0x8] sm:$0xff]
      %v2667 = vld [vmem:[%s810 + $0x10] sm:$0xff]
      %v2668 = vld [vmem:[%s810 + $0x18] sm:$0xff]
      %v2669 = vld [vmem:[%s813] sm:$0x1]
      %v2671 = vlaneseq
      %v2672 = vshrl.u32 %v2671, 7
      %v2673 = vsub.s32 0, %v2672
      %v2674 = vrot.slane %v2669, %v2673
      %v2677 = vsel %vm1170, %v2663, 0
      %v2680 = vsel %vm1170, %v2664, 0
      %2682 = vmatprep.subr.mxu0 0.0
      %2683 = vmatpush1.msra.mxu0 %v2665
      %2684 = vmatprep.subr.mxu0 0.0
      %2685 = vmatpush1.msra.mxu0 %v2666
      %2686 = vmatprep.subr.mxu0 0.0
      %2687 = vmatpush1.msra.mxu0 %v2667
      %2688 = vmatprep.subr.mxu0 0.0
      %2689 = vmatpush1.msra.mxu0 %v2668
      %2690 = vmatprep.subr.mxu0 0.0
      %2691 = vmatpush1.msra.mxu0 0.0
      %2692 = vmatprep.subr.mxu0 0.0
      %2693 = vmatpush1.msra.mxu0 0.0
      %2694 = vmatprep.subr.mxu0 0.0
      %2695 = vmatpush1.msra.mxu0 0.0
      %2696 = vmatprep.subr.mxu0 0.0
      %2697 = vmatpush1.msra.mxu0 0.0
      %2698 = vmatprep.subr.mxu0 0.0
      %2699 = vmatpush1.msra.mxu0 0.0
      %2700 = vmatprep.subr.mxu0 0.0
      %2701 = vmatpush1.msra.mxu0 0.0
      %2702 = vmatprep.subr.mxu0 0.0
      %2703 = vmatpush1.msra.mxu0 0.0
      %2704 = vmatprep.subr.mxu0 0.0
      %2705 = vmatpush1.msra.mxu0 0.0
      %2706 = vmatprep.subr.mxu0 0.0
      %2707 = vmatpush1.msra.mxu0 0.0
      %2708 = vmatprep.subr.mxu0 0.0
      %2709 = vmatpush1.msra.mxu0 0.0
      %2710 = vmatprep.subr.mxu0 0.0
      %2711 = vmatpush1.msra.mxu0 0.0
      %2712 = vmatprep.subr.mxu0 0.0
      %2713 = vmatpush1.msra.mxu0 0.0
      %2714 = vmatprep.subr.mxu0 0.0
      %2715 = vmatpush1.msra.mxu0 0.0
      %2716 = vmatprep.subr.mxu0 0.0
      %2717 = vmatpush1.msra.mxu0 0.0
      %2718 = vmatprep.subr.mxu0 0.0
      %2719 = vmatpush1.msra.mxu0 0.0
      %2720 = vmatprep.subr.mxu0 0.0
      %2721 = vmatpush1.msra.mxu0 0.0
      %2722 = vmatprep.subr.mxu0 0.0
      %2723 = vmatpush1.msra.mxu0 0.0
      %2724 = vmatprep.subr.mxu0 0.0
      %2725 = vmatpush1.msra.mxu0 0.0
      %2726 = vmatprep.subr.mxu0 0.0
      %2727 = vmatpush1.msra.mxu0 0.0
      %2728 = vmatprep.subr.mxu0 0.0
      %2729 = vmatpush1.msra.mxu0 0.0
      %2730 = vmatprep.subr.mxu0 0.0
      %2731 = vmatpush1.msra.mxu0 0.0
      %2732 = vmatprep.subr.mxu0 0.0
      %2733 = vmatpush1.msra.mxu0 0.0
      %2734 = vmatprep.subr.mxu0 0.0
      %2735 = vmatpush1.msra.mxu0 0.0
      %2736 = vmatprep.subr.mxu0 0.0
      %2737 = vmatpush1.msra.mxu0 0.0
      %2738 = vmatprep.subr.mxu0 0.0
      %2739 = vmatpush1.msra.mxu0 0.0
      %2740 = vmatprep.subr.mxu0 0.0
      %2741 = vmatpush1.msra.mxu0 0.0
      %2742 = vmatprep.subr.mxu0 0.0
      %2743 = vmatpush1.msra.mxu0 0.0
      %2744 = vmatprep.subr.mxu0 0.0
      %2745 = vmatpush1.msra.mxu0 0.0
      %2746 = vmatprep.mubr.f32.mxu0 0.0
      %2747 = vmatmul.mubr.f32.gmra.mrb[0].mxu0 %v2677
      %v2748 = vpop.f32.mrb[0].mxu0
      %v2749 = vadd.f32 %v2674, %v2748
      %v2750 = vpop.f32.mrb[0].mxu0
      %2751 = vmatprep.mubr.f32.mxu0 0.0
      %2752 = vmatmul.mubr.f32.gmra.mrb[0].mxu0 %v2680
      %v2753 = vpop.f32.mrb[0].mxu0
      %v2754 = vadd.f32 %v2674, %v2753
      %v2755 = vpop.f32.mrb[0].mxu0
      %2756 = vdwg.mxu0
      %v2757 = vld [vmem:[%s816] sm:$0x1]
      %v2759 = vlaneseq
      %v2760 = vshrl.u32 %v2759, 7
      %v2761 = vsub.s32 0, %v2760
      %v2762 = vrot.slane %v2757, %v2761
      %v2764 = vmul.f32 %v2762, %v2749
      %v2765 = vmul.f32 %v2762, %v2754
      %v2766 = vadd.f32 %v1166, %v2764
      %v2767 = vadd.f32 %v1167, %v2765
      %v2768 = vld [vmem:[%s819] sm:$0x1]
      %v2769 = vld [vmem:[%s822] sm:$0x1]
      %v2770 = vsel %vm1170, %v2766, 0.0
      %2771 = vadd.xlane.f32.xlu0 %v2770
      %v2772 = vpop.xlane.xlu0 %2771
      %v2773 = vsel %vm1170, %v2767, 0.0
      %2774 = vadd.xlane.f32.xlu0 %v2773
      %v2775 = vpop.xlane.xlu0 %2774
      %v2776 = vmul.f32 %v2772, %v1177
      %v2777 = vmul.f32 %v2775, %v1177
      %v2778 = vsub.f32 %v2766, %v2776
      %v2779 = vsub.f32 %v2767, %v2777
      %v2780 = vmul.f32 %v2778, %v2778
      %v2781 = vmul.f32 %v2779, %v2779
      %v2782 = vsel %vm1170, %v2780, 0.0
      %2783 = vadd.xlane.f32.xlu0 %v2782
      %v2784 = vpop.xlane.xlu0 %2783
      %v2785 = vsel %vm1170, %v2781, 0.0
      %2786 = vadd.xlane.f32.xlu0 %v2785
      %v2787 = vpop.xlane.xlu0 %2786
      %v2788 = vmul.f32 %v2784, %v1177
      %v2789 = vmul.f32 %v2787, %v1177
      %v2790 = vadd.f32 %v2788, 1e-06
      %v2791 = vadd.f32 %v2789, 1e-06
      %v2792 = vrsqrt.pop %v2790
      %v2793 = vrsqrt.pop %v2791
      %v2794 = vmul.f32 %v2778, %v2792
      %v2795 = vmul.f32 %v2779, %v2793
      %v2797 = vlaneseq
      %v2798 = vshrl.u32 %v2797, 7
      %v2799 = vsub.s32 0, %v2798
      %v2800 = vrot.slane %v2768, %v2799
      %v2802 = vmul.f32 %v2794, %v2800
      %v2803 = vmul.f32 %v2795, %v2800
      %v2805 = vlaneseq
      %v2806 = vshrl.u32 %v2805, 7
      %v2807 = vsub.s32 0, %v2806
      %v2808 = vrot.slane %v2769, %v2807
      %v2810 = vadd.f32 %v2802, %v2808
      %v2811 = vadd.f32 %v2803, %v2808
      %v2812 = vld [vmem:[%s827] sm:$0xff]
      %v2813 = vld [vmem:[%s827 + $0x8] sm:$0xff]
      %v2814 = vld [vmem:[%s827 + $0x10] sm:$0xff]
      %v2815 = vld [vmem:[%s827 + $0x18] sm:$0xff]
      %v2816 = vld [vmem:[%s830] sm:$0x1]
      %v2818 = vlaneseq
      %v2819 = vshrl.u32 %v2818, 7
      %v2820 = vsub.s32 0, %v2819
      %v2821 = vrot.slane %v2816, %v2820
      %v2824 = vsel %vm1170, %v2810, 0
      %v2827 = vsel %vm1170, %v2811, 0
      %2829 = vmatprep.subr.mxu0 0.0
      %2830 = vmatpush1.msra.mxu0 %v2812
      %2831 = vmatprep.subr.mxu0 0.0
      %2832 = vmatpush1.msra.mxu0 %v2813
      %2833 = vmatprep.subr.mxu0 0.0
      %2834 = vmatpush1.msra.mxu0 %v2814
      %2835 = vmatprep.subr.mxu0 0.0
      %2836 = vmatpush1.msra.mxu0 %v2815
      %2837 = vmatprep.subr.mxu0 0.0
      %2838 = vmatpush1.msra.mxu0 0.0
      %2839 = vmatprep.subr.mxu0 0.0
      %2840 = vmatpush1.msra.mxu0 0.0
      %2841 = vmatprep.subr.mxu0 0.0
      %2842 = vmatpush1.msra.mxu0 0.0
      %2843 = vmatprep.subr.mxu0 0.0
      %2844 = vmatpush1.msra.mxu0 0.0
      %2845 = vmatprep.subr.mxu0 0.0
      %2846 = vmatpush1.msra.mxu0 0.0
      %2847 = vmatprep.subr.mxu0 0.0
      %2848 = vmatpush1.msra.mxu0 0.0
      %2849 = vmatprep.subr.mxu0 0.0
      %2850 = vmatpush1.msra.mxu0 0.0
      %2851 = vmatprep.subr.mxu0 0.0
      %2852 = vmatpush1.msra.mxu0 0.0
      %2853 = vmatprep.subr.mxu0 0.0
      %2854 = vmatpush1.msra.mxu0 0.0
      %2855 = vmatprep.subr.mxu0 0.0
      %2856 = vmatpush1.msra.mxu0 0.0
      %2857 = vmatprep.subr.mxu0 0.0
      %2858 = vmatpush1.msra.mxu0 0.0
      %2859 = vmatprep.subr.mxu0 0.0
      %2860 = vmatpush1.msra.mxu0 0.0
      %2861 = vmatprep.subr.mxu0 0.0
      %2862 = vmatpush1.msra.mxu0 0.0
      %2863 = vmatprep.subr.mxu0 0.0
      %2864 = vmatpush1.msra.mxu0 0.0
      %2865 = vmatprep.subr.mxu0 0.0
      %2866 = vmatpush1.msra.mxu0 0.0
      %2867 = vmatprep.subr.mxu0 0.0
      %2868 = vmatpush1.msra.mxu0 0.0
      %2869 = vmatprep.subr.mxu0 0.0
      %2870 = vmatpush1.msra.mxu0 0.0
      %2871 = vmatprep.subr.mxu0 0.0
      %2872 = vmatpush1.msra.mxu0 0.0
      %2873 = vmatprep.subr.mxu0 0.0
      %2874 = vmatpush1.msra.mxu0 0.0
      %2875 = vmatprep.subr.mxu0 0.0
      %2876 = vmatpush1.msra.mxu0 0.0
      %2877 = vmatprep.subr.mxu0 0.0
      %2878 = vmatpush1.msra.mxu0 0.0
      %2879 = vmatprep.subr.mxu0 0.0
      %2880 = vmatpush1.msra.mxu0 0.0
      %2881 = vmatprep.subr.mxu0 0.0
      %2882 = vmatpush1.msra.mxu0 0.0
      %2883 = vmatprep.subr.mxu0 0.0
      %2884 = vmatpush1.msra.mxu0 0.0
      %2885 = vmatprep.subr.mxu0 0.0
      %2886 = vmatpush1.msra.mxu0 0.0
      %2887 = vmatprep.subr.mxu0 0.0
      %2888 = vmatpush1.msra.mxu0 0.0
      %2889 = vmatprep.subr.mxu0 0.0
      %2890 = vmatpush1.msra.mxu0 0.0
      %2891 = vmatprep.subr.mxu0 0.0
      %2892 = vmatpush1.msra.mxu0 0.0
      %2893 = vmatprep.mubr.f32.mxu0 0.0
      %2894 = vmatmul.mubr.f32.gmra.mrb[0].mxu0 %v2824
      %v2895 = vpop.f32.mrb[0].mxu0
      %v2896 = vadd.f32 %v2821, %v2895
      %v2897 = vpop.f32.mrb[0].mxu0
      %2898 = vmatprep.mubr.f32.mxu0 0.0
      %2899 = vmatmul.mubr.f32.gmra.mrb[0].mxu0 %v2827
      %v2900 = vpop.f32.mrb[0].mxu0
      %v2901 = vadd.f32 %v2821, %v2900
      %v2902 = vpop.f32.mrb[0].mxu0
      %2903 = vdwg.mxu0
      %v2904 = vmul.f32 %v2896, 0.5
      %v2905 = vmul.f32 %v2901, 0.5
      %v2906 = vmul.f32 %v2896, 0.044715
      %v2907 = vmul.f32 %v2901, 0.044715
      %v2908 = vmul.f32 %v2906, %v2896
      %v2909 = vmul.f32 %v2907, %v2901
      %v2910 = vmul.f32 %v2908, %v2896
      %v2911 = vmul.f32 %v2909, %v2901
      %v2912 = vadd.f32 %v2896, %v2910
      %v2913 = vadd.f32 %v2901, %v2911
      %v2914 = vmul.f32 %v2912, 0.7978846
      %v2915 = vmul.f32 %v2913, 0.7978846
      %v2916 = vtanh.pop %v2914
      %v2917 = vtanh.pop %v2915
      %v2918 = vadd.f32 %v2916, 1.0
      %v2919 = vadd.f32 %v2917, 1.0
      %v2920 = vmul.f32 %v2904, %v2918
      %v2921 = vmul.f32 %v2905, %v2919
      %v2922 = vld [vmem:[%s835] sm:$0xff]
      %v2923 = vld [vmem:[%s835 + $0x8] sm:$0xff]
      %v2924 = vld [vmem:[%s835 + $0x10] sm:$0xff]
      %v2925 = vld [vmem:[%s835 + $0x18] sm:$0xff]
      %v2926 = vld [vmem:[%s835 + $0x20] sm:$0xff]
      %v2927 = vld [vmem:[%s835 + $0x28] sm:$0xff]
      %v2928 = vld [vmem:[%s835 + $0x30] sm:$0xff]
      %v2929 = vld [vmem:[%s835 + $0x38] sm:$0xff]
      %v2930 = vld [vmem:[%s835 + $0x40] sm:$0xff]
      %v2931 = vld [vmem:[%s835 + $0x48] sm:$0xff]
      %v2932 = vld [vmem:[%s835 + $0x50] sm:$0xff]
      %v2933 = vld [vmem:[%s835 + $0x58] sm:$0xff]
      %v2934 = vld [vmem:[%s835 + $0x60] sm:$0xff]
      %v2935 = vld [vmem:[%s835 + $0x68] sm:$0xff]
      %v2936 = vld [vmem:[%s835 + $0x70] sm:$0xff]
      %v2937 = vld [vmem:[%s835 + $0x78] sm:$0xff]
      %v2938 = vld [vmem:[%s838] sm:$0x1]
      %v2940 = vlaneseq
      %v2941 = vshrl.u32 %v2940, 7
      %v2942 = vsub.s32 0, %v2941
      %v2943 = vrot.slane %v2938, %v2942
      %2945 = vmatprep.subr.mxu0 0.0
      %2946 = vmatpush1.msra.mxu0 %v2922
      %2947 = vmatprep.subr.mxu0 0.0
      %2948 = vmatpush1.msra.mxu0 %v2923
      %2949 = vmatprep.subr.mxu0 0.0
      %2950 = vmatpush1.msra.mxu0 %v2924
      %2951 = vmatprep.subr.mxu0 0.0
      %2952 = vmatpush1.msra.mxu0 %v2925
      %2953 = vmatprep.subr.mxu0 0.0
      %2954 = vmatpush1.msra.mxu0 %v2926
      %2955 = vmatprep.subr.mxu0 0.0
      %2956 = vmatpush1.msra.mxu0 %v2927
      %2957 = vmatprep.subr.mxu0 0.0
      %2958 = vmatpush1.msra.mxu0 %v2928
      %2959 = vmatprep.subr.mxu0 0.0
      %2960 = vmatpush1.msra.mxu0 %v2929
      %2961 = vmatprep.subr.mxu0 0.0
      %2962 = vmatpush1.msra.mxu0 %v2930
      %2963 = vmatprep.subr.mxu0 0.0
      %2964 = vmatpush1.msra.mxu0 %v2931
      %2965 = vmatprep.subr.mxu0 0.0
      %2966 = vmatpush1.msra.mxu0 %v2932
      %2967 = vmatprep.subr.mxu0 0.0
      %2968 = vmatpush1.msra.mxu0 %v2933
      %2969 = vmatprep.subr.mxu0 0.0
      %2970 = vmatpush1.msra.mxu0 %v2934
      %2971 = vmatprep.subr.mxu0 0.0
      %2972 = vmatpush1.msra.mxu0 %v2935
      %2973 = vmatprep.subr.mxu0 0.0
      %2974 = vmatpush1.msra.mxu0 %v2936
      %2975 = vmatprep.subr.mxu0 0.0
      %2976 = vmatpush1.msra.mxu0 %v2937
      %2977 = vmatprep.subr.mxu0 0.0
      %2978 = vmatpush1.msra.mxu0 0.0
      %2979 = vmatprep.subr.mxu0 0.0
      %2980 = vmatpush1.msra.mxu0 0.0
      %2981 = vmatprep.subr.mxu0 0.0
      %2982 = vmatpush1.msra.mxu0 0.0
      %2983 = vmatprep.subr.mxu0 0.0
      %2984 = vmatpush1.msra.mxu0 0.0
      %2985 = vmatprep.subr.mxu0 0.0
      %2986 = vmatpush1.msra.mxu0 0.0
      %2987 = vmatprep.subr.mxu0 0.0
      %2988 = vmatpush1.msra.mxu0 0.0
      %2989 = vmatprep.subr.mxu0 0.0
      %2990 = vmatpush1.msra.mxu0 0.0
      %2991 = vmatprep.subr.mxu0 0.0
      %2992 = vmatpush1.msra.mxu0 0.0
      %2993 = vmatprep.subr.mxu0 0.0
      %2994 = vmatpush1.msra.mxu0 0.0
      %2995 = vmatprep.subr.mxu0 0.0
      %2996 = vmatpush1.msra.mxu0 0.0
      %2997 = vmatprep.subr.mxu0 0.0
      %2998 = vmatpush1.msra.mxu0 0.0
      %2999 = vmatprep.subr.mxu0 0.0
      %3000 = vmatpush1.msra.mxu0 0.0
      %3001 = vmatprep.subr.mxu0 0.0
      %3002 = vmatpush1.msra.mxu0 0.0
      %3003 = vmatprep.subr.mxu0 0.0
      %3004 = vmatpush1.msra.mxu0 0.0
      %3005 = vmatprep.subr.mxu0 0.0
      %3006 = vmatpush1.msra.mxu0 0.0
      %3007 = vmatprep.subr.mxu0 0.0
      %3008 = vmatpush1.msra.mxu0 0.0
      %3009 = vmatprep.mubr.f32.mxu0 0.0
      %3010 = vmatmul.mubr.f32.gmra.mrb[0].mxu0 %v2920
      %v3011 = vpop.f32.mrb[0].mxu0
      %v3012 = vadd.f32 %v2943, %v3011
      %v3013 = vpop.f32.mrb[0].mxu0
      %3014 = vmatprep.mubr.f32.mxu0 0.0
      %3015 = vmatmul.mubr.f32.gmra.mrb[0].mxu0 %v2921
      %v3016 = vpop.f32.mrb[0].mxu0
      %v3017 = vadd.f32 %v2943, %v3016
      %v3018 = vpop.f32.mrb[0].mxu0
      %3019 = vdwg.mxu0
      %v3020 = vld [vmem:[%s841] sm:$0x1]
      %v3022 = vlaneseq
      %v3023 = vshrl.u32 %v3022, 7
      %v3024 = vsub.s32 0, %v3023
      %v3025 = vrot.slane %v3020, %v3024
      %v3027 = vmul.f32 %v3025, %v3012
      %v3028 = vmul.f32 %v3025, %v3017
      %v3029 = vadd.f32 %v2766, %v3027
      %v3030 = vadd.f32 %v2767, %v3028
      %3031 = vst.msk [vmem:[#allocation2] sm:$0xff] %vm1170, %v3029
      %3032 = vst.msk [vmem:[#allocation2 + $0x8] sm:$0xff] %vm1170, %v3030
      %p3033 = scmp.eq.s32.totalorder %s32, 1
      // Predicated region
      $region109: #{custom_dinov2_forward.1} parent=103 // pred_check
        %p3034 = pneg %p3033
      $region110: #{custom_dinov2_forward.1} parent=103 // pred_check_branch
        %3036 = sbr.rel (%p3034) target = $region112
      $region111: #{custom_dinov2_forward.1} parent=103 // pred_region
        %v3037 = vld [vmem:[%s17] sm:$0x1]
        %v3038 = vld [vmem:[%s18] sm:$0x1]
        %v3039 = vsel %vm1170, %v3029, 0.0
        %3040 = vadd.xlane.f32.xlu0 %v3039
        %v3041 = vpop.xlane.xlu0 %3040
        %v3042 = vsel %vm1170, %v3030, 0.0
        %3043 = vadd.xlane.f32.xlu0 %v3042
        %v3044 = vpop.xlane.xlu0 %3043
        %v3045 = vmul.f32 %v3041, %v1177
        %v3046 = vmul.f32 %v3044, %v1177
        %v3047 = vsub.f32 %v3029, %v3045
        %v3048 = vsub.f32 %v3030, %v3046
        %v3049 = vmul.f32 %v3047, %v3047
        %v3050 = vmul.f32 %v3048, %v3048
        %v3051 = vsel %vm1170, %v3049, 0.0
        %3052 = vadd.xlane.f32.xlu0 %v3051
        %v3053 = vpop.xlane.xlu0 %3052
        %v3054 = vsel %vm1170, %v3050, 0.0
        %3055 = vadd.xlane.f32.xlu0 %v3054
        %v3056 = vpop.xlane.xlu0 %3055
        %v3057 = vmul.f32 %v3053, %v1177
        %v3058 = vmul.f32 %v3056, %v1177
        %v3059 = vadd.f32 %v3057, 1e-06
        %v3060 = vadd.f32 %v3058, 1e-06
        %v3061 = vrsqrt.pop %v3059
        %v3062 = vrsqrt.pop %v3060
        %v3063 = vmul.f32 %v3047, %v3061
        %v3064 = vmul.f32 %v3048, %v3062
        %v3066 = vlaneseq
        %v3067 = vshrl.u32 %v3066, 7
        %v3068 = vsub.s32 0, %v3067
        %v3069 = vrot.slane %v3037, %v3068
        %v3071 = vmul.f32 %v3063, %v3069
        %v3072 = vmul.f32 %v3064, %v3069
        %v3074 = vlaneseq
        %v3075 = vshrl.u32 %v3074, 7
        %v3076 = vsub.s32 0, %v3075
        %v3077 = vrot.slane %v3038, %v3076
        %v3079 = vadd.f32 %v3071, %v3077
        %v3080 = vadd.f32 %v3072, %v3077
        %v3081 = vld [vmem:[%s19] sm:$0xff]
        %v3082 = vld [vmem:[%s19 + $0x8] sm:$0xff]
        %v3083 = vld [vmem:[%s19 + $0x10] sm:$0xff]
        %v3084 = vld [vmem:[%s19 + $0x18] sm:$0xff]
        %v3085 = vld [vmem:[%s20] sm:$0x1]
        %v3087 = vlaneseq
        %v3088 = vshrl.u32 %v3087, 7
        %v3089 = vsub.s32 0, %v3088
        %v3090 = vrot.slane %v3085, %v3089
        %v3093 = vsel %vm1170, %v3079, 0
        %v3096 = vsel %vm1170, %v3080, 0
        %3098 = vmatprep.subr.mxu0 0.0
        %3099 = vmatpush1.msra.mxu0 %v3081
        %3100 = vmatprep.subr.mxu0 0.0
        %3101 = vmatpush1.msra.mxu0 %v3082
        %3102 = vmatprep.subr.mxu0 0.0
        %3103 = vmatpush1.msra.mxu0 %v3083
        %3104 = vmatprep.subr.mxu0 0.0
        %3105 = vmatpush1.msra.mxu0 %v3084
        %3106 = vmatprep.subr.mxu0 0.0
        %3107 = vmatpush1.msra.mxu0 0.0
        %3108 = vmatprep.subr.mxu0 0.0
        %3109 = vmatpush1.msra.mxu0 0.0
        %3110 = vmatprep.subr.mxu0 0.0
        %3111 = vmatpush1.msra.mxu0 0.0
        %3112 = vmatprep.subr.mxu0 0.0
        %3113 = vmatpush1.msra.mxu0 0.0
        %3114 = vmatprep.subr.mxu0 0.0
        %3115 = vmatpush1.msra.mxu0 0.0
        %3116 = vmatprep.subr.mxu0 0.0
        %3117 = vmatpush1.msra.mxu0 0.0
        %3118 = vmatprep.subr.mxu0 0.0
        %3119 = vmatpush1.msra.mxu0 0.0
        %3120 = vmatprep.subr.mxu0 0.0
        %3121 = vmatpush1.msra.mxu0 0.0
        %3122 = vmatprep.subr.mxu0 0.0
        %3123 = vmatpush1.msra.mxu0 0.0
        %3124 = vmatprep.subr.mxu0 0.0
        %3125 = vmatpush1.msra.mxu0 0.0
        %3126 = vmatprep.subr.mxu0 0.0
        %3127 = vmatpush1.msra.mxu0 0.0
        %3128 = vmatprep.subr.mxu0 0.0
        %3129 = vmatpush1.msra.mxu0 0.0
        %3130 = vmatprep.subr.mxu0 0.0
        %3131 = vmatpush1.msra.mxu0 0.0
        %3132 = vmatprep.subr.mxu0 0.0
        %3133 = vmatpush1.msra.mxu0 0.0
        %3134 = vmatprep.subr.mxu0 0.0
        %3135 = vmatpush1.msra.mxu0 0.0
        %3136 = vmatprep.subr.mxu0 0.0
        %3137 = vmatpush1.msra.mxu0 0.0
        %3138 = vmatprep.subr.mxu0 0.0
        %3139 = vmatpush1.msra.mxu0 0.0
        %3140 = vmatprep.subr.mxu0 0.0
        %3141 = vmatpush1.msra.mxu0 0.0
        %3142 = vmatprep.subr.mxu0 0.0
        %3143 = vmatpush1.msra.mxu0 0.0
        %3144 = vmatprep.subr.mxu0 0.0
        %3145 = vmatpush1.msra.mxu0 0.0
        %3146 = vmatprep.subr.mxu0 0.0
        %3147 = vmatpush1.msra.mxu0 0.0
        %3148 = vmatprep.subr.mxu0 0.0
        %3149 = vmatpush1.msra.mxu0 0.0
        %3150 = vmatprep.subr.mxu0 0.0
        %3151 = vmatpush1.msra.mxu0 0.0
        %3152 = vmatprep.subr.mxu0 0.0
        %3153 = vmatpush1.msra.mxu0 0.0
        %3154 = vmatprep.subr.mxu0 0.0
        %3155 = vmatpush1.msra.mxu0 0.0
        %3156 = vmatprep.subr.mxu0 0.0
        %3157 = vmatpush1.msra.mxu0 0.0
        %3158 = vmatprep.subr.mxu0 0.0
        %3159 = vmatpush1.msra.mxu0 0.0
        %3160 = vmatprep.subr.mxu0 0.0
        %3161 = vmatpush1.msra.mxu0 0.0
        %3162 = vmatprep.mubr.f32.mxu0 0.0
        %3163 = vmatmul.mubr.f32.gmra.mrb[0].mxu0 %v3093
        %v3164 = vpop.f32.mrb[0].mxu0
        %v3165 = vadd.f32 %v3090, %v3164
        %v3166 = vpop.f32.mrb[0].mxu0
        %3167 = vmatprep.mubr.f32.mxu0 0.0
        %3168 = vmatmul.mubr.f32.gmra.mrb[0].mxu0 %v3096
        %v3169 = vpop.f32.mrb[0].mxu0
        %v3170 = vadd.f32 %v3090, %v3169
        %v3171 = vpop.f32.mrb[0].mxu0
        %3172 = vdwg.mxu0
        %3173 = vst [vmem:[%s21] sm:$0xff] %v3165
        %3174 = vst [vmem:[%s21 + $0x8] sm:$0xff] %v3170
      $region112: #{custom_dinov2_forward.1} parent=103 // pred_fallthru
        _
      // Predicated region
      $region113: #{custom_dinov2_forward.1} parent=103 // pred_check
        %p3175 = pneg %p556
      $region114: #{custom_dinov2_forward.1} parent=103 // pred_check_branch
        %3177 = sbr.rel (%p3175) target = $region116
      $region115: #{custom_dinov2_forward.1} parent=103 // pred_region
        _
      $region116: #{custom_dinov2_forward.1} parent=103 // pred_fallthru
        _
      // Predicated region
      $region117: #{custom_dinov2_forward.1} parent=103 // pred_check
        %p3178 = pneg %p556
      $region118: #{custom_dinov2_forward.1} parent=103 // pred_check_branch
        %3180 = sbr.rel (%p3178) target = $region120
      $region119: #{custom_dinov2_forward.1} parent=103 // pred_region
        _
      $region120: #{custom_dinov2_forward.1} parent=103 // pred_fallthru
        _
    $region104: #{custom_dinov2_forward.1} parent=5 // pred_fallthru
      _
    %p3181 = scmp.le.s32.totalorder 2, %s27
    // Predicated region
    $region121: #{custom_dinov2_forward.1} parent=5 // pred_check
      %p3182 = pneg %p3181
    $region122: #{custom_dinov2_forward.1} parent=5 // pred_check_branch
      %3184 = sbr.rel (%p3182) target = $region124
    $region123: #{custom_dinov2_forward.1} parent=5 // pred_region
      %s3185 = ssub.s32 %s27, 2
    $region124: #{custom_dinov2_forward.1} parent=5 // pred_fallthru
      _
  $region6: #{custom_dinov2_forward.1} parent=0 // loop_footer
    %s31 = sadd.s32 1, %s27
  $region7: #{custom_dinov2_forward.1} parent=0 // loop_footer_branch
    %26 = sbr.rel target = $region3
  $region8: #{custom_dinov2_forward.1} parent=0 // loop_exit
    _

</llo_original>
